<compile_context>
chip_gen: v6e
topology: v6e:2x2x1
jax: 0.10.0
libtpu: 0.0.40
codegen_flags: <defaults>
</compile_context>

<pallas_src>
import numpy as np

import jax
import jax.numpy as jnp
from jax.experimental import pallas as pl
from jax.experimental.pallas import tpu as pltpu


# ---------------------------------------------------------------------------
# Fused forward kernel
# ---------------------------------------------------------------------------
def _fused_forward_kernel(
    x0_ref,
    r1_ref, g1_ref, b1_ref,
    r2_ref, g2_ref, b2_ref, gam2_ref, bet2_ref, a2_ref,
    r3_ref, g3_ref, b3_ref, gam3_ref, bet3_ref, a3_ref,
    p_ref, q_ref, bl_ref,
    out_ref,
):
    f32 = jnp.float32
    bf16 = jnp.bfloat16

    def conv(x_b, r_ref, g_ref, b_ref):
        # Conv2d(k=4, s=2, p=1):  y = sum_kh (R_kh @ x @ G_kh) + bias
        acc = None
        for kh in range(4):                       # unrolled: 8 small MXU dots
            t = jnp.dot(r_ref[kh], x_b, preferred_element_type=f32)
            u = jnp.dot(t.astype(bf16), g_ref[kh], preferred_element_type=f32)
            acc = u if acc is None else acc + u
        return acc + b_ref[...]

    def batchnorm(y, gam_ref, bet_ref, a_ref):
        # Train-mode per-channel stats over (N, OH, OW).  Row-mean covers
        # (N, OH); the constant matrix A averages across the OW groups and
        # broadcasts the per-channel value back over the (OW, C) lanes.
        a = a_ref[...]
        mu = jnp.mean(jnp.dot(y, a, preferred_element_type=f32),
                      axis=0, keepdims=True)
        d = y - mu
        var = jnp.mean(jnp.dot(d * d, a, preferred_element_type=f32),
                       axis=0, keepdims=True)      # biased var, as PyTorch BN
        return gam_ref[...] * (d * jax.lax.rsqrt(var + 1e-5)) + bet_ref[...]

    def lrelu(y):
        return jnp.maximum(y, 0.2 * y)             # LeakyReLU(0.2), 1 VALU op

    # Stage 1: Conv(1 -> md) + LeakyReLU                      -> [N*16, 16*md]
    y1 = lrelu(conv(x0_ref[...], r1_ref, g1_ref, b1_ref))
    # Stage 2: Conv(md -> 2md) + BN + LeakyReLU               -> [N*8, 8*2md]
    y2 = lrelu(batchnorm(conv(y1.astype(bf16), r2_ref, g2_ref, b2_ref),
                         gam2_ref, bet2_ref, a2_ref))
    # Stage 3: Conv(2md -> 4md) + BN + LeakyReLU              -> [N*4, 4*4md]
    y3 = lrelu(batchnorm(conv(y2.astype(bf16), r3_ref, g3_ref, b3_ref),
                         gam3_ref, bet3_ref, a3_ref))

    # Flatten in PyTorch NCHW order + Linear, expressed as 4 row-select /
    # column-regroup matmul pairs so no in-kernel reshape is needed.
    y3b = y3.astype(bf16)
    out = None
    for h in range(4):
        t = jnp.dot(p_ref[h], y3b, preferred_element_type=f32)
        u = jnp.dot(t.astype(bf16), q_ref[h], preferred_element_type=f32)
        out = u if out is None else out + u
    out_ref[...] = out + bl_ref[...]


_VMEM = pl.BlockSpec(memory_space=pltpu.MemorySpace.VMEM)


def _cost_estimate(consts, x0_shape):
    flops = 0
    for rk, gk in (("r1", "g1"), ("r2", "g2"), ("r3", "g3"), ("p", "q")):
        _, ro, ri = consts[rk].shape
        _, kc, co = consts[gk].shape
        flops += 4 * 2 * (ro * ri * kc + ro * kc * co)
    for rk, ak in (("r2", "a2"), ("r3", "a3")):          # BN stat matmuls
        rows = consts[rk].shape[1]
        cols = consts[ak].shape[0]
        flops += 2 * 2 * rows * cols * cols
    bytes_accessed = int(np.prod(x0_shape)) * 2 + sum(
        int(np.prod(v.shape)) * v.dtype.itemsize for v in consts.values())
    bytes_accessed += int(consts["p"].shape[1]) * int(consts["q"].shape[2]) * 4
    transcendentals = int(consts["a2"].shape[0] + consts["a3"].shape[0])
    return pl.CostEstimate(flops=int(flops), transcendentals=transcendentals,
                           bytes_accessed=int(bytes_accessed))


@jax.jit
def inverse_generator_forward(img, consts):
    """img: [N, 1, 32, 32] float32 (NCHW).  Returns [N, latent_dim] float32."""
    n, c, h, w = img.shape
    assert c == 1 and h == 32 and w == 32, "expects 1x32x32 (3 stride-2 convs -> 4x4)"
    latent_dim = consts["bl"].shape[1]

    # NCHW (C == 1) -> [N*H, W] channel-last slab; the only wrapper-side glue.
    x0 = img.reshape(n * h, w).astype(jnp.bfloat16)

    args = (
        x0,
        consts["r1"], consts["g1"], consts["b1"],
        consts["r2"], consts["g2"], consts["b2"],
        consts["gam2"], consts["bet2"], consts["a2"],
        consts["r3"], consts["g3"], consts["b3"],
        consts["gam3"], consts["bet3"], consts["a3"],
        consts["p"], consts["q"], consts["bl"],
    )
    return pl.pallas_call(
        _fused_forward_kernel,
        out_shape=jax.ShapeDtypeStruct((n, latent_dim), jnp.float32),
        in_specs=[_VMEM] * len(args),
        out_specs=_VMEM,
        cost_estimate=_cost_estimate(consts, x0.shape),
    )(*args)


# ---------------------------------------------------------------------------
# Host-side constant construction (once, from PyTorch-layout parameters)
# ---------------------------------------------------------------------------
def _row_select(n_batch, oh_out, oh_in, kh):
    """R_kh[(n,oy),(n',iy)] = 1 iff n==n' and iy == 2*oy + kh - 1 (padding -> 0)."""
    r = np.zeros((n_batch * oh_out, n_batch * oh_in), np.float32)
    for n in range(n_batch):
        for oy in range(oh_out):
            iy = 2 * oy + kh - 1
            if 0 <= iy < oh_in:
                r[n * oh_out + oy, n * oh_in + iy] = 1.0
    return r


def _col_weight(w_oihw, ow_out, ow_in, kh):
    """G_kh[(ix,ci),(ox,co)] = W[co,ci,kh,kw] with kw = ix - 2*ox + 1 (padding -> 0)."""
    cout, cin, _, kw_sz = w_oihw.shape
    g = np.zeros((ow_in * cin, ow_out * cout), np.float32)
    for ox in range(ow_out):
        for kw in range(kw_sz):
            ix = 2 * ox + kw - 1
            if 0 <= ix < ow_in:
                g[ix * cin:(ix + 1) * cin, ox * cout:(ox + 1) * cout] = \
                    w_oihw[:, :, kh, kw].T
    return g


def _chan_avg(ow, c):
    """A[(ox,c'),(ox',c')] = 1/OW: per-channel average over width groups,
    broadcast back across all (ox', c') columns."""
    a = np.zeros((ow * c, ow * c), np.float32)
    for ci in range(c):
        a[ci::c, ci::c] = 1.0 / ow
    return a


def _lin_p(n_batch, oh, h):
    """P_h[n, (n',h')] = 1 iff n==n' and h'==h (selects spatial row h)."""
    p = np.zeros((n_batch, n_batch * oh), np.float32)
    for n in range(n_batch):
        p[n, n * oh + h] = 1.0
    return p


def _lin_q(wl, oh, ow, c, h):
    """Q_h[(w,ci), l] = WL[l, ci*OH*OW + h*OW + w]  (PyTorch NCHW flatten)."""
    q = np.zeros((ow * c, wl.shape[0]), np.float32)
    for w in range(ow):
        for ci in range(c):
            q[w * c + ci, :] = wl[:, ci * (oh * ow) + h * ow + w]
    return q


def init_raw_params(key, latent_dim, model_dim):
    """PyTorch-layout parameters of InverseGenerator (forward path only)."""
    md = model_dim
    ks = jax.random.split(key, 8)

    def nrm(k, shape):
        return 0.1 * jax.random.normal(k, shape, jnp.float32)

    return dict(
        W1=nrm(ks[0], (md, 1, 4, 4)),           b1=nrm(ks[1], (md,)),
        W2=nrm(ks[2], (2 * md, md, 4, 4)),      b2=nrm(ks[3], (2 * md,)),
        g2=jnp.ones((2 * md,), jnp.float32),    be2=jnp.zeros((2 * md,), jnp.float32),
        W3=nrm(ks[4], (4 * md, 2 * md, 4, 4)),  b3=nrm(ks[5], (4 * md,)),
        g3=jnp.ones((4 * md,), jnp.float32),    be3=jnp.zeros((4 * md,), jnp.float32),
        WL=nrm(ks[6], (latent_dim, 4 * 4 * 4 * md)),
        bl=nrm(ks[7], (latent_dim,)),
    )


def build_kernel_consts(raw, batch):
    """Pack PyTorch-layout params into the kernel's factorized constants."""
    r = {k: np.asarray(v) for k, v in raw.items()}
    md = r["W1"].shape[0]
    H = (32, 16, 8, 4)                       # spatial size after each stage
    bf16 = jnp.bfloat16

    def stack4(fn, dtype=bf16):
        return jnp.asarray(np.stack([fn(i) for i in range(4)]), dtype=dtype)

    def tile_f32(vec, ow):
        return jnp.asarray(np.tile(vec, ow), dtype=jnp.float32)[None, :]

    return dict(
        # stage 1: Conv(1 -> md), no BN
        r1=stack4(lambda kh: _row_select(batch, H[1], H[0], kh)),
        g1=stack4(lambda kh: _col_weight(r["W1"], H[1], H[0], kh)),
        b1=tile_f32(r["b1"], H[1]),
        # stage 2: Conv(md -> 2md) + BN
        r2=stack4(lambda kh: _row_select(batch, H[2], H[1], kh)),
        g2=stack4(lambda kh: _col_weight(r["W2"], H[2], H[1], kh)),
        b2=tile_f32(r["b2"], H[2]),
        gam2=tile_f32(r["g2"], H[2]),
        bet2=tile_f32(r["be2"], H[2]),
        a2=jnp.asarray(_chan_avg(H[2], 2 * md)),
        # stage 3: Conv(2md -> 4md) + BN
        r3=stack4(lambda kh: _row_select(batch, H[3], H[2], kh)),
        g3=stack4(lambda kh: _col_weight(r["W3"], H[3], H[2], kh)),
        b3=tile_f32(r["b3"], H[3]),
        gam3=tile_f32(r["g3"], H[3]),
        bet3=tile_f32(r["be3"], H[3]),
        a3=jnp.asarray(_chan_avg(H[3], 4 * md)),
        # NCHW flatten + Linear
        p=stack4(lambda h: _lin_p(batch, H[3], h)),
        q=stack4(lambda h: _lin_q(r["WL"], H[3], H[3], 4 * md, h)),
        bl=jnp.asarray(r["bl"], dtype=jnp.float32)[None, :],
    )


# ---------------------------------------------------------------------------
# Pure-JAX reference (independent path: XLA conv) for correctness checking
# ---------------------------------------------------------------------------
def reference_forward(img, raw):
    def conv(x, w, b):
        y = jax.lax.conv_general_dilated(
            x, w, window_strides=(2, 2), padding=((1, 1), (1, 1)),
            dimension_numbers=("NCHW", "OIHW", "NCHW"))
        return y + b[None, :, None, None]

    def bn(y, g, be):
        mu = jnp.mean(y, axis=(0, 2, 3), keepdims=True)
        var = jnp.mean((y - mu) ** 2, axis=(0, 2, 3), keepdims=True)
        return (g[None, :, None, None] * (y - mu) * jax.lax.rsqrt(var + 1e-5)
                + be[None, :, None, None])

    def lrelu(y):
        return jnp.where(y > 0, y, 0.2 * y)

    y = lrelu(conv(img, raw["W1"], raw["b1"]))
    y = lrelu(bn(conv(y, raw["W2"], raw["b2"]), raw["g2"], raw["be2"]))
    y = lrelu(bn(conv(y, raw["W3"], raw["b3"]), raw["g3"], raw["be3"]))
    flat = y.reshape(y.shape[0], -1)            # NCHW flatten: (c, h, w)
    return flat @ raw["WL"].T + raw["bl"][None, :]


# ---------------------------------------------------------------------------
if __name__ == "__main__":
    latent_dim, model_dim, batch = 32, 4, 2

    key = jax.random.PRNGKey(0)
    k_img, k_par = jax.random.split(key)
    # Input must be 32x32 so three stride-2 convs give the 4x4 the Linear expects.
    img = jax.random.normal(k_img, (batch, 1, 32, 32), jnp.float32)

    raw = init_raw_params(k_par, latent_dim, model_dim)
    consts = build_kernel_consts(raw, batch)

    out = inverse_generator_forward(img, consts)
    out = jax.block_until_ready(out)
    assert out.shape == (batch, latent_dim)

    ref = jax.block_until_ready(reference_forward(img, raw))
    np.testing.assert_allclose(np.asarray(out), np.asarray(ref), rtol=0.1, atol=0.1)
    print("KERNEL_OK")
</pallas_src>

<mosaic_0001>
module attributes {stable_mosaic.version = 11 : i64} {
  func.func @_fused_forward_kernel(%arg0: memref<64x32xbf16, #tpu.memory_space<vmem>>, %arg1: memref<4x32x64xbf16, #tpu.memory_space<vmem>>, %arg2: memref<4x32x64xbf16, #tpu.memory_space<vmem>>, %arg3: memref<1x64xf32, #tpu.memory_space<vmem>>, %arg4: memref<4x16x32xbf16, #tpu.memory_space<vmem>>, %arg5: memref<4x64x64xbf16, #tpu.memory_space<vmem>>, %arg6: memref<1x64xf32, #tpu.memory_space<vmem>>, %arg7: memref<1x64xf32, #tpu.memory_space<vmem>>, %arg8: memref<1x64xf32, #tpu.memory_space<vmem>>, %arg9: memref<64x64xf32, #tpu.memory_space<vmem>>, %arg10: memref<4x8x16xbf16, #tpu.memory_space<vmem>>, %arg11: memref<4x64x64xbf16, #tpu.memory_space<vmem>>, %arg12: memref<1x64xf32, #tpu.memory_space<vmem>>, %arg13: memref<1x64xf32, #tpu.memory_space<vmem>>, %arg14: memref<1x64xf32, #tpu.memory_space<vmem>>, %arg15: memref<64x64xf32, #tpu.memory_space<vmem>>, %arg16: memref<4x2x8xbf16, #tpu.memory_space<vmem>>, %arg17: memref<4x64x32xbf16, #tpu.memory_space<vmem>>, %arg18: memref<1x32xf32, #tpu.memory_space<vmem>>, %arg19: memref<2x32xf32, #tpu.memory_space<vmem>>) attributes {dimension_semantics = [], scalar_prefetch = 0 : i64, scratch_operands = 0 : i64, tpu.core_type = #tpu.core_type<tc>} {
    %c0 = arith.constant 0 : index
    %c0_0 = arith.constant 0 : index
    %0 = vector.load %arg0[%c0, %c0_0] : memref<64x32xbf16, #tpu.memory_space<vmem>>, vector<64x32xbf16>
    %c0_1 = arith.constant 0 : index
    %c0_2 = arith.constant 0 : index
    %c0_3 = arith.constant 0 : index
    %1 = vector.load %arg1[%c0_1, %c0_2, %c0_3] : memref<4x32x64xbf16, #tpu.memory_space<vmem>>, vector<1x32x64xbf16>
    %2 = vector.shape_cast %1 : vector<1x32x64xbf16> to vector<32x64xbf16>
    %cst = arith.constant dense<0.000000e+00> : vector<32x32xf32>
    %3 = tpu.matmul %2, %0, %cst {dimension_numbers = #tpu.dot_dimension_numbers<[1], [0], [0], [1], [0, 0, 1, 1], [], []>} : vector<32x64xbf16>, vector<64x32xbf16>, vector<32x32xf32> -> vector<32x32xf32>
    %4 = arith.truncf %3 : vector<32x32xf32> to vector<32x32xbf16>
    %c0_4 = arith.constant 0 : index
    %c0_5 = arith.constant 0 : index
    %c0_6 = arith.constant 0 : index
    %5 = vector.load %arg2[%c0_4, %c0_5, %c0_6] : memref<4x32x64xbf16, #tpu.memory_space<vmem>>, vector<1x32x64xbf16>
    %6 = vector.shape_cast %5 : vector<1x32x64xbf16> to vector<32x64xbf16>
    %cst_7 = arith.constant dense<0.000000e+00> : vector<32x64xf32>
    %7 = tpu.matmul %4, %6, %cst_7 {dimension_numbers = #tpu.dot_dimension_numbers<[1], [0], [0], [1], [0, 0, 1, 1], [], []>} : vector<32x32xbf16>, vector<32x64xbf16>, vector<32x64xf32> -> vector<32x64xf32>
    %c1 = arith.constant 1 : index
    %c0_8 = arith.constant 0 : index
    %c0_9 = arith.constant 0 : index
    %8 = vector.load %arg1[%c1, %c0_8, %c0_9] : memref<4x32x64xbf16, #tpu.memory_space<vmem>>, vector<1x32x64xbf16>
    %9 = vector.shape_cast %8 : vector<1x32x64xbf16> to vector<32x64xbf16>
    %cst_10 = arith.constant dense<0.000000e+00> : vector<32x32xf32>
    %10 = tpu.matmul %9, %0, %cst_10 {dimension_numbers = #tpu.dot_dimension_numbers<[1], [0], [0], [1], [0, 0, 1, 1], [], []>} : vector<32x64xbf16>, vector<64x32xbf16>, vector<32x32xf32> -> vector<32x32xf32>
    %11 = arith.truncf %10 : vector<32x32xf32> to vector<32x32xbf16>
    %c1_11 = arith.constant 1 : index
    %c0_12 = arith.constant 0 : index
    %c0_13 = arith.constant 0 : index
    %12 = vector.load %arg2[%c1_11, %c0_12, %c0_13] : memref<4x32x64xbf16, #tpu.memory_space<vmem>>, vector<1x32x64xbf16>
    %13 = vector.shape_cast %12 : vector<1x32x64xbf16> to vector<32x64xbf16>
    %cst_14 = arith.constant dense<0.000000e+00> : vector<32x64xf32>
    %14 = tpu.matmul %11, %13, %cst_14 {dimension_numbers = #tpu.dot_dimension_numbers<[1], [0], [0], [1], [0, 0, 1, 1], [], []>} : vector<32x32xbf16>, vector<32x64xbf16>, vector<32x64xf32> -> vector<32x64xf32>
    %15 = arith.addf %7, %14 : vector<32x64xf32>
    %c2 = arith.constant 2 : index
    %c0_15 = arith.constant 0 : index
    %c0_16 = arith.constant 0 : index
    %16 = vector.load %arg1[%c2, %c0_15, %c0_16] : memref<4x32x64xbf16, #tpu.memory_space<vmem>>, vector<1x32x64xbf16>
    %17 = vector.shape_cast %16 : vector<1x32x64xbf16> to vector<32x64xbf16>
    %cst_17 = arith.constant dense<0.000000e+00> : vector<32x32xf32>
    %18 = tpu.matmul %17, %0, %cst_17 {dimension_numbers = #tpu.dot_dimension_numbers<[1], [0], [0], [1], [0, 0, 1, 1], [], []>} : vector<32x64xbf16>, vector<64x32xbf16>, vector<32x32xf32> -> vector<32x32xf32>
    %19 = arith.truncf %18 : vector<32x32xf32> to vector<32x32xbf16>
    %c2_18 = arith.constant 2 : index
    %c0_19 = arith.constant 0 : index
    %c0_20 = arith.constant 0 : index
    %20 = vector.load %arg2[%c2_18, %c0_19, %c0_20] : memref<4x32x64xbf16, #tpu.memory_space<vmem>>, vector<1x32x64xbf16>
    %21 = vector.shape_cast %20 : vector<1x32x64xbf16> to vector<32x64xbf16>
    %cst_21 = arith.constant dense<0.000000e+00> : vector<32x64xf32>
    %22 = tpu.matmul %19, %21, %cst_21 {dimension_numbers = #tpu.dot_dimension_numbers<[1], [0], [0], [1], [0, 0, 1, 1], [], []>} : vector<32x32xbf16>, vector<32x64xbf16>, vector<32x64xf32> -> vector<32x64xf32>
    %23 = arith.addf %15, %22 : vector<32x64xf32>
    %c3 = arith.constant 3 : index
    %c0_22 = arith.constant 0 : index
    %c0_23 = arith.constant 0 : index
    %24 = vector.load %arg1[%c3, %c0_22, %c0_23] : memref<4x32x64xbf16, #tpu.memory_space<vmem>>, vector<1x32x64xbf16>
    %25 = vector.shape_cast %24 : vector<1x32x64xbf16> to vector<32x64xbf16>
    %cst_24 = arith.constant dense<0.000000e+00> : vector<32x32xf32>
    %26 = tpu.matmul %25, %0, %cst_24 {dimension_numbers = #tpu.dot_dimension_numbers<[1], [0], [0], [1], [0, 0, 1, 1], [], []>} : vector<32x64xbf16>, vector<64x32xbf16>, vector<32x32xf32> -> vector<32x32xf32>
    %27 = arith.truncf %26 : vector<32x32xf32> to vector<32x32xbf16>
    %c3_25 = arith.constant 3 : index
    %c0_26 = arith.constant 0 : index
    %c0_27 = arith.constant 0 : index
    %28 = vector.load %arg2[%c3_25, %c0_26, %c0_27] : memref<4x32x64xbf16, #tpu.memory_space<vmem>>, vector<1x32x64xbf16>
    %29 = vector.shape_cast %28 : vector<1x32x64xbf16> to vector<32x64xbf16>
    %cst_28 = arith.constant dense<0.000000e+00> : vector<32x64xf32>
    %30 = tpu.matmul %27, %29, %cst_28 {dimension_numbers = #tpu.dot_dimension_numbers<[1], [0], [0], [1], [0, 0, 1, 1], [], []>} : vector<32x32xbf16>, vector<32x64xbf16>, vector<32x64xf32> -> vector<32x64xf32>
    %31 = arith.addf %23, %30 : vector<32x64xf32>
    %c0_29 = arith.constant 0 : index
    %c0_30 = arith.constant 0 : index
    %32 = vector.load %arg3[%c0_29, %c0_30] : memref<1x64xf32, #tpu.memory_space<vmem>>, vector<1x64xf32>
    %33 = vector.broadcast %32 : vector<1x64xf32> to vector<32x64xf32>
    %34 = arith.addf %31, %33 : vector<32x64xf32>
    %cst_31 = arith.constant 2.000000e-01 : f32
    %35 = vector.broadcast %cst_31 : f32 to vector<32x64xf32>
    %36 = arith.mulf %35, %34 : vector<32x64xf32>
    %37 = arith.maximumf %34, %36 : vector<32x64xf32>
    %38 = arith.truncf %37 : vector<32x64xf32> to vector<32x64xbf16>
    %c0_32 = arith.constant 0 : index
    %c0_33 = arith.constant 0 : index
    %c0_34 = arith.constant 0 : index
    %39 = vector.load %arg4[%c0_32, %c0_33, %c0_34] : memref<4x16x32xbf16, #tpu.memory_space<vmem>>, vector<1x16x32xbf16>
    %40 = vector.shape_cast %39 : vector<1x16x32xbf16> to vector<16x32xbf16>
    %cst_35 = arith.constant dense<0.000000e+00> : vector<16x64xf32>
    %41 = tpu.matmul %40, %38, %cst_35 {dimension_numbers = #tpu.dot_dimension_numbers<[1], [0], [0], [1], [0, 0, 1, 1], [], []>} : vector<16x32xbf16>, vector<32x64xbf16>, vector<16x64xf32> -> vector<16x64xf32>
    %42 = arith.truncf %41 : vector<16x64xf32> to vector<16x64xbf16>
    %c0_36 = arith.constant 0 : index
    %c0_37 = arith.constant 0 : index
    %c0_38 = arith.constant 0 : index
    %43 = vector.load %arg5[%c0_36, %c0_37, %c0_38] : memref<4x64x64xbf16, #tpu.memory_space<vmem>>, vector<1x64x64xbf16>
    %44 = vector.shape_cast %43 : vector<1x64x64xbf16> to vector<64x64xbf16>
    %cst_39 = arith.constant dense<0.000000e+00> : vector<16x64xf32>
    %45 = tpu.matmul %42, %44, %cst_39 {dimension_numbers = #tpu.dot_dimension_numbers<[1], [0], [0], [1], [0, 0, 1, 1], [], []>} : vector<16x64xbf16>, vector<64x64xbf16>, vector<16x64xf32> -> vector<16x64xf32>
    %c1_40 = arith.constant 1 : index
    %c0_41 = arith.constant 0 : index
    %c0_42 = arith.constant 0 : index
    %46 = vector.load %arg4[%c1_40, %c0_41, %c0_42] : memref<4x16x32xbf16, #tpu.memory_space<vmem>>, vector<1x16x32xbf16>
    %47 = vector.shape_cast %46 : vector<1x16x32xbf16> to vector<16x32xbf16>
    %cst_43 = arith.constant dense<0.000000e+00> : vector<16x64xf32>
    %48 = tpu.matmul %47, %38, %cst_43 {dimension_numbers = #tpu.dot_dimension_numbers<[1], [0], [0], [1], [0, 0, 1, 1], [], []>} : vector<16x32xbf16>, vector<32x64xbf16>, vector<16x64xf32> -> vector<16x64xf32>
    %49 = arith.truncf %48 : vector<16x64xf32> to vector<16x64xbf16>
    %c1_44 = arith.constant 1 : index
    %c0_45 = arith.constant 0 : index
    %c0_46 = arith.constant 0 : index
    %50 = vector.load %arg5[%c1_44, %c0_45, %c0_46] : memref<4x64x64xbf16, #tpu.memory_space<vmem>>, vector<1x64x64xbf16>
    %51 = vector.shape_cast %50 : vector<1x64x64xbf16> to vector<64x64xbf16>
    %cst_47 = arith.constant dense<0.000000e+00> : vector<16x64xf32>
    %52 = tpu.matmul %49, %51, %cst_47 {dimension_numbers = #tpu.dot_dimension_numbers<[1], [0], [0], [1], [0, 0, 1, 1], [], []>} : vector<16x64xbf16>, vector<64x64xbf16>, vector<16x64xf32> -> vector<16x64xf32>
    %53 = arith.addf %45, %52 : vector<16x64xf32>
    %c2_48 = arith.constant 2 : index
    %c0_49 = arith.constant 0 : index
    %c0_50 = arith.constant 0 : index
    %54 = vector.load %arg4[%c2_48, %c0_49, %c0_50] : memref<4x16x32xbf16, #tpu.memory_space<vmem>>, vector<1x16x32xbf16>
    %55 = vector.shape_cast %54 : vector<1x16x32xbf16> to vector<16x32xbf16>
    %cst_51 = arith.constant dense<0.000000e+00> : vector<16x64xf32>
    %56 = tpu.matmul %55, %38, %cst_51 {dimension_numbers = #tpu.dot_dimension_numbers<[1], [0], [0], [1], [0, 0, 1, 1], [], []>} : vector<16x32xbf16>, vector<32x64xbf16>, vector<16x64xf32> -> vector<16x64xf32>
    %57 = arith.truncf %56 : vector<16x64xf32> to vector<16x64xbf16>
    %c2_52 = arith.constant 2 : index
    %c0_53 = arith.constant 0 : index
    %c0_54 = arith.constant 0 : index
    %58 = vector.load %arg5[%c2_52, %c0_53, %c0_54] : memref<4x64x64xbf16, #tpu.memory_space<vmem>>, vector<1x64x64xbf16>
    %59 = vector.shape_cast %58 : vector<1x64x64xbf16> to vector<64x64xbf16>
    %cst_55 = arith.constant dense<0.000000e+00> : vector<16x64xf32>
    %60 = tpu.matmul %57, %59, %cst_55 {dimension_numbers = #tpu.dot_dimension_numbers<[1], [0], [0], [1], [0, 0, 1, 1], [], []>} : vector<16x64xbf16>, vector<64x64xbf16>, vector<16x64xf32> -> vector<16x64xf32>
    %61 = arith.addf %53, %60 : vector<16x64xf32>
    %c3_56 = arith.constant 3 : index
    %c0_57 = arith.constant 0 : index
    %c0_58 = arith.constant 0 : index
    %62 = vector.load %arg4[%c3_56, %c0_57, %c0_58] : memref<4x16x32xbf16, #tpu.memory_space<vmem>>, vector<1x16x32xbf16>
    %63 = vector.shape_cast %62 : vector<1x16x32xbf16> to vector<16x32xbf16>
    %cst_59 = arith.constant dense<0.000000e+00> : vector<16x64xf32>
    %64 = tpu.matmul %63, %38, %cst_59 {dimension_numbers = #tpu.dot_dimension_numbers<[1], [0], [0], [1], [0, 0, 1, 1], [], []>} : vector<16x32xbf16>, vector<32x64xbf16>, vector<16x64xf32> -> vector<16x64xf32>
    %65 = arith.truncf %64 : vector<16x64xf32> to vector<16x64xbf16>
    %c3_60 = arith.constant 3 : index
    %c0_61 = arith.constant 0 : index
    %c0_62 = arith.constant 0 : index
    %66 = vector.load %arg5[%c3_60, %c0_61, %c0_62] : memref<4x64x64xbf16, #tpu.memory_space<vmem>>, vector<1x64x64xbf16>
    %67 = vector.shape_cast %66 : vector<1x64x64xbf16> to vector<64x64xbf16>
    %cst_63 = arith.constant dense<0.000000e+00> : vector<16x64xf32>
    %68 = tpu.matmul %65, %67, %cst_63 {dimension_numbers = #tpu.dot_dimension_numbers<[1], [0], [0], [1], [0, 0, 1, 1], [], []>} : vector<16x64xbf16>, vector<64x64xbf16>, vector<16x64xf32> -> vector<16x64xf32>
    %69 = arith.addf %61, %68 : vector<16x64xf32>
    %c0_64 = arith.constant 0 : index
    %c0_65 = arith.constant 0 : index
    %70 = vector.load %arg6[%c0_64, %c0_65] : memref<1x64xf32, #tpu.memory_space<vmem>>, vector<1x64xf32>
    %71 = vector.broadcast %70 : vector<1x64xf32> to vector<16x64xf32>
    %72 = arith.addf %69, %71 : vector<16x64xf32>
    %c0_66 = arith.constant 0 : index
    %c0_67 = arith.constant 0 : index
    %73 = vector.load %arg9[%c0_66, %c0_67] : memref<64x64xf32, #tpu.memory_space<vmem>>, vector<64x64xf32>
    %cst_68 = arith.constant dense<0.000000e+00> : vector<16x64xf32>
    %74 = tpu.matmul %72, %73, %cst_68 {dimension_numbers = #tpu.dot_dimension_numbers<[1], [0], [0], [1], [0, 0, 1, 1], [], []>} : vector<16x64xf32>, vector<64x64xf32>, vector<16x64xf32> -> vector<16x64xf32>
    %cst_69 = arith.constant dense<0.000000e+00> : vector<64xf32>
    %75 = vector.multi_reduction <add>, %74, %cst_69 [0] : vector<16x64xf32> to vector<64xf32>
    %76 = vector.shape_cast %75 : vector<64xf32> to vector<1x64xf32>
    %cst_70 = arith.constant 1.600000e+01 : f32
    %77 = vector.broadcast %cst_70 : f32 to vector<1x64xf32>
    %78 = arith.divf %76, %77 : vector<1x64xf32>
    %79 = vector.broadcast %78 : vector<1x64xf32> to vector<16x64xf32>
    %80 = arith.subf %72, %79 : vector<16x64xf32>
    %81 = arith.mulf %80, %80 : vector<16x64xf32>
    %cst_71 = arith.constant dense<0.000000e+00> : vector<16x64xf32>
    %82 = tpu.matmul %81, %73, %cst_71 {dimension_numbers = #tpu.dot_dimension_numbers<[1], [0], [0], [1], [0, 0, 1, 1], [], []>} : vector<16x64xf32>, vector<64x64xf32>, vector<16x64xf32> -> vector<16x64xf32>
    %cst_72 = arith.constant dense<0.000000e+00> : vector<64xf32>
    %83 = vector.multi_reduction <add>, %82, %cst_72 [0] : vector<16x64xf32> to vector<64xf32>
    %84 = vector.shape_cast %83 : vector<64xf32> to vector<1x64xf32>
    %cst_73 = arith.constant 1.600000e+01 : f32
    %85 = vector.broadcast %cst_73 : f32 to vector<1x64xf32>
    %86 = arith.divf %84, %85 : vector<1x64xf32>
    %c0_74 = arith.constant 0 : index
    %c0_75 = arith.constant 0 : index
    %87 = vector.load %arg7[%c0_74, %c0_75] : memref<1x64xf32, #tpu.memory_space<vmem>>, vector<1x64xf32>
    %cst_76 = arith.constant 9.99999974E-6 : f32
    %88 = vector.broadcast %cst_76 : f32 to vector<1x64xf32>
    %89 = arith.addf %86, %88 : vector<1x64xf32>
    %90 = math.rsqrt %89 : vector<1x64xf32>
    %91 = vector.broadcast %90 : vector<1x64xf32> to vector<16x64xf32>
    %92 = arith.mulf %80, %91 : vector<16x64xf32>
    %93 = vector.broadcast %87 : vector<1x64xf32> to vector<16x64xf32>
    %94 = arith.mulf %93, %92 : vector<16x64xf32>
    %c0_77 = arith.constant 0 : index
    %c0_78 = arith.constant 0 : index
    %95 = vector.load %arg8[%c0_77, %c0_78] : memref<1x64xf32, #tpu.memory_space<vmem>>, vector<1x64xf32>
    %96 = vector.broadcast %95 : vector<1x64xf32> to vector<16x64xf32>
    %97 = arith.addf %94, %96 : vector<16x64xf32>
    %cst_79 = arith.constant 2.000000e-01 : f32
    %98 = vector.broadcast %cst_79 : f32 to vector<16x64xf32>
    %99 = arith.mulf %98, %97 : vector<16x64xf32>
    %100 = arith.maximumf %97, %99 : vector<16x64xf32>
    %101 = arith.truncf %100 : vector<16x64xf32> to vector<16x64xbf16>
    %c0_80 = arith.constant 0 : index
    %c0_81 = arith.constant 0 : index
    %c0_82 = arith.constant 0 : index
    %102 = vector.load %arg10[%c0_80, %c0_81, %c0_82] : memref<4x8x16xbf16, #tpu.memory_space<vmem>>, vector<1x8x16xbf16>
    %103 = vector.shape_cast %102 : vector<1x8x16xbf16> to vector<8x16xbf16>
    %cst_83 = arith.constant dense<0.000000e+00> : vector<8x64xf32>
    %104 = tpu.matmul %103, %101, %cst_83 {dimension_numbers = #tpu.dot_dimension_numbers<[1], [0], [0], [1], [0, 0, 1, 1], [], []>} : vector<8x16xbf16>, vector<16x64xbf16>, vector<8x64xf32> -> vector<8x64xf32>
    %105 = arith.truncf %104 : vector<8x64xf32> to vector<8x64xbf16>
    %c0_84 = arith.constant 0 : index
    %c0_85 = arith.constant 0 : index
    %c0_86 = arith.constant 0 : index
    %106 = vector.load %arg11[%c0_84, %c0_85, %c0_86] : memref<4x64x64xbf16, #tpu.memory_space<vmem>>, vector<1x64x64xbf16>
    %107 = vector.shape_cast %106 : vector<1x64x64xbf16> to vector<64x64xbf16>
    %cst_87 = arith.constant dense<0.000000e+00> : vector<8x64xf32>
    %108 = tpu.matmul %105, %107, %cst_87 {dimension_numbers = #tpu.dot_dimension_numbers<[1], [0], [0], [1], [0, 0, 1, 1], [], []>} : vector<8x64xbf16>, vector<64x64xbf16>, vector<8x64xf32> -> vector<8x64xf32>
    %c1_88 = arith.constant 1 : index
    %c0_89 = arith.constant 0 : index
    %c0_90 = arith.constant 0 : index
    %109 = vector.load %arg10[%c1_88, %c0_89, %c0_90] : memref<4x8x16xbf16, #tpu.memory_space<vmem>>, vector<1x8x16xbf16>
    %110 = vector.shape_cast %109 : vector<1x8x16xbf16> to vector<8x16xbf16>
    %cst_91 = arith.constant dense<0.000000e+00> : vector<8x64xf32>
    %111 = tpu.matmul %110, %101, %cst_91 {dimension_numbers = #tpu.dot_dimension_numbers<[1], [0], [0], [1], [0, 0, 1, 1], [], []>} : vector<8x16xbf16>, vector<16x64xbf16>, vector<8x64xf32> -> vector<8x64xf32>
    %112 = arith.truncf %111 : vector<8x64xf32> to vector<8x64xbf16>
    %c1_92 = arith.constant 1 : index
    %c0_93 = arith.constant 0 : index
    %c0_94 = arith.constant 0 : index
    %113 = vector.load %arg11[%c1_92, %c0_93, %c0_94] : memref<4x64x64xbf16, #tpu.memory_space<vmem>>, vector<1x64x64xbf16>
    %114 = vector.shape_cast %113 : vector<1x64x64xbf16> to vector<64x64xbf16>
    %cst_95 = arith.constant dense<0.000000e+00> : vector<8x64xf32>
    %115 = tpu.matmul %112, %114, %cst_95 {dimension_numbers = #tpu.dot_dimension_numbers<[1], [0], [0], [1], [0, 0, 1, 1], [], []>} : vector<8x64xbf16>, vector<64x64xbf16>, vector<8x64xf32> -> vector<8x64xf32>
    %116 = arith.addf %108, %115 : vector<8x64xf32>
    %c2_96 = arith.constant 2 : index
    %c0_97 = arith.constant 0 : index
    %c0_98 = arith.constant 0 : index
    %117 = vector.load %arg10[%c2_96, %c0_97, %c0_98] : memref<4x8x16xbf16, #tpu.memory_space<vmem>>, vector<1x8x16xbf16>
    %118 = vector.shape_cast %117 : vector<1x8x16xbf16> to vector<8x16xbf16>
    %cst_99 = arith.constant dense<0.000000e+00> : vector<8x64xf32>
    %119 = tpu.matmul %118, %101, %cst_99 {dimension_numbers = #tpu.dot_dimension_numbers<[1], [0], [0], [1], [0, 0, 1, 1], [], []>} : vector<8x16xbf16>, vector<16x64xbf16>, vector<8x64xf32> -> vector<8x64xf32>
    %120 = arith.truncf %119 : vector<8x64xf32> to vector<8x64xbf16>
    %c2_100 = arith.constant 2 : index
    %c0_101 = arith.constant 0 : index
    %c0_102 = arith.constant 0 : index
    %121 = vector.load %arg11[%c2_100, %c0_101, %c0_102] : memref<4x64x64xbf16, #tpu.memory_space<vmem>>, vector<1x64x64xbf16>
    %122 = vector.shape_cast %121 : vector<1x64x64xbf16> to vector<64x64xbf16>
    %cst_103 = arith.constant dense<0.000000e+00> : vector<8x64xf32>
    %123 = tpu.matmul %120, %122, %cst_103 {dimension_numbers = #tpu.dot_dimension_numbers<[1], [0], [0], [1], [0, 0, 1, 1], [], []>} : vector<8x64xbf16>, vector<64x64xbf16>, vector<8x64xf32> -> vector<8x64xf32>
    %124 = arith.addf %116, %123 : vector<8x64xf32>
    %c3_104 = arith.constant 3 : index
    %c0_105 = arith.constant 0 : index
    %c0_106 = arith.constant 0 : index
    %125 = vector.load %arg10[%c3_104, %c0_105, %c0_106] : memref<4x8x16xbf16, #tpu.memory_space<vmem>>, vector<1x8x16xbf16>
    %126 = vector.shape_cast %125 : vector<1x8x16xbf16> to vector<8x16xbf16>
    %cst_107 = arith.constant dense<0.000000e+00> : vector<8x64xf32>
    %127 = tpu.matmul %126, %101, %cst_107 {dimension_numbers = #tpu.dot_dimension_numbers<[1], [0], [0], [1], [0, 0, 1, 1], [], []>} : vector<8x16xbf16>, vector<16x64xbf16>, vector<8x64xf32> -> vector<8x64xf32>
    %128 = arith.truncf %127 : vector<8x64xf32> to vector<8x64xbf16>
    %c3_108 = arith.constant 3 : index
    %c0_109 = arith.constant 0 : index
    %c0_110 = arith.constant 0 : index
    %129 = vector.load %arg11[%c3_108, %c0_109, %c0_110] : memref<4x64x64xbf16, #tpu.memory_space<vmem>>, vector<1x64x64xbf16>
    %130 = vector.shape_cast %129 : vector<1x64x64xbf16> to vector<64x64xbf16>
    %cst_111 = arith.constant dense<0.000000e+00> : vector<8x64xf32>
    %131 = tpu.matmul %128, %130, %cst_111 {dimension_numbers = #tpu.dot_dimension_numbers<[1], [0], [0], [1], [0, 0, 1, 1], [], []>} : vector<8x64xbf16>, vector<64x64xbf16>, vector<8x64xf32> -> vector<8x64xf32>
    %132 = arith.addf %124, %131 : vector<8x64xf32>
    %c0_112 = arith.constant 0 : index
    %c0_113 = arith.constant 0 : index
    %133 = vector.load %arg12[%c0_112, %c0_113] : memref<1x64xf32, #tpu.memory_space<vmem>>, vector<1x64xf32>
    %134 = vector.broadcast %133 : vector<1x64xf32> to vector<8x64xf32>
    %135 = arith.addf %132, %134 : vector<8x64xf32>
    %c0_114 = arith.constant 0 : index
    %c0_115 = arith.constant 0 : index
    %136 = vector.load %arg15[%c0_114, %c0_115] : memref<64x64xf32, #tpu.memory_space<vmem>>, vector<64x64xf32>
    %cst_116 = arith.constant dense<0.000000e+00> : vector<8x64xf32>
    %137 = tpu.matmul %135, %136, %cst_116 {dimension_numbers = #tpu.dot_dimension_numbers<[1], [0], [0], [1], [0, 0, 1, 1], [], []>} : vector<8x64xf32>, vector<64x64xf32>, vector<8x64xf32> -> vector<8x64xf32>
    %cst_117 = arith.constant dense<0.000000e+00> : vector<64xf32>
    %138 = vector.multi_reduction <add>, %137, %cst_117 [0] : vector<8x64xf32> to vector<64xf32>
    %139 = vector.shape_cast %138 : vector<64xf32> to vector<1x64xf32>
    %cst_118 = arith.constant 8.000000e+00 : f32
    %140 = vector.broadcast %cst_118 : f32 to vector<1x64xf32>
    %141 = arith.divf %139, %140 : vector<1x64xf32>
    %142 = vector.broadcast %141 : vector<1x64xf32> to vector<8x64xf32>
    %143 = arith.subf %135, %142 : vector<8x64xf32>
    %144 = arith.mulf %143, %143 : vector<8x64xf32>
    %cst_119 = arith.constant dense<0.000000e+00> : vector<8x64xf32>
    %145 = tpu.matmul %144, %136, %cst_119 {dimension_numbers = #tpu.dot_dimension_numbers<[1], [0], [0], [1], [0, 0, 1, 1], [], []>} : vector<8x64xf32>, vector<64x64xf32>, vector<8x64xf32> -> vector<8x64xf32>
    %cst_120 = arith.constant dense<0.000000e+00> : vector<64xf32>
    %146 = vector.multi_reduction <add>, %145, %cst_120 [0] : vector<8x64xf32> to vector<64xf32>
    %147 = vector.shape_cast %146 : vector<64xf32> to vector<1x64xf32>
    %cst_121 = arith.constant 8.000000e+00 : f32
    %148 = vector.broadcast %cst_121 : f32 to vector<1x64xf32>
    %149 = arith.divf %147, %148 : vector<1x64xf32>
    %c0_122 = arith.constant 0 : index
    %c0_123 = arith.constant 0 : index
    %150 = vector.load %arg13[%c0_122, %c0_123] : memref<1x64xf32, #tpu.memory_space<vmem>>, vector<1x64xf32>
    %cst_124 = arith.constant 9.99999974E-6 : f32
    %151 = vector.broadcast %cst_124 : f32 to vector<1x64xf32>
    %152 = arith.addf %149, %151 : vector<1x64xf32>
    %153 = math.rsqrt %152 : vector<1x64xf32>
    %154 = vector.broadcast %153 : vector<1x64xf32> to vector<8x64xf32>
    %155 = arith.mulf %143, %154 : vector<8x64xf32>
    %156 = vector.broadcast %150 : vector<1x64xf32> to vector<8x64xf32>
    %157 = arith.mulf %156, %155 : vector<8x64xf32>
    %c0_125 = arith.constant 0 : index
    %c0_126 = arith.constant 0 : index
    %158 = vector.load %arg14[%c0_125, %c0_126] : memref<1x64xf32, #tpu.memory_space<vmem>>, vector<1x64xf32>
    %159 = vector.broadcast %158 : vector<1x64xf32> to vector<8x64xf32>
    %160 = arith.addf %157, %159 : vector<8x64xf32>
    %cst_127 = arith.constant 2.000000e-01 : f32
    %161 = vector.broadcast %cst_127 : f32 to vector<8x64xf32>
    %162 = arith.mulf %161, %160 : vector<8x64xf32>
    %163 = arith.maximumf %160, %162 : vector<8x64xf32>
    %164 = arith.truncf %163 : vector<8x64xf32> to vector<8x64xbf16>
    %c0_128 = arith.constant 0 : index
    %c0_129 = arith.constant 0 : index
    %c0_130 = arith.constant 0 : index
    %165 = vector.load %arg16[%c0_128, %c0_129, %c0_130] : memref<4x2x8xbf16, #tpu.memory_space<vmem>>, vector<1x2x8xbf16>
    %166 = vector.shape_cast %165 : vector<1x2x8xbf16> to vector<2x8xbf16>
    %cst_131 = arith.constant dense<0.000000e+00> : vector<2x64xf32>
    %167 = tpu.matmul %166, %164, %cst_131 {dimension_numbers = #tpu.dot_dimension_numbers<[1], [0], [0], [1], [0, 0, 1, 1], [], []>} : vector<2x8xbf16>, vector<8x64xbf16>, vector<2x64xf32> -> vector<2x64xf32>
    %168 = arith.truncf %167 : vector<2x64xf32> to vector<2x64xbf16>
    %c0_132 = arith.constant 0 : index
    %c0_133 = arith.constant 0 : index
    %c0_134 = arith.constant 0 : index
    %169 = vector.load %arg17[%c0_132, %c0_133, %c0_134] : memref<4x64x32xbf16, #tpu.memory_space<vmem>>, vector<1x64x32xbf16>
    %170 = vector.shape_cast %169 : vector<1x64x32xbf16> to vector<64x32xbf16>
    %cst_135 = arith.constant dense<0.000000e+00> : vector<2x32xf32>
    %171 = tpu.matmul %168, %170, %cst_135 {dimension_numbers = #tpu.dot_dimension_numbers<[1], [0], [0], [1], [0, 0, 1, 1], [], []>} : vector<2x64xbf16>, vector<64x32xbf16>, vector<2x32xf32> -> vector<2x32xf32>
    %c1_136 = arith.constant 1 : index
    %c0_137 = arith.constant 0 : index
    %c0_138 = arith.constant 0 : index
    %172 = vector.load %arg16[%c1_136, %c0_137, %c0_138] : memref<4x2x8xbf16, #tpu.memory_space<vmem>>, vector<1x2x8xbf16>
    %173 = vector.shape_cast %172 : vector<1x2x8xbf16> to vector<2x8xbf16>
    %cst_139 = arith.constant dense<0.000000e+00> : vector<2x64xf32>
    %174 = tpu.matmul %173, %164, %cst_139 {dimension_numbers = #tpu.dot_dimension_numbers<[1], [0], [0], [1], [0, 0, 1, 1], [], []>} : vector<2x8xbf16>, vector<8x64xbf16>, vector<2x64xf32> -> vector<2x64xf32>
    %175 = arith.truncf %174 : vector<2x64xf32> to vector<2x64xbf16>
    %c1_140 = arith.constant 1 : index
    %c0_141 = arith.constant 0 : index
    %c0_142 = arith.constant 0 : index
    %176 = vector.load %arg17[%c1_140, %c0_141, %c0_142] : memref<4x64x32xbf16, #tpu.memory_space<vmem>>, vector<1x64x32xbf16>
    %177 = vector.shape_cast %176 : vector<1x64x32xbf16> to vector<64x32xbf16>
    %cst_143 = arith.constant dense<0.000000e+00> : vector<2x32xf32>
    %178 = tpu.matmul %175, %177, %cst_143 {dimension_numbers = #tpu.dot_dimension_numbers<[1], [0], [0], [1], [0, 0, 1, 1], [], []>} : vector<2x64xbf16>, vector<64x32xbf16>, vector<2x32xf32> -> vector<2x32xf32>
    %179 = arith.addf %171, %178 : vector<2x32xf32>
    %c2_144 = arith.constant 2 : index
    %c0_145 = arith.constant 0 : index
    %c0_146 = arith.constant 0 : index
    %180 = vector.load %arg16[%c2_144, %c0_145, %c0_146] : memref<4x2x8xbf16, #tpu.memory_space<vmem>>, vector<1x2x8xbf16>
    %181 = vector.shape_cast %180 : vector<1x2x8xbf16> to vector<2x8xbf16>
    %cst_147 = arith.constant dense<0.000000e+00> : vector<2x64xf32>
    %182 = tpu.matmul %181, %164, %cst_147 {dimension_numbers = #tpu.dot_dimension_numbers<[1], [0], [0], [1], [0, 0, 1, 1], [], []>} : vector<2x8xbf16>, vector<8x64xbf16>, vector<2x64xf32> -> vector<2x64xf32>
    %183 = arith.truncf %182 : vector<2x64xf32> to vector<2x64xbf16>
    %c2_148 = arith.constant 2 : index
    %c0_149 = arith.constant 0 : index
    %c0_150 = arith.constant 0 : index
    %184 = vector.load %arg17[%c2_148, %c0_149, %c0_150] : memref<4x64x32xbf16, #tpu.memory_space<vmem>>, vector<1x64x32xbf16>
    %185 = vector.shape_cast %184 : vector<1x64x32xbf16> to vector<64x32xbf16>
    %cst_151 = arith.constant dense<0.000000e+00> : vector<2x32xf32>
    %186 = tpu.matmul %183, %185, %cst_151 {dimension_numbers = #tpu.dot_dimension_numbers<[1], [0], [0], [1], [0, 0, 1, 1], [], []>} : vector<2x64xbf16>, vector<64x32xbf16>, vector<2x32xf32> -> vector<2x32xf32>
    %187 = arith.addf %179, %186 : vector<2x32xf32>
    %c3_152 = arith.constant 3 : index
    %c0_153 = arith.constant 0 : index
    %c0_154 = arith.constant 0 : index
    %188 = vector.load %arg16[%c3_152, %c0_153, %c0_154] : memref<4x2x8xbf16, #tpu.memory_space<vmem>>, vector<1x2x8xbf16>
    %189 = vector.shape_cast %188 : vector<1x2x8xbf16> to vector<2x8xbf16>
    %cst_155 = arith.constant dense<0.000000e+00> : vector<2x64xf32>
    %190 = tpu.matmul %189, %164, %cst_155 {dimension_numbers = #tpu.dot_dimension_numbers<[1], [0], [0], [1], [0, 0, 1, 1], [], []>} : vector<2x8xbf16>, vector<8x64xbf16>, vector<2x64xf32> -> vector<2x64xf32>
    %191 = arith.truncf %190 : vector<2x64xf32> to vector<2x64xbf16>
    %c3_156 = arith.constant 3 : index
    %c0_157 = arith.constant 0 : index
    %c0_158 = arith.constant 0 : index
    %192 = vector.load %arg17[%c3_156, %c0_157, %c0_158] : memref<4x64x32xbf16, #tpu.memory_space<vmem>>, vector<1x64x32xbf16>
    %193 = vector.shape_cast %192 : vector<1x64x32xbf16> to vector<64x32xbf16>
    %cst_159 = arith.constant dense<0.000000e+00> : vector<2x32xf32>
    %194 = tpu.matmul %191, %193, %cst_159 {dimension_numbers = #tpu.dot_dimension_numbers<[1], [0], [0], [1], [0, 0, 1, 1], [], []>} : vector<2x64xbf16>, vector<64x32xbf16>, vector<2x32xf32> -> vector<2x32xf32>
    %195 = arith.addf %187, %194 : vector<2x32xf32>
    %c0_160 = arith.constant 0 : index
    %c0_161 = arith.constant 0 : index
    %196 = vector.load %arg18[%c0_160, %c0_161] : memref<1x32xf32, #tpu.memory_space<vmem>>, vector<1x32xf32>
    %197 = vector.broadcast %196 : vector<1x32xf32> to vector<2x32xf32>
    %198 = arith.addf %195, %197 : vector<2x32xf32>
    %c0_162 = arith.constant 0 : index
    %c0_163 = arith.constant 0 : index
    %199 = vector.load %arg19[%c0_162, %c0_163] : memref<2x32xf32, #tpu.memory_space<vmem>>, vector<2x32xf32>
    tpu.vector_store %arg19[%c0_162, %c0_163], %198 {strides = array<i32>} : memref<2x32xf32, #tpu.memory_space<vmem>>, vector<2x32xf32>,
    return
  }
}

</mosaic_0001>

<llo_original>
// kernel: inverse_generator_forward.1
$region0: #{inverse_generator_forward.1}
  #allocation0 [shape = 'u32[]', space=smem, size = 0x4, offset = 0x4, fixed_abs, tag = 'smem constant byte address 0x4 - core index']
  #allocation1 [shape = 'u32[144,128]{1,0:T(1,128)}', space=vmem, size = 0x12000, scoped, tag = 'internal scratch']
  %s0 = inlined_call_operand.vmem [shape: bf16[64,32], index: 0, kind: input, shape index: {}]
  %s1 = inlined_call_operand.hbm [shape: bf16[4,32,64], index: 1, kind: input, shape index: {}]
  %s2 = inlined_call_operand.hbm [shape: bf16[4,32,64], index: 2, kind: input, shape index: {}]
  %s3 = inlined_call_operand.hbm [shape: f32[1,64], index: 3, kind: input, shape index: {}]
  %s4 = inlined_call_operand.vmem [shape: bf16[4,16,32], index: 4, kind: input, shape index: {}]
  %s5 = inlined_call_operand.vmem [shape: bf16[4,64,64], index: 5, kind: input, shape index: {}]
  %s6 = inlined_call_operand.hbm [shape: f32[1,64], index: 6, kind: input, shape index: {}]
  %s7 = inlined_call_operand.vmem [shape: f32[1,64], index: 7, kind: input, shape index: {}]
  %s8 = inlined_call_operand.hbm [shape: f32[1,64], index: 8, kind: input, shape index: {}]
  %s9 = inlined_call_operand.hbm [shape: f32[64,64], index: 9, kind: input, shape index: {}]
  %s10 = inlined_call_operand.vmem [shape: bf16[4,8,16], index: 10, kind: input, shape index: {}]
  %s11 = inlined_call_operand.vmem [shape: bf16[4,64,64], index: 11, kind: input, shape index: {}]
  %s12 = inlined_call_operand.hbm [shape: f32[1,64], index: 12, kind: input, shape index: {}]
  %s13 = inlined_call_operand.vmem [shape: f32[1,64], index: 13, kind: input, shape index: {}]
  %s14 = inlined_call_operand.hbm [shape: f32[1,64], index: 14, kind: input, shape index: {}]
  %s15 = inlined_call_operand.hbm [shape: f32[64,64], index: 15, kind: input, shape index: {}]
  %s16 = inlined_call_operand.vmem [shape: bf16[4,2,8], index: 16, kind: input, shape index: {}]
  %s17 = inlined_call_operand.vmem [shape: bf16[4,64,32], index: 17, kind: input, shape index: {}]
  %s18 = inlined_call_operand.hbm [shape: f32[1,32], index: 18, kind: input, shape index: {}]
  %s19 = inlined_call_operand.hbm [shape: f32[2,32], index: 19, kind: output, shape index: {}]
  %s20 = sld [smem:[#allocation0]]
  $region126: #{inverse_generator_forward.1} parent=0
    _
  %s22 = ssub.s32 1, %s20
  %s23 = scalar_select 0, %s22, %s20
  $region1: #{inverse_generator_forward.1} parent=0
    #allocation2 [shape = 'u8[32768]{0}', space=vmem, size = 0x8000, scoped, tag = 'input window, operand 1, single buffered']
    #allocation3 [shape = 's32[1]{0}', space=sflag, size = 0x4, scoped, tag = 'scoped memory for inverse_generator_forward.1']
    #allocation4 [shape = 's32[1]{0}', space=sflag, size = 0x4, scoped, tag = 'scoped memory for inverse_generator_forward.1']
    #allocation5 [shape = 'u8[32768]{0}', space=vmem, size = 0x8000, scoped, tag = 'input window, operand 2, single buffered']
    #allocation6 [shape = 's32[1]{0}', space=sflag, size = 0x4, scoped, tag = 'scoped memory for inverse_generator_forward.1']
    #allocation7 [shape = 'u8[512]{0}', space=vmem, size = 0x400, scoped, tag = 'input window, operand 3, single buffered']
    #allocation8 [shape = 'u8[512]{0}', space=vmem, size = 0x400, scoped, tag = 'input window, operand 6, single buffered']
    #allocation9 [shape = 's32[1]{0}', space=sflag, size = 0x4, scoped, tag = 'scoped memory for inverse_generator_forward.1']
    #allocation10 [shape = 'u8[512]{0}', space=vmem, size = 0x400, scoped, tag = 'input window, operand 8, single buffered']
    #allocation11 [shape = 'u8[32768]{0}', space=vmem, size = 0x8000, scoped, tag = 'input window, operand 9, single buffered']
    #allocation12 [shape = 's32[1]{0}', space=sflag, size = 0x4, scoped, tag = 'scoped memory for inverse_generator_forward.1']
    #allocation13 [shape = 'u8[512]{0}', space=vmem, size = 0x400, scoped, tag = 'input window, operand 12, single buffered']
    #allocation14 [shape = 'u8[512]{0}', space=vmem, size = 0x400, scoped, tag = 'input window, operand 14, single buffered']
    #allocation15 [shape = 's32[1]{0}', space=sflag, size = 0x4, scoped, tag = 'scoped memory for inverse_generator_forward.1']
    #allocation16 [shape = 'u8[32768]{0}', space=vmem, size = 0x8000, scoped, tag = 'input window, operand 15, single buffered']
    #allocation17 [shape = 'u8[512]{0}', space=vmem, size = 0x400, scoped, tag = 'input window, operand 18, single buffered']
    #allocation18 [shape = 's32[1]{0}', space=sflag, size = 0x4, scoped, tag = 'scoped memory for inverse_generator_forward.1']
    #allocation19 [shape = 'u8[1024]{0}', space=vmem, size = 0x400, scoped, tag = 'output window, operand 0, single buffered']
    %24 = vsyncpa [#allocation3], 0
    %25 = vsyncpa [#allocation6], 0
    %26 = vsyncpa [#allocation9], 0
    %27 = vsyncpa [#allocation12], 0
    %28 = vsyncpa [#allocation15], 0
    %29 = vsyncpa [#allocation18], 0
    %30 = vsyncpa [#allocation4], 0
    // Predicated region
    $region2: #{inverse_generator_forward.1} parent=1 // pred_check
      _
    $region3: #{inverse_generator_forward.1} parent=1 // pred_check_branch
      %32 = sbr.rel (0) target = $region5
    $region4: #{inverse_generator_forward.1} parent=1 // pred_region
      _
    $region5: #{inverse_generator_forward.1} parent=1 // pred_fallthru
      _
    // Predicated region
    $region6: #{inverse_generator_forward.1} parent=1 // pred_check
      _
    $region7: #{inverse_generator_forward.1} parent=1 // pred_check_branch
      %34 = sbr.rel (0) target = $region9
    $region8: #{inverse_generator_forward.1} parent=1 // pred_region
      %s36 = ssub.s32 1024, 1024
      %37 = vsyncadd [#allocation3], %s36
      %s38 = sshll.u32 [#allocation2], 4
      %s39 = int_to_ptr.vmem [resolvable:$true] %s38
      %44 = dma.hbm_to_vmem [thread:$0]  %s1, 1024, %s39, [#allocation3], 64, 64, 4
    $region9: #{inverse_generator_forward.1} parent=1 // pred_fallthru
      _
    // Predicated region
    $region10: #{inverse_generator_forward.1} parent=1 // pred_check
      _
    $region11: #{inverse_generator_forward.1} parent=1 // pred_check_branch
      %46 = sbr.rel (0) target = $region13
    $region12: #{inverse_generator_forward.1} parent=1 // pred_region
      %s48 = ssub.s32 1024, 1024
      %49 = vsyncadd [#allocation6], %s48
      %s50 = sshll.u32 [#allocation5], 4
      %s51 = int_to_ptr.vmem [resolvable:$true] %s50
      %56 = dma.hbm_to_vmem [thread:$0]  %s2, 1024, %s51, [#allocation6], 64, 64, 4
    $region13: #{inverse_generator_forward.1} parent=1 // pred_fallthru
      _
    // Predicated region
    $region14: #{inverse_generator_forward.1} parent=1 // pred_check
      _
    $region15: #{inverse_generator_forward.1} parent=1 // pred_check_branch
      %58 = sbr.rel (0) target = $region17
    $region16: #{inverse_generator_forward.1} parent=1 // pred_region
      %s60 = ssub.s32 16, 16
      %61 = vsyncadd [#allocation6], %s60
      %s63 = sshll.u32 [#allocation7], 4
      %s64 = int_to_ptr.vmem [resolvable:$true] %s63
      %66 = dma.hbm_to_vmem [thread:$0]  %s3, 16, %s64, [#allocation6]
    $region17: #{inverse_generator_forward.1} parent=1 // pred_fallthru
      _
    // Predicated region
    $region18: #{inverse_generator_forward.1} parent=1 // pred_check
      _
    $region19: #{inverse_generator_forward.1} parent=1 // pred_check_branch
      %68 = sbr.rel (0) target = $region21
    $region20: #{inverse_generator_forward.1} parent=1 // pred_region
      _
    $region21: #{inverse_generator_forward.1} parent=1 // pred_fallthru
      _
    // Predicated region
    $region22: #{inverse_generator_forward.1} parent=1 // pred_check
      _
    $region23: #{inverse_generator_forward.1} parent=1 // pred_check_branch
      %70 = sbr.rel (0) target = $region25
    $region24: #{inverse_generator_forward.1} parent=1 // pred_region
      _
    $region25: #{inverse_generator_forward.1} parent=1 // pred_fallthru
      _
    // Predicated region
    $region26: #{inverse_generator_forward.1} parent=1 // pred_check
      _
    $region27: #{inverse_generator_forward.1} parent=1 // pred_check_branch
      %72 = sbr.rel (0) target = $region29
    $region28: #{inverse_generator_forward.1} parent=1 // pred_region
      %s74 = ssub.s32 16, 16
      %75 = vsyncadd [#allocation9], %s74
      %s77 = sshll.u32 [#allocation8], 4
      %s78 = int_to_ptr.vmem [resolvable:$true] %s77
      %80 = dma.hbm_to_vmem [thread:$0]  %s6, 16, %s78, [#allocation9]
    $region29: #{inverse_generator_forward.1} parent=1 // pred_fallthru
      _
    // Predicated region
    $region30: #{inverse_generator_forward.1} parent=1 // pred_check
      _
    $region31: #{inverse_generator_forward.1} parent=1 // pred_check_branch
      %82 = sbr.rel (0) target = $region33
    $region32: #{inverse_generator_forward.1} parent=1 // pred_region
      _
    $region33: #{inverse_generator_forward.1} parent=1 // pred_fallthru
      _
    // Predicated region
    $region34: #{inverse_generator_forward.1} parent=1 // pred_check
      _
    $region35: #{inverse_generator_forward.1} parent=1 // pred_check_branch
      %84 = sbr.rel (0) target = $region37
    $region36: #{inverse_generator_forward.1} parent=1 // pred_region
      %s86 = ssub.s32 16, 16
      %87 = vsyncadd [#allocation9], %s86
      %s89 = sshll.u32 [#allocation10], 4
      %s90 = int_to_ptr.vmem [resolvable:$true] %s89
      %92 = dma.hbm_to_vmem [thread:$0]  %s8, 16, %s90, [#allocation9]
    $region37: #{inverse_generator_forward.1} parent=1 // pred_fallthru
      _
    // Predicated region
    $region38: #{inverse_generator_forward.1} parent=1 // pred_check
      _
    $region39: #{inverse_generator_forward.1} parent=1 // pred_check_branch
      %94 = sbr.rel (0) target = $region41
    $region40: #{inverse_generator_forward.1} parent=1 // pred_region
      %s96 = ssub.s32 1024, 1024
      %97 = vsyncadd [#allocation12], %s96
      %s98 = sshll.u32 [#allocation11], 4
      %s99 = int_to_ptr.vmem [resolvable:$true] %s98
      %104 = dma.hbm_to_vmem [thread:$0]  %s9, 1024, %s99, [#allocation12], 128, 128, 8
    $region41: #{inverse_generator_forward.1} parent=1 // pred_fallthru
      _
    // Predicated region
    $region42: #{inverse_generator_forward.1} parent=1 // pred_check
      _
    $region43: #{inverse_generator_forward.1} parent=1 // pred_check_branch
      %106 = sbr.rel (0) target = $region45
    $region44: #{inverse_generator_forward.1} parent=1 // pred_region
      _
    $region45: #{inverse_generator_forward.1} parent=1 // pred_fallthru
      _
    // Predicated region
    $region46: #{inverse_generator_forward.1} parent=1 // pred_check
      _
    $region47: #{inverse_generator_forward.1} parent=1 // pred_check_branch
      %108 = sbr.rel (0) target = $region49
    $region48: #{inverse_generator_forward.1} parent=1 // pred_region
      _
    $region49: #{inverse_generator_forward.1} parent=1 // pred_fallthru
      _
    // Predicated region
    $region50: #{inverse_generator_forward.1} parent=1 // pred_check
      _
    $region51: #{inverse_generator_forward.1} parent=1 // pred_check_branch
      %110 = sbr.rel (0) target = $region53
    $region52: #{inverse_generator_forward.1} parent=1 // pred_region
      %s112 = ssub.s32 16, 16
      %113 = vsyncadd [#allocation12], %s112
      %s115 = sshll.u32 [#allocation13], 4
      %s116 = int_to_ptr.vmem [resolvable:$true] %s115
      %118 = dma.hbm_to_vmem [thread:$0]  %s12, 16, %s116, [#allocation12]
    $region53: #{inverse_generator_forward.1} parent=1 // pred_fallthru
      _
    // Predicated region
    $region54: #{inverse_generator_forward.1} parent=1 // pred_check
      _
    $region55: #{inverse_generator_forward.1} parent=1 // pred_check_branch
      %120 = sbr.rel (0) target = $region57
    $region56: #{inverse_generator_forward.1} parent=1 // pred_region
      _
    $region57: #{inverse_generator_forward.1} parent=1 // pred_fallthru
      _
    // Predicated region
    $region58: #{inverse_generator_forward.1} parent=1 // pred_check
      _
    $region59: #{inverse_generator_forward.1} parent=1 // pred_check_branch
      %122 = sbr.rel (0) target = $region61
    $region60: #{inverse_generator_forward.1} parent=1 // pred_region
      %s124 = ssub.s32 16, 16
      %125 = vsyncadd [#allocation15], %s124
      %s127 = sshll.u32 [#allocation14], 4
      %s128 = int_to_ptr.vmem [resolvable:$true] %s127
      %130 = dma.hbm_to_vmem [thread:$0]  %s14, 16, %s128, [#allocation15]
    $region61: #{inverse_generator_forward.1} parent=1 // pred_fallthru
      _
    // Predicated region
    $region62: #{inverse_generator_forward.1} parent=1 // pred_check
      _
    $region63: #{inverse_generator_forward.1} parent=1 // pred_check_branch
      %132 = sbr.rel (0) target = $region65
    $region64: #{inverse_generator_forward.1} parent=1 // pred_region
      %s134 = ssub.s32 1024, 1024
      %135 = vsyncadd [#allocation15], %s134
      %s136 = sshll.u32 [#allocation16], 4
      %s137 = int_to_ptr.vmem [resolvable:$true] %s136
      %142 = dma.hbm_to_vmem [thread:$0]  %s15, 1024, %s137, [#allocation15], 128, 128, 8
    $region65: #{inverse_generator_forward.1} parent=1 // pred_fallthru
      _
    // Predicated region
    $region66: #{inverse_generator_forward.1} parent=1 // pred_check
      _
    $region67: #{inverse_generator_forward.1} parent=1 // pred_check_branch
      %144 = sbr.rel (0) target = $region69
    $region68: #{inverse_generator_forward.1} parent=1 // pred_region
      _
    $region69: #{inverse_generator_forward.1} parent=1 // pred_fallthru
      _
    // Predicated region
    $region70: #{inverse_generator_forward.1} parent=1 // pred_check
      _
    $region71: #{inverse_generator_forward.1} parent=1 // pred_check_branch
      %146 = sbr.rel (0) target = $region73
    $region72: #{inverse_generator_forward.1} parent=1 // pred_region
      _
    $region73: #{inverse_generator_forward.1} parent=1 // pred_fallthru
      _
    // Predicated region
    $region74: #{inverse_generator_forward.1} parent=1 // pred_check
      _
    $region75: #{inverse_generator_forward.1} parent=1 // pred_check_branch
      %148 = sbr.rel (0) target = $region77
    $region76: #{inverse_generator_forward.1} parent=1 // pred_region
      %s150 = ssub.s32 16, 16
      %151 = vsyncadd [#allocation18], %s150
      %s153 = sshll.u32 [#allocation17], 4
      %s154 = int_to_ptr.vmem [resolvable:$true] %s153
      %156 = dma.hbm_to_vmem [thread:$0]  %s18, 16, %s154, [#allocation18]
    $region77: #{inverse_generator_forward.1} parent=1 // pred_fallthru
      _
    // Predicated region
    $region78: #{inverse_generator_forward.1} parent=1 // pred_check
      _
    $region79: #{inverse_generator_forward.1} parent=1 // pred_check_branch
      %158 = sbr.rel (0) target = $region81
    $region80: #{inverse_generator_forward.1} parent=1 // pred_region
      %159 = dma.done [#allocation3], 1024
    $region81: #{inverse_generator_forward.1} parent=1 // pred_fallthru
      _
    // Predicated region
    $region82: #{inverse_generator_forward.1} parent=1 // pred_check
      _
    $region83: #{inverse_generator_forward.1} parent=1 // pred_check_branch
      %161 = sbr.rel (0) target = $region85
    $region84: #{inverse_generator_forward.1} parent=1 // pred_region
      %162 = dma.done [#allocation6], 1024
    $region85: #{inverse_generator_forward.1} parent=1 // pred_fallthru
      _
    // Predicated region
    $region86: #{inverse_generator_forward.1} parent=1 // pred_check
      _
    $region87: #{inverse_generator_forward.1} parent=1 // pred_check_branch
      %164 = sbr.rel (0) target = $region89
    $region88: #{inverse_generator_forward.1} parent=1 // pred_region
      %165 = dma.done [#allocation6], 16
    $region89: #{inverse_generator_forward.1} parent=1 // pred_fallthru
      _
    // Predicated region
    $region90: #{inverse_generator_forward.1} parent=1 // pred_check
      _
    $region91: #{inverse_generator_forward.1} parent=1 // pred_check_branch
      %167 = sbr.rel (0) target = $region93
    $region92: #{inverse_generator_forward.1} parent=1 // pred_region
      %168 = dma.done [#allocation9], 16
    $region93: #{inverse_generator_forward.1} parent=1 // pred_fallthru
      _
    // Predicated region
    $region94: #{inverse_generator_forward.1} parent=1 // pred_check
      _
    $region95: #{inverse_generator_forward.1} parent=1 // pred_check_branch
      %170 = sbr.rel (0) target = $region97
    $region96: #{inverse_generator_forward.1} parent=1 // pred_region
      %171 = dma.done [#allocation9], 16
    $region97: #{inverse_generator_forward.1} parent=1 // pred_fallthru
      _
    // Predicated region
    $region98: #{inverse_generator_forward.1} parent=1 // pred_check
      _
    $region99: #{inverse_generator_forward.1} parent=1 // pred_check_branch
      %173 = sbr.rel (0) target = $region101
    $region100: #{inverse_generator_forward.1} parent=1 // pred_region
      %174 = dma.done [#allocation12], 1024
    $region101: #{inverse_generator_forward.1} parent=1 // pred_fallthru
      _
    // Predicated region
    $region102: #{inverse_generator_forward.1} parent=1 // pred_check
      _
    $region103: #{inverse_generator_forward.1} parent=1 // pred_check_branch
      %176 = sbr.rel (0) target = $region105
    $region104: #{inverse_generator_forward.1} parent=1 // pred_region
      %177 = dma.done [#allocation12], 16
    $region105: #{inverse_generator_forward.1} parent=1 // pred_fallthru
      _
    // Predicated region
    $region106: #{inverse_generator_forward.1} parent=1 // pred_check
      _
    $region107: #{inverse_generator_forward.1} parent=1 // pred_check_branch
      %179 = sbr.rel (0) target = $region109
    $region108: #{inverse_generator_forward.1} parent=1 // pred_region
      %180 = dma.done [#allocation15], 16
    $region109: #{inverse_generator_forward.1} parent=1 // pred_fallthru
      _
    // Predicated region
    $region110: #{inverse_generator_forward.1} parent=1 // pred_check
      _
    $region111: #{inverse_generator_forward.1} parent=1 // pred_check_branch
      %182 = sbr.rel (0) target = $region113
    $region112: #{inverse_generator_forward.1} parent=1 // pred_region
      %183 = dma.done [#allocation15], 1024
    $region113: #{inverse_generator_forward.1} parent=1 // pred_fallthru
      _
    // Predicated region
    $region114: #{inverse_generator_forward.1} parent=1 // pred_check
      _
    $region115: #{inverse_generator_forward.1} parent=1 // pred_check_branch
      %185 = sbr.rel (0) target = $region117
    $region116: #{inverse_generator_forward.1} parent=1 // pred_region
      %186 = dma.done [#allocation18], 16
    $region117: #{inverse_generator_forward.1} parent=1 // pred_fallthru
      _
    %v188 = vld [vmem:[%s0] sm:$0xf]
    %v189 = vld [vmem:[%s0 + $0x4] sm:$0xf]
    %v190 = vld [vmem:[%s0 + $0x8] sm:$0xf]
    %v191 = vld [vmem:[%s0 + $0xc] sm:$0xf]
    %v192 = vld [vmem:[%s0 + $0x10] sm:$0xf]
    %v193 = vld [vmem:[%s0 + $0x14] sm:$0xf]
    %v194 = vld [vmem:[%s0 + $0x18] sm:$0xf]
    %v195 = vld [vmem:[%s0 + $0x1c] sm:$0xf]
    %v196 = vld [vmem:[#allocation2] sm:$0xf]
    %v197 = vld [vmem:[#allocation2 + $0x4] sm:$0xf]
    %v198 = vld [vmem:[#allocation2 + $0x8] sm:$0xf]
    %v199 = vld [vmem:[#allocation2 + $0xc] sm:$0xf]
    %v204 = vunpack.c.l.b16 %v196
    %v205 = vunpack.c.l.b16 %v197
    %v206 = vunpack.c.l.b16 %v198
    %v207 = vunpack.c.l.b16 %v199
    %v208 = vpack.c.b16 %v205, %v204
    %v209 = vpack.c.b16 %v207, %v206
    %v218 = vunpack.c.l.b16 %v188
    %v219 = vunpack.c.l.b16 %v189
    %v220 = vunpack.c.l.b16 %v190
    %v221 = vunpack.c.l.b16 %v191
    %v222 = vunpack.c.l.b16 %v192
    %v223 = vunpack.c.l.b16 %v193
    %v224 = vunpack.c.l.b16 %v194
    %v225 = vunpack.c.l.b16 %v195
    %v226 = vpack.c.b16 %v219, %v218
    %v227 = vpack.c.b16 %v221, %v220
    %v228 = vpack.c.b16 %v223, %v222
    %v229 = vpack.c.b16 %v225, %v224
    %vm234 = vcmask 523264
    %v236 = vsel %vm234, %v208, 0
    %v239 = vsel %vm234, %v209, 0
    %241 = vmatprep.subr.bf16.mxu0 0
    %242 = vmatpush1.bf16.msra.mxu0 0
    %243 = vmatprep.subr.bf16.mxu0 0
    %244 = vmatpush1.bf16.msra.mxu0 0
    %245 = vmatprep.subr.bf16.mxu0 0
    %246 = vmatpush1.bf16.msra.mxu0 0
    %247 = vmatprep.subr.bf16.mxu0 0
    %248 = vmatpush1.bf16.msra.mxu0 0
    %249 = vmatprep.subr.bf16.mxu0 0
    %250 = vmatpush1.bf16.msra.mxu0 %v229
    %251 = vmatprep.subr.bf16.mxu0 0
    %252 = vmatpush1.bf16.msra.mxu0 %v228
    %253 = vmatprep.subr.bf16.mxu0 0
    %254 = vmatpush1.bf16.msra.mxu0 %v227
    %255 = vmatprep.subr.bf16.mxu0 0
    %256 = vmatpush1.bf16.msra.mxu0 %v226
    %257 = vmatprep.subr.bf16.mxu0 0
    %258 = vmatpush2.bf16.msra.mxu0 0
    %259 = vmatprep.subr.bf16.mxu0 0
    %260 = vmatpush2.bf16.msra.mxu0 0
    %261 = vmatprep.subr.bf16.mxu0 0
    %262 = vmatpush2.bf16.msra.mxu0 0
    %263 = vmatprep.subr.bf16.mxu0 0
    %264 = vmatpush2.bf16.msra.mxu0 0
    %265 = vmatprep.subr.bf16.mxu0 0
    %266 = vmatpush2.bf16.msra.mxu0 0
    %267 = vmatprep.subr.bf16.mxu0 0
    %268 = vmatpush2.bf16.msra.mxu0 0
    %269 = vmatprep.subr.bf16.mxu0 0
    %270 = vmatpush2.bf16.msra.mxu0 0
    %271 = vmatprep.subr.bf16.mxu0 0
    %272 = vmatpush2.bf16.msra.mxu0 0
    %273 = vmatprep.mubr.bf16.mxu0 0
    %274 = vmatmul.mubr.bf16.gmra.mxu0 %v236
    %v275 = vpop.f32.mrf.mxu0
    %v276 = vadd.f32 0.0, %v275
    %v277 = vpop.f32.mrf.mxu0
    %v278 = vpop.f32.mrf.mxu0
    %v279 = vadd.f32 0.0, %v278
    %v280 = vpop.f32.mrf.mxu0
    %281 = vmatprep.mubr.bf16.mxu0 0
    %282 = vmatmul.mubr.bf16.gmra.mxu0 %v239
    %v283 = vpop.f32.mrf.mxu0
    %v284 = vadd.f32 0.0, %v283
    %v285 = vpop.f32.mrf.mxu0
    %v286 = vpop.f32.mrf.mxu0
    %v287 = vadd.f32 0.0, %v286
    %v288 = vpop.f32.mrf.mxu0
    %289 = vdwg.mxu0
    %v290 = vpack.c.bf16 %v279, %v276
    %v291 = vpack.c.bf16 %v287, %v284
    %v292 = vld [vmem:[#allocation5] sm:$0xf]
    %v293 = vld [vmem:[#allocation5 + $0x4] sm:$0xf]
    %v294 = vld [vmem:[#allocation5 + $0x8] sm:$0xf]
    %v295 = vld [vmem:[#allocation5 + $0xc] sm:$0xf]
    %s296 = scalar_lea.vmem [#allocation2], 16
    %v297 = vld [vmem:[%s296] sm:$0xf]
    %v298 = vld [vmem:[%s296 + $0x4] sm:$0xf]
    %v299 = vld [vmem:[%s296 + $0x8] sm:$0xf]
    %v300 = vld [vmem:[%s296 + $0xc] sm:$0xf]
    %v305 = vunpack.c.l.b16 %v297
    %v306 = vunpack.c.l.b16 %v298
    %v307 = vunpack.c.l.b16 %v299
    %v308 = vunpack.c.l.b16 %v300
    %v309 = vpack.c.b16 %v306, %v305
    %v310 = vpack.c.b16 %v308, %v307
    %v312 = vsel %vm234, %v309, 0
    %v315 = vsel %vm234, %v310, 0
    %317 = vmatprep.subr.bf16.mxu0 0
    %318 = vmatpush1.bf16.msra.mxu0 0
    %319 = vmatprep.subr.bf16.mxu0 0
    %320 = vmatpush1.bf16.msra.mxu0 0
    %321 = vmatprep.subr.bf16.mxu0 0
    %322 = vmatpush1.bf16.msra.mxu0 0
    %323 = vmatprep.subr.bf16.mxu0 0
    %324 = vmatpush1.bf16.msra.mxu0 0
    %325 = vmatprep.subr.bf16.mxu0 0
    %326 = vmatpush1.bf16.msra.mxu0 %v229
    %327 = vmatprep.subr.bf16.mxu0 0
    %328 = vmatpush1.bf16.msra.mxu0 %v228
    %329 = vmatprep.subr.bf16.mxu0 0
    %330 = vmatpush1.bf16.msra.mxu0 %v227
    %331 = vmatprep.subr.bf16.mxu0 0
    %332 = vmatpush1.bf16.msra.mxu0 %v226
    %333 = vmatprep.subr.bf16.mxu0 0
    %334 = vmatpush2.bf16.msra.mxu0 0
    %335 = vmatprep.subr.bf16.mxu0 0
    %336 = vmatpush2.bf16.msra.mxu0 0
    %337 = vmatprep.subr.bf16.mxu0 0
    %338 = vmatpush2.bf16.msra.mxu0 0
    %339 = vmatprep.subr.bf16.mxu0 0
    %340 = vmatpush2.bf16.msra.mxu0 0
    %341 = vmatprep.subr.bf16.mxu0 0
    %342 = vmatpush2.bf16.msra.mxu0 0
    %343 = vmatprep.subr.bf16.mxu0 0
    %344 = vmatpush2.bf16.msra.mxu0 0
    %345 = vmatprep.subr.bf16.mxu0 0
    %346 = vmatpush2.bf16.msra.mxu0 0
    %347 = vmatprep.subr.bf16.mxu0 0
    %348 = vmatpush2.bf16.msra.mxu0 0
    %349 = vmatprep.mubr.bf16.mxu0 0
    %350 = vmatmul.mubr.bf16.gmra.mxu0 %v312
    %v351 = vpop.f32.mrf.mxu0
    %v352 = vadd.f32 0.0, %v351
    %v353 = vpop.f32.mrf.mxu0
    %v354 = vpop.f32.mrf.mxu0
    %v355 = vadd.f32 0.0, %v354
    %v356 = vpop.f32.mrf.mxu0
    %357 = vmatprep.mubr.bf16.mxu0 0
    %358 = vmatmul.mubr.bf16.gmra.mxu0 %v315
    %v359 = vpop.f32.mrf.mxu0
    %v360 = vadd.f32 0.0, %v359
    %v361 = vpop.f32.mrf.mxu0
    %v362 = vpop.f32.mrf.mxu0
    %v363 = vadd.f32 0.0, %v362
    %v364 = vpop.f32.mrf.mxu0
    %365 = vdwg.mxu0
    %v366 = vpack.c.bf16 %v355, %v352
    %v367 = vpack.c.bf16 %v363, %v360
    %s368 = scalar_lea.vmem [#allocation5], 16
    %v369 = vld [vmem:[%s368] sm:$0xf]
    %v370 = vld [vmem:[%s368 + $0x4] sm:$0xf]
    %v371 = vld [vmem:[%s368 + $0x8] sm:$0xf]
    %v372 = vld [vmem:[%s368 + $0xc] sm:$0xf]
    %v377 = vunpack.c.l.b16 %v369
    %v378 = vunpack.c.l.b16 %v370
    %v379 = vunpack.c.l.b16 %v371
    %v380 = vunpack.c.l.b16 %v372
    %v381 = vpack.c.b16 %v378, %v377
    %v382 = vpack.c.b16 %v380, %v379
    %vm385 = vcmask 261120
    %v387 = vsel %vm385, %v366, 0
    %v390 = vsel %vm385, %v367, 0
    %392 = vmatprep.subr.bf16.mxu0 0
    %393 = vmatpush1.bf16.msra.mxu0 0
    %394 = vmatprep.subr.bf16.mxu0 0
    %395 = vmatpush1.bf16.msra.mxu0 0
    %396 = vmatprep.subr.bf16.mxu0 0
    %397 = vmatpush1.bf16.msra.mxu0 0
    %398 = vmatprep.subr.bf16.mxu0 0
    %399 = vmatpush1.bf16.msra.mxu0 0
    %400 = vmatprep.subr.bf16.mxu0 0
    %401 = vmatpush1.bf16.msra.mxu0 0
    %402 = vmatprep.subr.bf16.mxu0 0
    %403 = vmatpush1.bf16.msra.mxu0 0
    %404 = vmatprep.subr.bf16.mxu0 0
    %405 = vmatpush1.bf16.msra.mxu0 %v382
    %406 = vmatprep.subr.bf16.mxu0 0
    %407 = vmatpush1.bf16.msra.mxu0 %v381
    %408 = vmatprep.subr.bf16.mxu0 0
    %409 = vmatpush2.bf16.msra.mxu0 0
    %410 = vmatprep.subr.bf16.mxu0 0
    %411 = vmatpush2.bf16.msra.mxu0 0
    %412 = vmatprep.subr.bf16.mxu0 0
    %413 = vmatpush2.bf16.msra.mxu0 0
    %414 = vmatprep.subr.bf16.mxu0 0
    %415 = vmatpush2.bf16.msra.mxu0 0
    %416 = vmatprep.subr.bf16.mxu0 0
    %417 = vmatpush2.bf16.msra.mxu0 0
    %418 = vmatprep.subr.bf16.mxu0 0
    %419 = vmatpush2.bf16.msra.mxu0 0
    %420 = vmatprep.subr.bf16.mxu0 0
    %421 = vmatpush2.bf16.msra.mxu0 0
    %422 = vmatprep.subr.bf16.mxu0 0
    %423 = vmatpush2.bf16.msra.mxu0 0
    %424 = vmatprep.mubr.bf16.mxu0 0
    %425 = vmatmul.mubr.bf16.gmra.mxu0 %v387
    %v426 = vpop.f32.mrf.mxu0
    %v427 = vadd.f32 0.0, %v426
    %v428 = vpop.f32.mrf.mxu0
    %v429 = vpop.f32.mrf.mxu0
    %v430 = vadd.f32 0.0, %v429
    %v431 = vpop.f32.mrf.mxu0
    %432 = vmatprep.mubr.bf16.mxu0 0
    %433 = vmatmul.mubr.bf16.gmra.mxu0 %v390
    %v434 = vpop.f32.mrf.mxu0
    %v435 = vadd.f32 0.0, %v434
    %v436 = vpop.f32.mrf.mxu0
    %v437 = vpop.f32.mrf.mxu0
    %v438 = vadd.f32 0.0, %v437
    %v439 = vpop.f32.mrf.mxu0
    %440 = vdwg.mxu0
    %v445 = vunpack.c.l.b16 %v292
    %v446 = vunpack.c.l.b16 %v293
    %v447 = vunpack.c.l.b16 %v294
    %v448 = vunpack.c.l.b16 %v295
    %v449 = vpack.c.b16 %v446, %v445
    %v450 = vpack.c.b16 %v448, %v447
    %v454 = vsel %vm385, %v290, 0
    %v457 = vsel %vm385, %v291, 0
    %459 = vmatprep.subr.bf16.mxu0 0
    %460 = vmatpush1.bf16.msra.mxu0 0
    %461 = vmatprep.subr.bf16.mxu0 0
    %462 = vmatpush1.bf16.msra.mxu0 0
    %463 = vmatprep.subr.bf16.mxu0 0
    %464 = vmatpush1.bf16.msra.mxu0 0
    %465 = vmatprep.subr.bf16.mxu0 0
    %466 = vmatpush1.bf16.msra.mxu0 0
    %467 = vmatprep.subr.bf16.mxu0 0
    %468 = vmatpush1.bf16.msra.mxu0 0
    %469 = vmatprep.subr.bf16.mxu0 0
    %470 = vmatpush1.bf16.msra.mxu0 0
    %471 = vmatprep.subr.bf16.mxu0 0
    %472 = vmatpush1.bf16.msra.mxu0 %v450
    %473 = vmatprep.subr.bf16.mxu0 0
    %474 = vmatpush1.bf16.msra.mxu0 %v449
    %475 = vmatprep.subr.bf16.mxu0 0
    %476 = vmatpush2.bf16.msra.mxu0 0
    %477 = vmatprep.subr.bf16.mxu0 0
    %478 = vmatpush2.bf16.msra.mxu0 0
    %479 = vmatprep.subr.bf16.mxu0 0
    %480 = vmatpush2.bf16.msra.mxu0 0
    %481 = vmatprep.subr.bf16.mxu0 0
    %482 = vmatpush2.bf16.msra.mxu0 0
    %483 = vmatprep.subr.bf16.mxu0 0
    %484 = vmatpush2.bf16.msra.mxu0 0
    %485 = vmatprep.subr.bf16.mxu0 0
    %486 = vmatpush2.bf16.msra.mxu0 0
    %487 = vmatprep.subr.bf16.mxu0 0
    %488 = vmatpush2.bf16.msra.mxu0 0
    %489 = vmatprep.subr.bf16.mxu0 0
    %490 = vmatpush2.bf16.msra.mxu0 0
    %491 = vmatprep.mubr.bf16.mxu0 0
    %492 = vmatmul.mubr.bf16.gmra.mxu0 %v454
    %v493 = vpop.f32.mrf.mxu0
    %v494 = vadd.f32 %v427, %v493
    %v495 = vpop.f32.mrf.mxu0
    %v496 = vpop.f32.mrf.mxu0
    %v497 = vadd.f32 %v430, %v496
    %v498 = vpop.f32.mrf.mxu0
    %499 = vmatprep.mubr.bf16.mxu0 0
    %500 = vmatmul.mubr.bf16.gmra.mxu0 %v457
    %v501 = vpop.f32.mrf.mxu0
    %v502 = vadd.f32 %v435, %v501
    %v503 = vpop.f32.mrf.mxu0
    %v504 = vpop.f32.mrf.mxu0
    %v505 = vadd.f32 %v438, %v504
    %v506 = vpop.f32.mrf.mxu0
    %507 = vdwg.mxu0
    %s508 = scalar_lea.vmem [#allocation2], 32
    %v509 = vld [vmem:[%s508] sm:$0xf]
    %v510 = vld [vmem:[%s508 + $0x4] sm:$0xf]
    %v511 = vld [vmem:[%s508 + $0x8] sm:$0xf]
    %v512 = vld [vmem:[%s508 + $0xc] sm:$0xf]
    %v517 = vunpack.c.l.b16 %v509
    %v518 = vunpack.c.l.b16 %v510
    %v519 = vunpack.c.l.b16 %v511
    %v520 = vunpack.c.l.b16 %v512
    %v521 = vpack.c.b16 %v518, %v517
    %v522 = vpack.c.b16 %v520, %v519
    %v524 = vsel %vm234, %v521, 0
    %v527 = vsel %vm234, %v522, 0
    %529 = vmatprep.subr.bf16.mxu0 0
    %530 = vmatpush1.bf16.msra.mxu0 0
    %531 = vmatprep.subr.bf16.mxu0 0
    %532 = vmatpush1.bf16.msra.mxu0 0
    %533 = vmatprep.subr.bf16.mxu0 0
    %534 = vmatpush1.bf16.msra.mxu0 0
    %535 = vmatprep.subr.bf16.mxu0 0
    %536 = vmatpush1.bf16.msra.mxu0 0
    %537 = vmatprep.subr.bf16.mxu0 0
    %538 = vmatpush1.bf16.msra.mxu0 %v229
    %539 = vmatprep.subr.bf16.mxu0 0
    %540 = vmatpush1.bf16.msra.mxu0 %v228
    %541 = vmatprep.subr.bf16.mxu0 0
    %542 = vmatpush1.bf16.msra.mxu0 %v227
    %543 = vmatprep.subr.bf16.mxu0 0
    %544 = vmatpush1.bf16.msra.mxu0 %v226
    %545 = vmatprep.subr.bf16.mxu0 0
    %546 = vmatpush2.bf16.msra.mxu0 0
    %547 = vmatprep.subr.bf16.mxu0 0
    %548 = vmatpush2.bf16.msra.mxu0 0
    %549 = vmatprep.subr.bf16.mxu0 0
    %550 = vmatpush2.bf16.msra.mxu0 0
    %551 = vmatprep.subr.bf16.mxu0 0
    %552 = vmatpush2.bf16.msra.mxu0 0
    %553 = vmatprep.subr.bf16.mxu0 0
    %554 = vmatpush2.bf16.msra.mxu0 0
    %555 = vmatprep.subr.bf16.mxu0 0
    %556 = vmatpush2.bf16.msra.mxu0 0
    %557 = vmatprep.subr.bf16.mxu0 0
    %558 = vmatpush2.bf16.msra.mxu0 0
    %559 = vmatprep.subr.bf16.mxu0 0
    %560 = vmatpush2.bf16.msra.mxu0 0
    %561 = vmatprep.mubr.bf16.mxu0 0
    %562 = vmatmul.mubr.bf16.gmra.mxu0 %v524
    %v563 = vpop.f32.mrf.mxu0
    %v564 = vadd.f32 0.0, %v563
    %v565 = vpop.f32.mrf.mxu0
    %v566 = vpop.f32.mrf.mxu0
    %v567 = vadd.f32 0.0, %v566
    %v568 = vpop.f32.mrf.mxu0
    %569 = vmatprep.mubr.bf16.mxu0 0
    %570 = vmatmul.mubr.bf16.gmra.mxu0 %v527
    %v571 = vpop.f32.mrf.mxu0
    %v572 = vadd.f32 0.0, %v571
    %v573 = vpop.f32.mrf.mxu0
    %v574 = vpop.f32.mrf.mxu0
    %v575 = vadd.f32 0.0, %v574
    %v576 = vpop.f32.mrf.mxu0
    %577 = vdwg.mxu0
    %v578 = vpack.c.bf16 %v567, %v564
    %v579 = vpack.c.bf16 %v575, %v572
    %s580 = scalar_lea.vmem [#allocation5], 32
    %v581 = vld [vmem:[%s580] sm:$0xf]
    %v582 = vld [vmem:[%s580 + $0x4] sm:$0xf]
    %v583 = vld [vmem:[%s580 + $0x8] sm:$0xf]
    %v584 = vld [vmem:[%s580 + $0xc] sm:$0xf]
    %v589 = vunpack.c.l.b16 %v581
    %v590 = vunpack.c.l.b16 %v582
    %v591 = vunpack.c.l.b16 %v583
    %v592 = vunpack.c.l.b16 %v584
    %v593 = vpack.c.b16 %v590, %v589
    %v594 = vpack.c.b16 %v592, %v591
    %v598 = vsel %vm385, %v578, 0
    %v601 = vsel %vm385, %v579, 0
    %603 = vmatprep.subr.bf16.mxu0 0
    %604 = vmatpush1.bf16.msra.mxu0 0
    %605 = vmatprep.subr.bf16.mxu0 0
    %606 = vmatpush1.bf16.msra.mxu0 0
    %607 = vmatprep.subr.bf16.mxu0 0
    %608 = vmatpush1.bf16.msra.mxu0 0
    %609 = vmatprep.subr.bf16.mxu0 0
    %610 = vmatpush1.bf16.msra.mxu0 0
    %611 = vmatprep.subr.bf16.mxu0 0
    %612 = vmatpush1.bf16.msra.mxu0 0
    %613 = vmatprep.subr.bf16.mxu0 0
    %614 = vmatpush1.bf16.msra.mxu0 0
    %615 = vmatprep.subr.bf16.mxu0 0
    %616 = vmatpush1.bf16.msra.mxu0 %v594
    %617 = vmatprep.subr.bf16.mxu0 0
    %618 = vmatpush1.bf16.msra.mxu0 %v593
    %619 = vmatprep.subr.bf16.mxu0 0
    %620 = vmatpush2.bf16.msra.mxu0 0
    %621 = vmatprep.subr.bf16.mxu0 0
    %622 = vmatpush2.bf16.msra.mxu0 0
    %623 = vmatprep.subr.bf16.mxu0 0
    %624 = vmatpush2.bf16.msra.mxu0 0
    %625 = vmatprep.subr.bf16.mxu0 0
    %626 = vmatpush2.bf16.msra.mxu0 0
    %627 = vmatprep.subr.bf16.mxu0 0
    %628 = vmatpush2.bf16.msra.mxu0 0
    %629 = vmatprep.subr.bf16.mxu0 0
    %630 = vmatpush2.bf16.msra.mxu0 0
    %631 = vmatprep.subr.bf16.mxu0 0
    %632 = vmatpush2.bf16.msra.mxu0 0
    %633 = vmatprep.subr.bf16.mxu0 0
    %634 = vmatpush2.bf16.msra.mxu0 0
    %635 = vmatprep.mubr.bf16.mxu0 0
    %636 = vmatmul.mubr.bf16.gmra.mxu0 %v598
    %v637 = vpop.f32.mrf.mxu0
    %v638 = vadd.f32 0.0, %v637
    %v639 = vpop.f32.mrf.mxu0
    %v640 = vpop.f32.mrf.mxu0
    %v641 = vadd.f32 0.0, %v640
    %v642 = vpop.f32.mrf.mxu0
    %643 = vmatprep.mubr.bf16.mxu0 0
    %644 = vmatmul.mubr.bf16.gmra.mxu0 %v601
    %v645 = vpop.f32.mrf.mxu0
    %v646 = vadd.f32 0.0, %v645
    %v647 = vpop.f32.mrf.mxu0
    %v648 = vpop.f32.mrf.mxu0
    %v649 = vadd.f32 0.0, %v648
    %v650 = vpop.f32.mrf.mxu0
    %651 = vdwg.mxu0
    %v652 = vadd.f32 %v494, %v638
    %v653 = vadd.f32 %v497, %v641
    %v654 = vadd.f32 %v502, %v646
    %v655 = vadd.f32 %v505, %v649
    %s656 = scalar_lea.vmem [#allocation2], 48
    %v657 = vld [vmem:[%s656] sm:$0xf]
    %v658 = vld [vmem:[%s656 + $0x4] sm:$0xf]
    %v659 = vld [vmem:[%s656 + $0x8] sm:$0xf]
    %v660 = vld [vmem:[%s656 + $0xc] sm:$0xf]
    %v665 = vunpack.c.l.b16 %v657
    %v666 = vunpack.c.l.b16 %v658
    %v667 = vunpack.c.l.b16 %v659
    %v668 = vunpack.c.l.b16 %v660
    %v669 = vpack.c.b16 %v666, %v665
    %v670 = vpack.c.b16 %v668, %v667
    %v672 = vsel %vm234, %v669, 0
    %v675 = vsel %vm234, %v670, 0
    %677 = vmatprep.subr.bf16.mxu0 0
    %678 = vmatpush1.bf16.msra.mxu0 0
    %679 = vmatprep.subr.bf16.mxu0 0
    %680 = vmatpush1.bf16.msra.mxu0 0
    %681 = vmatprep.subr.bf16.mxu0 0
    %682 = vmatpush1.bf16.msra.mxu0 0
    %683 = vmatprep.subr.bf16.mxu0 0
    %684 = vmatpush1.bf16.msra.mxu0 0
    %685 = vmatprep.subr.bf16.mxu0 0
    %686 = vmatpush1.bf16.msra.mxu0 %v229
    %687 = vmatprep.subr.bf16.mxu0 0
    %688 = vmatpush1.bf16.msra.mxu0 %v228
    %689 = vmatprep.subr.bf16.mxu0 0
    %690 = vmatpush1.bf16.msra.mxu0 %v227
    %691 = vmatprep.subr.bf16.mxu0 0
    %692 = vmatpush1.bf16.msra.mxu0 %v226
    %693 = vmatprep.subr.bf16.mxu0 0
    %694 = vmatpush2.bf16.msra.mxu0 0
    %695 = vmatprep.subr.bf16.mxu0 0
    %696 = vmatpush2.bf16.msra.mxu0 0
    %697 = vmatprep.subr.bf16.mxu0 0
    %698 = vmatpush2.bf16.msra.mxu0 0
    %699 = vmatprep.subr.bf16.mxu0 0
    %700 = vmatpush2.bf16.msra.mxu0 0
    %701 = vmatprep.subr.bf16.mxu0 0
    %702 = vmatpush2.bf16.msra.mxu0 0
    %703 = vmatprep.subr.bf16.mxu0 0
    %704 = vmatpush2.bf16.msra.mxu0 0
    %705 = vmatprep.subr.bf16.mxu0 0
    %706 = vmatpush2.bf16.msra.mxu0 0
    %707 = vmatprep.subr.bf16.mxu0 0
    %708 = vmatpush2.bf16.msra.mxu0 0
    %709 = vmatprep.mubr.bf16.mxu0 0
    %710 = vmatmul.mubr.bf16.gmra.mxu0 %v672
    %v711 = vpop.f32.mrf.mxu0
    %v712 = vadd.f32 0.0, %v711
    %v713 = vpop.f32.mrf.mxu0
    %v714 = vpop.f32.mrf.mxu0
    %v715 = vadd.f32 0.0, %v714
    %v716 = vpop.f32.mrf.mxu0
    %717 = vmatprep.mubr.bf16.mxu0 0
    %718 = vmatmul.mubr.bf16.gmra.mxu0 %v675
    %v719 = vpop.f32.mrf.mxu0
    %v720 = vadd.f32 0.0, %v719
    %v721 = vpop.f32.mrf.mxu0
    %v722 = vpop.f32.mrf.mxu0
    %v723 = vadd.f32 0.0, %v722
    %v724 = vpop.f32.mrf.mxu0
    %725 = vdwg.mxu0
    %v726 = vpack.c.bf16 %v715, %v712
    %v727 = vpack.c.bf16 %v723, %v720
    %s728 = scalar_lea.vmem [#allocation5], 48
    %v729 = vld [vmem:[%s728] sm:$0xf]
    %v730 = vld [vmem:[%s728 + $0x4] sm:$0xf]
    %v731 = vld [vmem:[%s728 + $0x8] sm:$0xf]
    %v732 = vld [vmem:[%s728 + $0xc] sm:$0xf]
    %v737 = vunpack.c.l.b16 %v729
    %v738 = vunpack.c.l.b16 %v730
    %v739 = vunpack.c.l.b16 %v731
    %v740 = vunpack.c.l.b16 %v732
    %v741 = vpack.c.b16 %v738, %v737
    %v742 = vpack.c.b16 %v740, %v739
    %v746 = vsel %vm385, %v726, 0
    %v749 = vsel %vm385, %v727, 0
    %751 = vmatprep.subr.bf16.mxu0 0
    %752 = vmatpush1.bf16.msra.mxu0 0
    %753 = vmatprep.subr.bf16.mxu0 0
    %754 = vmatpush1.bf16.msra.mxu0 0
    %755 = vmatprep.subr.bf16.mxu0 0
    %756 = vmatpush1.bf16.msra.mxu0 0
    %757 = vmatprep.subr.bf16.mxu0 0
    %758 = vmatpush1.bf16.msra.mxu0 0
    %759 = vmatprep.subr.bf16.mxu0 0
    %760 = vmatpush1.bf16.msra.mxu0 0
    %761 = vmatprep.subr.bf16.mxu0 0
    %762 = vmatpush1.bf16.msra.mxu0 0
    %763 = vmatprep.subr.bf16.mxu0 0
    %764 = vmatpush1.bf16.msra.mxu0 %v742
    %765 = vmatprep.subr.bf16.mxu0 0
    %766 = vmatpush1.bf16.msra.mxu0 %v741
    %767 = vmatprep.subr.bf16.mxu0 0
    %768 = vmatpush2.bf16.msra.mxu0 0
    %769 = vmatprep.subr.bf16.mxu0 0
    %770 = vmatpush2.bf16.msra.mxu0 0
    %771 = vmatprep.subr.bf16.mxu0 0
    %772 = vmatpush2.bf16.msra.mxu0 0
    %773 = vmatprep.subr.bf16.mxu0 0
    %774 = vmatpush2.bf16.msra.mxu0 0
    %775 = vmatprep.subr.bf16.mxu0 0
    %776 = vmatpush2.bf16.msra.mxu0 0
    %777 = vmatprep.subr.bf16.mxu0 0
    %778 = vmatpush2.bf16.msra.mxu0 0
    %779 = vmatprep.subr.bf16.mxu0 0
    %780 = vmatpush2.bf16.msra.mxu0 0
    %781 = vmatprep.subr.bf16.mxu0 0
    %782 = vmatpush2.bf16.msra.mxu0 0
    %783 = vmatprep.mubr.bf16.mxu0 0
    %784 = vmatmul.mubr.bf16.gmra.mxu0 %v746
    %v785 = vpop.f32.mrf.mxu0
    %v786 = vadd.f32 0.0, %v785
    %v787 = vpop.f32.mrf.mxu0
    %v788 = vpop.f32.mrf.mxu0
    %v789 = vadd.f32 0.0, %v788
    %v790 = vpop.f32.mrf.mxu0
    %791 = vmatprep.mubr.bf16.mxu0 0
    %792 = vmatmul.mubr.bf16.gmra.mxu0 %v749
    %v793 = vpop.f32.mrf.mxu0
    %v794 = vadd.f32 0.0, %v793
    %v795 = vpop.f32.mrf.mxu0
    %v796 = vpop.f32.mrf.mxu0
    %v797 = vadd.f32 0.0, %v796
    %v798 = vpop.f32.mrf.mxu0
    %799 = vdwg.mxu0
    %v800 = vadd.f32 %v652, %v786
    %v801 = vadd.f32 %v653, %v789
    %v802 = vadd.f32 %v654, %v794
    %v803 = vadd.f32 %v655, %v797
    %v804 = vld [vmem:[#allocation7] sm:$0x1]
    %v806 = vlaneseq
    %v807 = vshrl.u32 %v806, 7
    %v808 = vsub.s32 0, %v807
    %v809 = vrot.slane %v804, %v808
    %v811 = vadd.f32 %v800, %v809
    %v812 = vadd.f32 %v801, %v809
    %v813 = vadd.f32 %v802, %v809
    %v814 = vadd.f32 %v803, %v809
    %v815 = vmul.f32 %v811, 0.2
    %v816 = vmul.f32 %v812, 0.2
    %v817 = vmul.f32 %v813, 0.2
    %v818 = vmul.f32 %v814, 0.2
    %v819 = vmax.f32 %v811, %v815
    %v820 = vmax.f32 %v812, %v816
    %v821 = vmax.f32 %v813, %v817
    %v822 = vmax.f32 %v814, %v818
    %v823 = vpack.c.bf16 %v820, %v819
    %v824 = vpack.c.bf16 %v822, %v821
    %v825 = vld [vmem:[%s4] sm:$0xf]
    %v826 = vld [vmem:[%s4 + $0x4] sm:$0xf]
    %v829 = vunpack.c.l.b16 %v825
    %v830 = vunpack.c.l.b16 %v826
    %v831 = vpack.c.b16 %v830, %v829
    %v833 = vsel %vm385, %v831, 0
    %835 = vmatprep.subr.bf16.mxu0 0
    %836 = vmatpush1.bf16.msra.mxu0 0
    %837 = vmatprep.subr.bf16.mxu0 0
    %838 = vmatpush1.bf16.msra.mxu0 0
    %839 = vmatprep.subr.bf16.mxu0 0
    %840 = vmatpush1.bf16.msra.mxu0 0
    %841 = vmatprep.subr.bf16.mxu0 0
    %842 = vmatpush1.bf16.msra.mxu0 0
    %843 = vmatprep.subr.bf16.mxu0 0
    %844 = vmatpush1.bf16.msra.mxu0 0
    %845 = vmatprep.subr.bf16.mxu0 0
    %846 = vmatpush1.bf16.msra.mxu0 0
    %847 = vmatprep.subr.bf16.mxu0 0
    %848 = vmatpush1.bf16.msra.mxu0 %v824
    %849 = vmatprep.subr.bf16.mxu0 0
    %850 = vmatpush1.bf16.msra.mxu0 %v823
    %851 = vmatprep.subr.bf16.mxu0 0
    %852 = vmatpush2.bf16.msra.mxu0 0
    %853 = vmatprep.subr.bf16.mxu0 0
    %854 = vmatpush2.bf16.msra.mxu0 0
    %855 = vmatprep.subr.bf16.mxu0 0
    %856 = vmatpush2.bf16.msra.mxu0 0
    %857 = vmatprep.subr.bf16.mxu0 0
    %858 = vmatpush2.bf16.msra.mxu0 0
    %859 = vmatprep.subr.bf16.mxu0 0
    %860 = vmatpush2.bf16.msra.mxu0 0
    %861 = vmatprep.subr.bf16.mxu0 0
    %862 = vmatpush2.bf16.msra.mxu0 0
    %863 = vmatprep.subr.bf16.mxu0 0
    %864 = vmatpush2.bf16.msra.mxu0 0
    %865 = vmatprep.subr.bf16.mxu0 0
    %866 = vmatpush2.bf16.msra.mxu0 0
    %867 = vmatprep.mubr.bf16.mxu0 0
    %868 = vmatmul.mubr.bf16.gmra.mxu0 %v833
    %v869 = vpop.f32.mrf.mxu0
    %v870 = vadd.f32 0.0, %v869
    %v871 = vpop.f32.mrf.mxu0
    %v872 = vpop.f32.mrf.mxu0
    %v873 = vadd.f32 0.0, %v872
    %v874 = vpop.f32.mrf.mxu0
    %875 = vdwg.mxu0
    %v876 = vpack.c.bf16 %v873, %v870
    %v877 = vld [vmem:[%s5] sm:$0xf]
    %v878 = vld [vmem:[%s5 + $0x4] sm:$0xf]
    %v879 = vld [vmem:[%s5 + $0x8] sm:$0xf]
    %v880 = vld [vmem:[%s5 + $0xc] sm:$0xf]
    %v881 = vld [vmem:[%s5 + $0x10] sm:$0xf]
    %v882 = vld [vmem:[%s5 + $0x14] sm:$0xf]
    %v883 = vld [vmem:[%s5 + $0x18] sm:$0xf]
    %v884 = vld [vmem:[%s5 + $0x1c] sm:$0xf]
    %s885 = scalar_lea.vmem %s4, 8
    %v886 = vld [vmem:[%s885] sm:$0xf]
    %v887 = vld [vmem:[%s885 + $0x4] sm:$0xf]
    %v890 = vunpack.c.l.b16 %v886
    %v891 = vunpack.c.l.b16 %v887
    %v892 = vpack.c.b16 %v891, %v890
    %v894 = vsel %vm385, %v892, 0
    %896 = vmatprep.subr.bf16.mxu0 0
    %897 = vmatpush1.bf16.msra.mxu0 0
    %898 = vmatprep.subr.bf16.mxu0 0
    %899 = vmatpush1.bf16.msra.mxu0 0
    %900 = vmatprep.subr.bf16.mxu0 0
    %901 = vmatpush1.bf16.msra.mxu0 0
    %902 = vmatprep.subr.bf16.mxu0 0
    %903 = vmatpush1.bf16.msra.mxu0 0
    %904 = vmatprep.subr.bf16.mxu0 0
    %905 = vmatpush1.bf16.msra.mxu0 0
    %906 = vmatprep.subr.bf16.mxu0 0
    %907 = vmatpush1.bf16.msra.mxu0 0
    %908 = vmatprep.subr.bf16.mxu0 0
    %909 = vmatpush1.bf16.msra.mxu0 %v824
    %910 = vmatprep.subr.bf16.mxu0 0
    %911 = vmatpush1.bf16.msra.mxu0 %v823
    %912 = vmatprep.subr.bf16.mxu0 0
    %913 = vmatpush2.bf16.msra.mxu0 0
    %914 = vmatprep.subr.bf16.mxu0 0
    %915 = vmatpush2.bf16.msra.mxu0 0
    %916 = vmatprep.subr.bf16.mxu0 0
    %917 = vmatpush2.bf16.msra.mxu0 0
    %918 = vmatprep.subr.bf16.mxu0 0
    %919 = vmatpush2.bf16.msra.mxu0 0
    %920 = vmatprep.subr.bf16.mxu0 0
    %921 = vmatpush2.bf16.msra.mxu0 0
    %922 = vmatprep.subr.bf16.mxu0 0
    %923 = vmatpush2.bf16.msra.mxu0 0
    %924 = vmatprep.subr.bf16.mxu0 0
    %925 = vmatpush2.bf16.msra.mxu0 0
    %926 = vmatprep.subr.bf16.mxu0 0
    %927 = vmatpush2.bf16.msra.mxu0 0
    %928 = vmatprep.mubr.bf16.mxu0 0
    %929 = vmatmul.mubr.bf16.gmra.mxu0 %v894
    %v930 = vpop.f32.mrf.mxu0
    %v931 = vadd.f32 0.0, %v930
    %v932 = vpop.f32.mrf.mxu0
    %v933 = vpop.f32.mrf.mxu0
    %v934 = vadd.f32 0.0, %v933
    %v935 = vpop.f32.mrf.mxu0
    %936 = vdwg.mxu0
    %v937 = vpack.c.bf16 %v934, %v931
    %s938 = scalar_lea.vmem %s5, 32
    %v939 = vld [vmem:[%s938] sm:$0xf]
    %v940 = vld [vmem:[%s938 + $0x4] sm:$0xf]
    %v941 = vld [vmem:[%s938 + $0x8] sm:$0xf]
    %v942 = vld [vmem:[%s938 + $0xc] sm:$0xf]
    %v943 = vld [vmem:[%s938 + $0x10] sm:$0xf]
    %v944 = vld [vmem:[%s938 + $0x14] sm:$0xf]
    %v945 = vld [vmem:[%s938 + $0x18] sm:$0xf]
    %v946 = vld [vmem:[%s938 + $0x1c] sm:$0xf]
    %v955 = vunpack.c.l.b16 %v939
    %v956 = vunpack.c.l.b16 %v940
    %v957 = vunpack.c.l.b16 %v941
    %v958 = vunpack.c.l.b16 %v942
    %v959 = vunpack.c.l.b16 %v943
    %v960 = vunpack.c.l.b16 %v944
    %v961 = vunpack.c.l.b16 %v945
    %v962 = vunpack.c.l.b16 %v946
    %v963 = vpack.c.b16 %v956, %v955
    %v964 = vpack.c.b16 %v958, %v957
    %v965 = vpack.c.b16 %v960, %v959
    %v966 = vpack.c.b16 %v962, %v961
    %v972 = vsel %vm234, %v937, 0
    %974 = vmatprep.subr.bf16.mxu0 0
    %975 = vmatpush1.bf16.msra.mxu0 0
    %976 = vmatprep.subr.bf16.mxu0 0
    %977 = vmatpush1.bf16.msra.mxu0 0
    %978 = vmatprep.subr.bf16.mxu0 0
    %979 = vmatpush1.bf16.msra.mxu0 0
    %980 = vmatprep.subr.bf16.mxu0 0
    %981 = vmatpush1.bf16.msra.mxu0 0
    %982 = vmatprep.subr.bf16.mxu0 0
    %983 = vmatpush1.bf16.msra.mxu0 %v966
    %984 = vmatprep.subr.bf16.mxu0 0
    %985 = vmatpush1.bf16.msra.mxu0 %v965
    %986 = vmatprep.subr.bf16.mxu0 0
    %987 = vmatpush1.bf16.msra.mxu0 %v964
    %988 = vmatprep.subr.bf16.mxu0 0
    %989 = vmatpush1.bf16.msra.mxu0 %v963
    %990 = vmatprep.subr.bf16.mxu0 0
    %991 = vmatpush2.bf16.msra.mxu0 0
    %992 = vmatprep.subr.bf16.mxu0 0
    %993 = vmatpush2.bf16.msra.mxu0 0
    %994 = vmatprep.subr.bf16.mxu0 0
    %995 = vmatpush2.bf16.msra.mxu0 0
    %996 = vmatprep.subr.bf16.mxu0 0
    %997 = vmatpush2.bf16.msra.mxu0 0
    %998 = vmatprep.subr.bf16.mxu0 0
    %999 = vmatpush2.bf16.msra.mxu0 0
    %1000 = vmatprep.subr.bf16.mxu0 0
    %1001 = vmatpush2.bf16.msra.mxu0 0
    %1002 = vmatprep.subr.bf16.mxu0 0
    %1003 = vmatpush2.bf16.msra.mxu0 0
    %1004 = vmatprep.subr.bf16.mxu0 0
    %1005 = vmatpush2.bf16.msra.mxu0 0
    %1006 = vmatprep.mubr.bf16.mxu0 0
    %1007 = vmatmul.mubr.bf16.gmra.mxu0 %v972
    %v1008 = vpop.f32.mrf.mxu0
    %v1009 = vadd.f32 0.0, %v1008
    %v1010 = vpop.f32.mrf.mxu0
    %v1011 = vpop.f32.mrf.mxu0
    %v1012 = vadd.f32 0.0, %v1011
    %v1013 = vpop.f32.mrf.mxu0
    %1014 = vdwg.mxu0
    %v1023 = vunpack.c.l.b16 %v877
    %v1024 = vunpack.c.l.b16 %v878
    %v1025 = vunpack.c.l.b16 %v879
    %v1026 = vunpack.c.l.b16 %v880
    %v1027 = vunpack.c.l.b16 %v881
    %v1028 = vunpack.c.l.b16 %v882
    %v1029 = vunpack.c.l.b16 %v883
    %v1030 = vunpack.c.l.b16 %v884
    %v1031 = vpack.c.b16 %v1024, %v1023
    %v1032 = vpack.c.b16 %v1026, %v1025
    %v1033 = vpack.c.b16 %v1028, %v1027
    %v1034 = vpack.c.b16 %v1030, %v1029
    %v1040 = vsel %vm234, %v876, 0
    %1042 = vmatprep.subr.bf16.mxu0 0
    %1043 = vmatpush1.bf16.msra.mxu0 0
    %1044 = vmatprep.subr.bf16.mxu0 0
    %1045 = vmatpush1.bf16.msra.mxu0 0
    %1046 = vmatprep.subr.bf16.mxu0 0
    %1047 = vmatpush1.bf16.msra.mxu0 0
    %1048 = vmatprep.subr.bf16.mxu0 0
    %1049 = vmatpush1.bf16.msra.mxu0 0
    %1050 = vmatprep.subr.bf16.mxu0 0
    %1051 = vmatpush1.bf16.msra.mxu0 %v1034
    %1052 = vmatprep.subr.bf16.mxu0 0
    %1053 = vmatpush1.bf16.msra.mxu0 %v1033
    %1054 = vmatprep.subr.bf16.mxu0 0
    %1055 = vmatpush1.bf16.msra.mxu0 %v1032
    %1056 = vmatprep.subr.bf16.mxu0 0
    %1057 = vmatpush1.bf16.msra.mxu0 %v1031
    %1058 = vmatprep.subr.bf16.mxu0 0
    %1059 = vmatpush2.bf16.msra.mxu0 0
    %1060 = vmatprep.subr.bf16.mxu0 0
    %1061 = vmatpush2.bf16.msra.mxu0 0
    %1062 = vmatprep.subr.bf16.mxu0 0
    %1063 = vmatpush2.bf16.msra.mxu0 0
    %1064 = vmatprep.subr.bf16.mxu0 0
    %1065 = vmatpush2.bf16.msra.mxu0 0
    %1066 = vmatprep.subr.bf16.mxu0 0
    %1067 = vmatpush2.bf16.msra.mxu0 0
    %1068 = vmatprep.subr.bf16.mxu0 0
    %1069 = vmatpush2.bf16.msra.mxu0 0
    %1070 = vmatprep.subr.bf16.mxu0 0
    %1071 = vmatpush2.bf16.msra.mxu0 0
    %1072 = vmatprep.subr.bf16.mxu0 0
    %1073 = vmatpush2.bf16.msra.mxu0 0
    %1074 = vmatprep.mubr.bf16.mxu0 0
    %1075 = vmatmul.mubr.bf16.gmra.mxu0 %v1040
    %v1076 = vpop.f32.mrf.mxu0
    %v1077 = vadd.f32 %v1009, %v1076
    %v1078 = vpop.f32.mrf.mxu0
    %v1079 = vpop.f32.mrf.mxu0
    %v1080 = vadd.f32 %v1012, %v1079
    %v1081 = vpop.f32.mrf.mxu0
    %1082 = vdwg.mxu0
    %s1083 = scalar_lea.vmem %s4, 16
    %v1084 = vld [vmem:[%s1083] sm:$0xf]
    %v1085 = vld [vmem:[%s1083 + $0x4] sm:$0xf]
    %v1088 = vunpack.c.l.b16 %v1084
    %v1089 = vunpack.c.l.b16 %v1085
    %v1090 = vpack.c.b16 %v1089, %v1088
    %v1092 = vsel %vm385, %v1090, 0
    %1094 = vmatprep.subr.bf16.mxu0 0
    %1095 = vmatpush1.bf16.msra.mxu0 0
    %1096 = vmatprep.subr.bf16.mxu0 0
    %1097 = vmatpush1.bf16.msra.mxu0 0
    %1098 = vmatprep.subr.bf16.mxu0 0
    %1099 = vmatpush1.bf16.msra.mxu0 0
    %1100 = vmatprep.subr.bf16.mxu0 0
    %1101 = vmatpush1.bf16.msra.mxu0 0
    %1102 = vmatprep.subr.bf16.mxu0 0
    %1103 = vmatpush1.bf16.msra.mxu0 0
    %1104 = vmatprep.subr.bf16.mxu0 0
    %1105 = vmatpush1.bf16.msra.mxu0 0
    %1106 = vmatprep.subr.bf16.mxu0 0
    %1107 = vmatpush1.bf16.msra.mxu0 %v824
    %1108 = vmatprep.subr.bf16.mxu0 0
    %1109 = vmatpush1.bf16.msra.mxu0 %v823
    %1110 = vmatprep.subr.bf16.mxu0 0
    %1111 = vmatpush2.bf16.msra.mxu0 0
    %1112 = vmatprep.subr.bf16.mxu0 0
    %1113 = vmatpush2.bf16.msra.mxu0 0
    %1114 = vmatprep.subr.bf16.mxu0 0
    %1115 = vmatpush2.bf16.msra.mxu0 0
    %1116 = vmatprep.subr.bf16.mxu0 0
    %1117 = vmatpush2.bf16.msra.mxu0 0
    %1118 = vmatprep.subr.bf16.mxu0 0
    %1119 = vmatpush2.bf16.msra.mxu0 0
    %1120 = vmatprep.subr.bf16.mxu0 0
    %1121 = vmatpush2.bf16.msra.mxu0 0
    %1122 = vmatprep.subr.bf16.mxu0 0
    %1123 = vmatpush2.bf16.msra.mxu0 0
    %1124 = vmatprep.subr.bf16.mxu0 0
    %1125 = vmatpush2.bf16.msra.mxu0 0
    %1126 = vmatprep.mubr.bf16.mxu0 0
    %1127 = vmatmul.mubr.bf16.gmra.mxu0 %v1092
    %v1128 = vpop.f32.mrf.mxu0
    %v1129 = vadd.f32 0.0, %v1128
    %v1130 = vpop.f32.mrf.mxu0
    %v1131 = vpop.f32.mrf.mxu0
    %v1132 = vadd.f32 0.0, %v1131
    %v1133 = vpop.f32.mrf.mxu0
    %1134 = vdwg.mxu0
    %v1135 = vpack.c.bf16 %v1132, %v1129
    %s1136 = scalar_lea.vmem %s5, 64
    %v1137 = vld [vmem:[%s1136] sm:$0xf]
    %v1138 = vld [vmem:[%s1136 + $0x4] sm:$0xf]
    %v1139 = vld [vmem:[%s1136 + $0x8] sm:$0xf]
    %v1140 = vld [vmem:[%s1136 + $0xc] sm:$0xf]
    %v1141 = vld [vmem:[%s1136 + $0x10] sm:$0xf]
    %v1142 = vld [vmem:[%s1136 + $0x14] sm:$0xf]
    %v1143 = vld [vmem:[%s1136 + $0x18] sm:$0xf]
    %v1144 = vld [vmem:[%s1136 + $0x1c] sm:$0xf]
    %v1153 = vunpack.c.l.b16 %v1137
    %v1154 = vunpack.c.l.b16 %v1138
    %v1155 = vunpack.c.l.b16 %v1139
    %v1156 = vunpack.c.l.b16 %v1140
    %v1157 = vunpack.c.l.b16 %v1141
    %v1158 = vunpack.c.l.b16 %v1142
    %v1159 = vunpack.c.l.b16 %v1143
    %v1160 = vunpack.c.l.b16 %v1144
    %v1161 = vpack.c.b16 %v1154, %v1153
    %v1162 = vpack.c.b16 %v1156, %v1155
    %v1163 = vpack.c.b16 %v1158, %v1157
    %v1164 = vpack.c.b16 %v1160, %v1159
    %v1170 = vsel %vm234, %v1135, 0
    %1172 = vmatprep.subr.bf16.mxu0 0
    %1173 = vmatpush1.bf16.msra.mxu0 0
    %1174 = vmatprep.subr.bf16.mxu0 0
    %1175 = vmatpush1.bf16.msra.mxu0 0
    %1176 = vmatprep.subr.bf16.mxu0 0
    %1177 = vmatpush1.bf16.msra.mxu0 0
    %1178 = vmatprep.subr.bf16.mxu0 0
    %1179 = vmatpush1.bf16.msra.mxu0 0
    %1180 = vmatprep.subr.bf16.mxu0 0
    %1181 = vmatpush1.bf16.msra.mxu0 %v1164
    %1182 = vmatprep.subr.bf16.mxu0 0
    %1183 = vmatpush1.bf16.msra.mxu0 %v1163
    %1184 = vmatprep.subr.bf16.mxu0 0
    %1185 = vmatpush1.bf16.msra.mxu0 %v1162
    %1186 = vmatprep.subr.bf16.mxu0 0
    %1187 = vmatpush1.bf16.msra.mxu0 %v1161
    %1188 = vmatprep.subr.bf16.mxu0 0
    %1189 = vmatpush2.bf16.msra.mxu0 0
    %1190 = vmatprep.subr.bf16.mxu0 0
    %1191 = vmatpush2.bf16.msra.mxu0 0
    %1192 = vmatprep.subr.bf16.mxu0 0
    %1193 = vmatpush2.bf16.msra.mxu0 0
    %1194 = vmatprep.subr.bf16.mxu0 0
    %1195 = vmatpush2.bf16.msra.mxu0 0
    %1196 = vmatprep.subr.bf16.mxu0 0
    %1197 = vmatpush2.bf16.msra.mxu0 0
    %1198 = vmatprep.subr.bf16.mxu0 0
    %1199 = vmatpush2.bf16.msra.mxu0 0
    %1200 = vmatprep.subr.bf16.mxu0 0
    %1201 = vmatpush2.bf16.msra.mxu0 0
    %1202 = vmatprep.subr.bf16.mxu0 0
    %1203 = vmatpush2.bf16.msra.mxu0 0
    %1204 = vmatprep.mubr.bf16.mxu0 0
    %1205 = vmatmul.mubr.bf16.gmra.mxu0 %v1170
    %v1206 = vpop.f32.mrf.mxu0
    %v1207 = vadd.f32 0.0, %v1206
    %v1208 = vpop.f32.mrf.mxu0
    %v1209 = vpop.f32.mrf.mxu0
    %v1210 = vadd.f32 0.0, %v1209
    %v1211 = vpop.f32.mrf.mxu0
    %1212 = vdwg.mxu0
    %v1213 = vadd.f32 %v1077, %v1207
    %v1214 = vadd.f32 %v1080, %v1210
    %s1215 = scalar_lea.vmem %s4, 24
    %v1216 = vld [vmem:[%s1215] sm:$0xf]
    %v1217 = vld [vmem:[%s1215 + $0x4] sm:$0xf]
    %v1220 = vunpack.c.l.b16 %v1216
    %v1221 = vunpack.c.l.b16 %v1217
    %v1222 = vpack.c.b16 %v1221, %v1220
    %v1224 = vsel %vm385, %v1222, 0
    %1226 = vmatprep.subr.bf16.mxu0 0
    %1227 = vmatpush1.bf16.msra.mxu0 0
    %1228 = vmatprep.subr.bf16.mxu0 0
    %1229 = vmatpush1.bf16.msra.mxu0 0
    %1230 = vmatprep.subr.bf16.mxu0 0
    %1231 = vmatpush1.bf16.msra.mxu0 0
    %1232 = vmatprep.subr.bf16.mxu0 0
    %1233 = vmatpush1.bf16.msra.mxu0 0
    %1234 = vmatprep.subr.bf16.mxu0 0
    %1235 = vmatpush1.bf16.msra.mxu0 0
    %1236 = vmatprep.subr.bf16.mxu0 0
    %1237 = vmatpush1.bf16.msra.mxu0 0
    %1238 = vmatprep.subr.bf16.mxu0 0
    %1239 = vmatpush1.bf16.msra.mxu0 %v824
    %1240 = vmatprep.subr.bf16.mxu0 0
    %1241 = vmatpush1.bf16.msra.mxu0 %v823
    %1242 = vmatprep.subr.bf16.mxu0 0
    %1243 = vmatpush2.bf16.msra.mxu0 0
    %1244 = vmatprep.subr.bf16.mxu0 0
    %1245 = vmatpush2.bf16.msra.mxu0 0
    %1246 = vmatprep.subr.bf16.mxu0 0
    %1247 = vmatpush2.bf16.msra.mxu0 0
    %1248 = vmatprep.subr.bf16.mxu0 0
    %1249 = vmatpush2.bf16.msra.mxu0 0
    %1250 = vmatprep.subr.bf16.mxu0 0
    %1251 = vmatpush2.bf16.msra.mxu0 0
    %1252 = vmatprep.subr.bf16.mxu0 0
    %1253 = vmatpush2.bf16.msra.mxu0 0
    %1254 = vmatprep.subr.bf16.mxu0 0
    %1255 = vmatpush2.bf16.msra.mxu0 0
    %1256 = vmatprep.subr.bf16.mxu0 0
    %1257 = vmatpush2.bf16.msra.mxu0 0
    %1258 = vmatprep.mubr.bf16.mxu0 0
    %1259 = vmatmul.mubr.bf16.gmra.mxu0 %v1224
    %v1260 = vpop.f32.mrf.mxu0
    %v1261 = vadd.f32 0.0, %v1260
    %v1262 = vpop.f32.mrf.mxu0
    %v1263 = vpop.f32.mrf.mxu0
    %v1264 = vadd.f32 0.0, %v1263
    %v1265 = vpop.f32.mrf.mxu0
    %1266 = vdwg.mxu0
    %v1267 = vpack.c.bf16 %v1264, %v1261
    %s1268 = scalar_lea.vmem %s5, 96
    %v1269 = vld [vmem:[%s1268] sm:$0xf]
    %v1270 = vld [vmem:[%s1268 + $0x4] sm:$0xf]
    %v1271 = vld [vmem:[%s1268 + $0x8] sm:$0xf]
    %v1272 = vld [vmem:[%s1268 + $0xc] sm:$0xf]
    %v1273 = vld [vmem:[%s1268 + $0x10] sm:$0xf]
    %v1274 = vld [vmem:[%s1268 + $0x14] sm:$0xf]
    %v1275 = vld [vmem:[%s1268 + $0x18] sm:$0xf]
    %v1276 = vld [vmem:[%s1268 + $0x1c] sm:$0xf]
    %v1285 = vunpack.c.l.b16 %v1269
    %v1286 = vunpack.c.l.b16 %v1270
    %v1287 = vunpack.c.l.b16 %v1271
    %v1288 = vunpack.c.l.b16 %v1272
    %v1289 = vunpack.c.l.b16 %v1273
    %v1290 = vunpack.c.l.b16 %v1274
    %v1291 = vunpack.c.l.b16 %v1275
    %v1292 = vunpack.c.l.b16 %v1276
    %v1293 = vpack.c.b16 %v1286, %v1285
    %v1294 = vpack.c.b16 %v1288, %v1287
    %v1295 = vpack.c.b16 %v1290, %v1289
    %v1296 = vpack.c.b16 %v1292, %v1291
    %v1302 = vsel %vm234, %v1267, 0
    %1304 = vmatprep.subr.bf16.mxu0 0
    %1305 = vmatpush1.bf16.msra.mxu0 0
    %1306 = vmatprep.subr.bf16.mxu0 0
    %1307 = vmatpush1.bf16.msra.mxu0 0
    %1308 = vmatprep.subr.bf16.mxu0 0
    %1309 = vmatpush1.bf16.msra.mxu0 0
    %1310 = vmatprep.subr.bf16.mxu0 0
    %1311 = vmatpush1.bf16.msra.mxu0 0
    %1312 = vmatprep.subr.bf16.mxu0 0
    %1313 = vmatpush1.bf16.msra.mxu0 %v1296
    %1314 = vmatprep.subr.bf16.mxu0 0
    %1315 = vmatpush1.bf16.msra.mxu0 %v1295
    %1316 = vmatprep.subr.bf16.mxu0 0
    %1317 = vmatpush1.bf16.msra.mxu0 %v1294
    %1318 = vmatprep.subr.bf16.mxu0 0
    %1319 = vmatpush1.bf16.msra.mxu0 %v1293
    %1320 = vmatprep.subr.bf16.mxu0 0
    %1321 = vmatpush2.bf16.msra.mxu0 0
    %1322 = vmatprep.subr.bf16.mxu0 0
    %1323 = vmatpush2.bf16.msra.mxu0 0
    %1324 = vmatprep.subr.bf16.mxu0 0
    %1325 = vmatpush2.bf16.msra.mxu0 0
    %1326 = vmatprep.subr.bf16.mxu0 0
    %1327 = vmatpush2.bf16.msra.mxu0 0
    %1328 = vmatprep.subr.bf16.mxu0 0
    %1329 = vmatpush2.bf16.msra.mxu0 0
    %1330 = vmatprep.subr.bf16.mxu0 0
    %1331 = vmatpush2.bf16.msra.mxu0 0
    %1332 = vmatprep.subr.bf16.mxu0 0
    %1333 = vmatpush2.bf16.msra.mxu0 0
    %1334 = vmatprep.subr.bf16.mxu0 0
    %1335 = vmatpush2.bf16.msra.mxu0 0
    %1336 = vmatprep.mubr.bf16.mxu0 0
    %1337 = vmatmul.mubr.bf16.gmra.mxu0 %v1302
    %v1338 = vpop.f32.mrf.mxu0
    %v1339 = vadd.f32 0.0, %v1338
    %v1340 = vpop.f32.mrf.mxu0
    %v1341 = vpop.f32.mrf.mxu0
    %v1342 = vadd.f32 0.0, %v1341
    %v1343 = vpop.f32.mrf.mxu0
    %1344 = vdwg.mxu0
    %v1345 = vadd.f32 %v1213, %v1339
    %v1346 = vadd.f32 %v1214, %v1342
    %v1347 = vld [vmem:[#allocation8] sm:$0x1]
    %v1349 = vlaneseq
    %v1350 = vshrl.u32 %v1349, 7
    %v1351 = vsub.s32 0, %v1350
    %v1352 = vrot.slane %v1347, %v1351
    %v1354 = vadd.f32 %v1345, %v1352
    %v1355 = vadd.f32 %v1346, %v1352
    %v1356 = vld [vmem:[#allocation11] sm:$0xff]
    %v1357 = vld [vmem:[#allocation11 + $0x8] sm:$0xff]
    %v1358 = vld [vmem:[#allocation11 + $0x10] sm:$0xff]
    %v1359 = vld [vmem:[#allocation11 + $0x18] sm:$0xff]
    %v1360 = vld [vmem:[#allocation11 + $0x20] sm:$0xff]
    %v1361 = vld [vmem:[#allocation11 + $0x28] sm:$0xff]
    %v1362 = vld [vmem:[#allocation11 + $0x30] sm:$0xff]
    %v1363 = vld [vmem:[#allocation11 + $0x38] sm:$0xff]
    %v1365 = vsel %vm234, %v1354, 0
    %v1368 = vsel %vm234, %v1355, 0
    %1370 = vmatprep.subr.mxu0 0.0
    %1371 = vmatpush1.msra.mxu0 0.0
    %1372 = vmatprep.subr.mxu0 0.0
    %1373 = vmatpush1.msra.mxu0 0.0
    %1374 = vmatprep.subr.mxu0 0.0
    %1375 = vmatpush1.msra.mxu0 0.0
    %1376 = vmatprep.subr.mxu0 0.0
    %1377 = vmatpush1.msra.mxu0 0.0
    %1378 = vmatprep.subr.mxu0 0.0
    %1379 = vmatpush1.msra.mxu0 0.0
    %1380 = vmatprep.subr.mxu0 0.0
    %1381 = vmatpush1.msra.mxu0 0.0
    %1382 = vmatprep.subr.mxu0 0.0
    %1383 = vmatpush1.msra.mxu0 0.0
    %1384 = vmatprep.subr.mxu0 0.0
    %1385 = vmatpush1.msra.mxu0 0.0
    %1386 = vmatprep.subr.mxu0 0.0
    %1387 = vmatpush1.msra.mxu0 %v1363
    %1388 = vmatprep.subr.mxu0 0.0
    %1389 = vmatpush1.msra.mxu0 %v1362
    %1390 = vmatprep.subr.mxu0 0.0
    %1391 = vmatpush1.msra.mxu0 %v1361
    %1392 = vmatprep.subr.mxu0 0.0
    %1393 = vmatpush1.msra.mxu0 %v1360
    %1394 = vmatprep.subr.mxu0 0.0
    %1395 = vmatpush1.msra.mxu0 %v1359
    %1396 = vmatprep.subr.mxu0 0.0
    %1397 = vmatpush1.msra.mxu0 %v1358
    %1398 = vmatprep.subr.mxu0 0.0
    %1399 = vmatpush1.msra.mxu0 %v1357
    %1400 = vmatprep.subr.mxu0 0.0
    %1401 = vmatpush1.msra.mxu0 %v1356
    %1402 = vmatprep.subr.mxu0 0.0
    %1403 = vmatpush2.msra.mxu0 0.0
    %1404 = vmatprep.subr.mxu0 0.0
    %1405 = vmatpush2.msra.mxu0 0.0
    %1406 = vmatprep.subr.mxu0 0.0
    %1407 = vmatpush2.msra.mxu0 0.0
    %1408 = vmatprep.subr.mxu0 0.0
    %1409 = vmatpush2.msra.mxu0 0.0
    %1410 = vmatprep.subr.mxu0 0.0
    %1411 = vmatpush2.msra.mxu0 0.0
    %1412 = vmatprep.subr.mxu0 0.0
    %1413 = vmatpush2.msra.mxu0 0.0
    %1414 = vmatprep.subr.mxu0 0.0
    %1415 = vmatpush2.msra.mxu0 0.0
    %1416 = vmatprep.subr.mxu0 0.0
    %1417 = vmatpush2.msra.mxu0 0.0
    %1418 = vmatprep.subr.mxu0 0.0
    %1419 = vmatpush2.msra.mxu0 0.0
    %1420 = vmatprep.subr.mxu0 0.0
    %1421 = vmatpush2.msra.mxu0 0.0
    %1422 = vmatprep.subr.mxu0 0.0
    %1423 = vmatpush2.msra.mxu0 0.0
    %1424 = vmatprep.subr.mxu0 0.0
    %1425 = vmatpush2.msra.mxu0 0.0
    %1426 = vmatprep.subr.mxu0 0.0
    %1427 = vmatpush2.msra.mxu0 0.0
    %1428 = vmatprep.subr.mxu0 0.0
    %1429 = vmatpush2.msra.mxu0 0.0
    %1430 = vmatprep.subr.mxu0 0.0
    %1431 = vmatpush2.msra.mxu0 0.0
    %1432 = vmatprep.subr.mxu0 0.0
    %1433 = vmatpush2.msra.mxu0 0.0
    %1434 = vmatprep.mubr.f32.mxu0 0.0
    %1435 = vmatmul.mubr.f32.gmra.mxu0 %v1365
    %v1436 = vpop.f32.mrf.mxu0
    %v1437 = vadd.f32 0.0, %v1436
    %v1438 = vpop.f32.mrf.mxu0
    %1439 = vmatprep.mubr.f32.mxu0 0.0
    %1440 = vmatmul.mubr.f32.gmra.mxu0 %v1368
    %v1441 = vpop.f32.mrf.mxu0
    %v1442 = vadd.f32 0.0, %v1441
    %v1443 = vpop.f32.mrf.mxu0
    %1444 = vdwg.mxu0
    %v1445 = vsel %vm234, %v1437, 0.0
    %v1446 = vsel %vm234, %v1442, 0.0
    %v1447 = vadd.f32 %v1445, %v1446
    %v1448 = vrot.slane %v1447, 4
    %v1449 = vadd.f32 %v1447, %v1448
    %v1450 = vrot.slane %v1449, 2
    %v1451 = vadd.f32 %v1449, %v1450
    %v1452 = vrot.slane %v1451, 1
    %v1453 = vadd.f32 %v1451, %v1452
    %v1454 = vrcp.pop 16.0
    %v1455 = vmul.f32 %v1453, %v1454
    %v1456 = vsub.f32 %v1354, %v1455
    %v1457 = vsub.f32 %v1355, %v1455
    %v1458 = vmul.f32 %v1456, %v1456
    %v1459 = vmul.f32 %v1457, %v1457
    %v1461 = vsel %vm234, %v1458, 0
    %v1464 = vsel %vm234, %v1459, 0
    %1466 = vmatprep.subr.mxu0 0.0
    %1467 = vmatpush1.msra.mxu0 0.0
    %1468 = vmatprep.subr.mxu0 0.0
    %1469 = vmatpush1.msra.mxu0 0.0
    %1470 = vmatprep.subr.mxu0 0.0
    %1471 = vmatpush1.msra.mxu0 0.0
    %1472 = vmatprep.subr.mxu0 0.0
    %1473 = vmatpush1.msra.mxu0 0.0
    %1474 = vmatprep.subr.mxu0 0.0
    %1475 = vmatpush1.msra.mxu0 0.0
    %1476 = vmatprep.subr.mxu0 0.0
    %1477 = vmatpush1.msra.mxu0 0.0
    %1478 = vmatprep.subr.mxu0 0.0
    %1479 = vmatpush1.msra.mxu0 0.0
    %1480 = vmatprep.subr.mxu0 0.0
    %1481 = vmatpush1.msra.mxu0 0.0
    %1482 = vmatprep.subr.mxu0 0.0
    %1483 = vmatpush1.msra.mxu0 %v1363
    %1484 = vmatprep.subr.mxu0 0.0
    %1485 = vmatpush1.msra.mxu0 %v1362
    %1486 = vmatprep.subr.mxu0 0.0
    %1487 = vmatpush1.msra.mxu0 %v1361
    %1488 = vmatprep.subr.mxu0 0.0
    %1489 = vmatpush1.msra.mxu0 %v1360
    %1490 = vmatprep.subr.mxu0 0.0
    %1491 = vmatpush1.msra.mxu0 %v1359
    %1492 = vmatprep.subr.mxu0 0.0
    %1493 = vmatpush1.msra.mxu0 %v1358
    %1494 = vmatprep.subr.mxu0 0.0
    %1495 = vmatpush1.msra.mxu0 %v1357
    %1496 = vmatprep.subr.mxu0 0.0
    %1497 = vmatpush1.msra.mxu0 %v1356
    %1498 = vmatprep.subr.mxu0 0.0
    %1499 = vmatpush2.msra.mxu0 0.0
    %1500 = vmatprep.subr.mxu0 0.0
    %1501 = vmatpush2.msra.mxu0 0.0
    %1502 = vmatprep.subr.mxu0 0.0
    %1503 = vmatpush2.msra.mxu0 0.0
    %1504 = vmatprep.subr.mxu0 0.0
    %1505 = vmatpush2.msra.mxu0 0.0
    %1506 = vmatprep.subr.mxu0 0.0
    %1507 = vmatpush2.msra.mxu0 0.0
    %1508 = vmatprep.subr.mxu0 0.0
    %1509 = vmatpush2.msra.mxu0 0.0
    %1510 = vmatprep.subr.mxu0 0.0
    %1511 = vmatpush2.msra.mxu0 0.0
    %1512 = vmatprep.subr.mxu0 0.0
    %1513 = vmatpush2.msra.mxu0 0.0
    %1514 = vmatprep.subr.mxu0 0.0
    %1515 = vmatpush2.msra.mxu0 0.0
    %1516 = vmatprep.subr.mxu0 0.0
    %1517 = vmatpush2.msra.mxu0 0.0
    %1518 = vmatprep.subr.mxu0 0.0
    %1519 = vmatpush2.msra.mxu0 0.0
    %1520 = vmatprep.subr.mxu0 0.0
    %1521 = vmatpush2.msra.mxu0 0.0
    %1522 = vmatprep.subr.mxu0 0.0
    %1523 = vmatpush2.msra.mxu0 0.0
    %1524 = vmatprep.subr.mxu0 0.0
    %1525 = vmatpush2.msra.mxu0 0.0
    %1526 = vmatprep.subr.mxu0 0.0
    %1527 = vmatpush2.msra.mxu0 0.0
    %1528 = vmatprep.subr.mxu0 0.0
    %1529 = vmatpush2.msra.mxu0 0.0
    %1530 = vmatprep.mubr.f32.mxu0 0.0
    %1531 = vmatmul.mubr.f32.gmra.mxu0 %v1461
    %v1532 = vpop.f32.mrf.mxu0
    %v1533 = vadd.f32 0.0, %v1532
    %v1534 = vpop.f32.mrf.mxu0
    %1535 = vmatprep.mubr.f32.mxu0 0.0
    %1536 = vmatmul.mubr.f32.gmra.mxu0 %v1464
    %v1537 = vpop.f32.mrf.mxu0
    %v1538 = vadd.f32 0.0, %v1537
    %v1539 = vpop.f32.mrf.mxu0
    %1540 = vdwg.mxu0
    %v1541 = vsel %vm234, %v1533, 0.0
    %v1542 = vsel %vm234, %v1538, 0.0
    %v1543 = vadd.f32 %v1541, %v1542
    %v1544 = vrot.slane %v1543, 4
    %v1545 = vadd.f32 %v1543, %v1544
    %v1546 = vrot.slane %v1545, 2
    %v1547 = vadd.f32 %v1545, %v1546
    %v1548 = vrot.slane %v1547, 1
    %v1549 = vadd.f32 %v1547, %v1548
    %v1550 = vmul.f32 %v1549, %v1454
    %v1551 = vld [vmem:[%s7] sm:$0x1]
    %v1552 = vadd.f32 %v1550, 1e-05
    %v1553 = vrsqrt.pop %v1552
    %v1554 = vmul.f32 %v1456, %v1553
    %v1555 = vmul.f32 %v1457, %v1553
    %v1557 = vlaneseq
    %v1558 = vshrl.u32 %v1557, 7
    %v1559 = vsub.s32 0, %v1558
    %v1560 = vrot.slane %v1551, %v1559
    %v1562 = vmul.f32 %v1560, %v1554
    %v1563 = vmul.f32 %v1560, %v1555
    %v1564 = vld [vmem:[#allocation10] sm:$0x1]
    %v1566 = vlaneseq
    %v1567 = vshrl.u32 %v1566, 7
    %v1568 = vsub.s32 0, %v1567
    %v1569 = vrot.slane %v1564, %v1568
    %v1571 = vadd.f32 %v1562, %v1569
    %v1572 = vadd.f32 %v1563, %v1569
    %v1573 = vmul.f32 %v1571, 0.2
    %v1574 = vmul.f32 %v1572, 0.2
    %v1575 = vmax.f32 %v1571, %v1573
    %v1576 = vmax.f32 %v1572, %v1574
    %v1577 = vpack.c.bf16 %v1576, %v1575
    %v1578 = vld [vmem:[%s10] sm:$0xf]
    %vm1579 = vcmask 130048
    %v1581 = vsel %vm1579, %v1578, 0
    %1583 = vmatprep.subr.bf16.mxu0 0
    %1584 = vmatpush1.bf16.msra.mxu0 0
    %1585 = vmatprep.subr.bf16.mxu0 0
    %1586 = vmatpush1.bf16.msra.mxu0 0
    %1587 = vmatprep.subr.bf16.mxu0 0
    %1588 = vmatpush1.bf16.msra.mxu0 0
    %1589 = vmatprep.subr.bf16.mxu0 0
    %1590 = vmatpush1.bf16.msra.mxu0 0
    %1591 = vmatprep.subr.bf16.mxu0 0
    %1592 = vmatpush1.bf16.msra.mxu0 0
    %1593 = vmatprep.subr.bf16.mxu0 0
    %1594 = vmatpush1.bf16.msra.mxu0 0
    %1595 = vmatprep.subr.bf16.mxu0 0
    %1596 = vmatpush1.bf16.msra.mxu0 0
    %1597 = vmatprep.subr.bf16.mxu0 0
    %1598 = vmatpush1.bf16.msra.mxu0 %v1577
    %1599 = vmatprep.subr.bf16.mxu0 0
    %1600 = vmatpush2.bf16.msra.mxu0 0
    %1601 = vmatprep.subr.bf16.mxu0 0
    %1602 = vmatpush2.bf16.msra.mxu0 0
    %1603 = vmatprep.subr.bf16.mxu0 0
    %1604 = vmatpush2.bf16.msra.mxu0 0
    %1605 = vmatprep.subr.bf16.mxu0 0
    %1606 = vmatpush2.bf16.msra.mxu0 0
    %1607 = vmatprep.subr.bf16.mxu0 0
    %1608 = vmatpush2.bf16.msra.mxu0 0
    %1609 = vmatprep.subr.bf16.mxu0 0
    %1610 = vmatpush2.bf16.msra.mxu0 0
    %1611 = vmatprep.subr.bf16.mxu0 0
    %1612 = vmatpush2.bf16.msra.mxu0 0
    %1613 = vmatprep.subr.bf16.mxu0 0
    %1614 = vmatpush2.bf16.msra.mxu0 0
    %1615 = vmatprep.mubr.bf16.mxu0 0
    %1616 = vmatmul.mubr.bf16.gmra.mxu0 %v1581
    %v1617 = vpop.f32.mrf.mxu0
    %v1618 = vadd.f32 0.0, %v1617
    %v1619 = vpop.f32.mrf.mxu0
    %v1620 = vpop.f32.mrf.mxu0
    %v1621 = vpop.f32.mrf.mxu0
    %1622 = vdwg.mxu0
    %v1623 = vpack.c.bf16 %v1618, %v1618
    %v1624 = vld [vmem:[%s11] sm:$0xf]
    %v1625 = vld [vmem:[%s11 + $0x4] sm:$0xf]
    %v1626 = vld [vmem:[%s11 + $0x8] sm:$0xf]
    %v1627 = vld [vmem:[%s11 + $0xc] sm:$0xf]
    %v1628 = vld [vmem:[%s11 + $0x10] sm:$0xf]
    %v1629 = vld [vmem:[%s11 + $0x14] sm:$0xf]
    %v1630 = vld [vmem:[%s11 + $0x18] sm:$0xf]
    %v1631 = vld [vmem:[%s11 + $0x1c] sm:$0xf]
    %s1632 = scalar_lea.vmem %s10, 4
    %v1633 = vld [vmem:[%s1632] sm:$0xf]
    %v1635 = vsel %vm1579, %v1633, 0
    %1637 = vmatprep.subr.bf16.mxu0 0
    %1638 = vmatpush1.bf16.msra.mxu0 0
    %1639 = vmatprep.subr.bf16.mxu0 0
    %1640 = vmatpush1.bf16.msra.mxu0 0
    %1641 = vmatprep.subr.bf16.mxu0 0
    %1642 = vmatpush1.bf16.msra.mxu0 0
    %1643 = vmatprep.subr.bf16.mxu0 0
    %1644 = vmatpush1.bf16.msra.mxu0 0
    %1645 = vmatprep.subr.bf16.mxu0 0
    %1646 = vmatpush1.bf16.msra.mxu0 0
    %1647 = vmatprep.subr.bf16.mxu0 0
    %1648 = vmatpush1.bf16.msra.mxu0 0
    %1649 = vmatprep.subr.bf16.mxu0 0
    %1650 = vmatpush1.bf16.msra.mxu0 0
    %1651 = vmatprep.subr.bf16.mxu0 0
    %1652 = vmatpush1.bf16.msra.mxu0 %v1577
    %1653 = vmatprep.subr.bf16.mxu0 0
    %1654 = vmatpush2.bf16.msra.mxu0 0
    %1655 = vmatprep.subr.bf16.mxu0 0
    %1656 = vmatpush2.bf16.msra.mxu0 0
    %1657 = vmatprep.subr.bf16.mxu0 0
    %1658 = vmatpush2.bf16.msra.mxu0 0
    %1659 = vmatprep.subr.bf16.mxu0 0
    %1660 = vmatpush2.bf16.msra.mxu0 0
    %1661 = vmatprep.subr.bf16.mxu0 0
    %1662 = vmatpush2.bf16.msra.mxu0 0
    %1663 = vmatprep.subr.bf16.mxu0 0
    %1664 = vmatpush2.bf16.msra.mxu0 0
    %1665 = vmatprep.subr.bf16.mxu0 0
    %1666 = vmatpush2.bf16.msra.mxu0 0
    %1667 = vmatprep.subr.bf16.mxu0 0
    %1668 = vmatpush2.bf16.msra.mxu0 0
    %1669 = vmatprep.mubr.bf16.mxu0 0
    %1670 = vmatmul.mubr.bf16.gmra.mxu0 %v1635
    %v1671 = vpop.f32.mrf.mxu0
    %v1672 = vadd.f32 0.0, %v1671
    %v1673 = vpop.f32.mrf.mxu0
    %v1674 = vpop.f32.mrf.mxu0
    %v1675 = vpop.f32.mrf.mxu0
    %1676 = vdwg.mxu0
    %v1677 = vpack.c.bf16 %v1672, %v1672
    %s1678 = scalar_lea.vmem %s11, 32
    %v1679 = vld [vmem:[%s1678] sm:$0xf]
    %v1680 = vld [vmem:[%s1678 + $0x4] sm:$0xf]
    %v1681 = vld [vmem:[%s1678 + $0x8] sm:$0xf]
    %v1682 = vld [vmem:[%s1678 + $0xc] sm:$0xf]
    %v1683 = vld [vmem:[%s1678 + $0x10] sm:$0xf]
    %v1684 = vld [vmem:[%s1678 + $0x14] sm:$0xf]
    %v1685 = vld [vmem:[%s1678 + $0x18] sm:$0xf]
    %v1686 = vld [vmem:[%s1678 + $0x1c] sm:$0xf]
    %v1695 = vunpack.c.l.b16 %v1679
    %v1696 = vunpack.c.l.b16 %v1680
    %v1697 = vunpack.c.l.b16 %v1681
    %v1698 = vunpack.c.l.b16 %v1682
    %v1699 = vunpack.c.l.b16 %v1683
    %v1700 = vunpack.c.l.b16 %v1684
    %v1701 = vunpack.c.l.b16 %v1685
    %v1702 = vunpack.c.l.b16 %v1686
    %v1703 = vpack.c.b16 %v1696, %v1695
    %v1704 = vpack.c.b16 %v1698, %v1697
    %v1705 = vpack.c.b16 %v1700, %v1699
    %v1706 = vpack.c.b16 %v1702, %v1701
    %v1712 = vsel %vm234, %v1677, 0
    %1714 = vmatprep.subr.bf16.mxu0 0
    %1715 = vmatpush1.bf16.msra.mxu0 0
    %1716 = vmatprep.subr.bf16.mxu0 0
    %1717 = vmatpush1.bf16.msra.mxu0 0
    %1718 = vmatprep.subr.bf16.mxu0 0
    %1719 = vmatpush1.bf16.msra.mxu0 0
    %1720 = vmatprep.subr.bf16.mxu0 0
    %1721 = vmatpush1.bf16.msra.mxu0 0
    %1722 = vmatprep.subr.bf16.mxu0 0
    %1723 = vmatpush1.bf16.msra.mxu0 %v1706
    %1724 = vmatprep.subr.bf16.mxu0 0
    %1725 = vmatpush1.bf16.msra.mxu0 %v1705
    %1726 = vmatprep.subr.bf16.mxu0 0
    %1727 = vmatpush1.bf16.msra.mxu0 %v1704
    %1728 = vmatprep.subr.bf16.mxu0 0
    %1729 = vmatpush1.bf16.msra.mxu0 %v1703
    %1730 = vmatprep.subr.bf16.mxu0 0
    %1731 = vmatpush2.bf16.msra.mxu0 0
    %1732 = vmatprep.subr.bf16.mxu0 0
    %1733 = vmatpush2.bf16.msra.mxu0 0
    %1734 = vmatprep.subr.bf16.mxu0 0
    %1735 = vmatpush2.bf16.msra.mxu0 0
    %1736 = vmatprep.subr.bf16.mxu0 0
    %1737 = vmatpush2.bf16.msra.mxu0 0
    %1738 = vmatprep.subr.bf16.mxu0 0
    %1739 = vmatpush2.bf16.msra.mxu0 0
    %1740 = vmatprep.subr.bf16.mxu0 0
    %1741 = vmatpush2.bf16.msra.mxu0 0
    %1742 = vmatprep.subr.bf16.mxu0 0
    %1743 = vmatpush2.bf16.msra.mxu0 0
    %1744 = vmatprep.subr.bf16.mxu0 0
    %1745 = vmatpush2.bf16.msra.mxu0 0
    %1746 = vmatprep.mubr.bf16.mxu0 0
    %1747 = vmatmul.mubr.bf16.gmra.mxu0 %v1712
    %v1748 = vpop.f32.mrf.mxu0
    %v1749 = vadd.f32 0.0, %v1748
    %v1750 = vpop.f32.mrf.mxu0
    %v1751 = vpop.f32.mrf.mxu0
    %v1752 = vpop.f32.mrf.mxu0
    %1753 = vdwg.mxu0
    %v1762 = vunpack.c.l.b16 %v1624
    %v1763 = vunpack.c.l.b16 %v1625
    %v1764 = vunpack.c.l.b16 %v1626
    %v1765 = vunpack.c.l.b16 %v1627
    %v1766 = vunpack.c.l.b16 %v1628
    %v1767 = vunpack.c.l.b16 %v1629
    %v1768 = vunpack.c.l.b16 %v1630
    %v1769 = vunpack.c.l.b16 %v1631
    %v1770 = vpack.c.b16 %v1763, %v1762
    %v1771 = vpack.c.b16 %v1765, %v1764
    %v1772 = vpack.c.b16 %v1767, %v1766
    %v1773 = vpack.c.b16 %v1769, %v1768
    %v1779 = vsel %vm234, %v1623, 0
    %1781 = vmatprep.subr.bf16.mxu0 0
    %1782 = vmatpush1.bf16.msra.mxu0 0
    %1783 = vmatprep.subr.bf16.mxu0 0
    %1784 = vmatpush1.bf16.msra.mxu0 0
    %1785 = vmatprep.subr.bf16.mxu0 0
    %1786 = vmatpush1.bf16.msra.mxu0 0
    %1787 = vmatprep.subr.bf16.mxu0 0
    %1788 = vmatpush1.bf16.msra.mxu0 0
    %1789 = vmatprep.subr.bf16.mxu0 0
    %1790 = vmatpush1.bf16.msra.mxu0 %v1773
    %1791 = vmatprep.subr.bf16.mxu0 0
    %1792 = vmatpush1.bf16.msra.mxu0 %v1772
    %1793 = vmatprep.subr.bf16.mxu0 0
    %1794 = vmatpush1.bf16.msra.mxu0 %v1771
    %1795 = vmatprep.subr.bf16.mxu0 0
    %1796 = vmatpush1.bf16.msra.mxu0 %v1770
    %1797 = vmatprep.subr.bf16.mxu0 0
    %1798 = vmatpush2.bf16.msra.mxu0 0
    %1799 = vmatprep.subr.bf16.mxu0 0
    %1800 = vmatpush2.bf16.msra.mxu0 0
    %1801 = vmatprep.subr.bf16.mxu0 0
    %1802 = vmatpush2.bf16.msra.mxu0 0
    %1803 = vmatprep.subr.bf16.mxu0 0
    %1804 = vmatpush2.bf16.msra.mxu0 0
    %1805 = vmatprep.subr.bf16.mxu0 0
    %1806 = vmatpush2.bf16.msra.mxu0 0
    %1807 = vmatprep.subr.bf16.mxu0 0
    %1808 = vmatpush2.bf16.msra.mxu0 0
    %1809 = vmatprep.subr.bf16.mxu0 0
    %1810 = vmatpush2.bf16.msra.mxu0 0
    %1811 = vmatprep.subr.bf16.mxu0 0
    %1812 = vmatpush2.bf16.msra.mxu0 0
    %1813 = vmatprep.mubr.bf16.mxu0 0
    %1814 = vmatmul.mubr.bf16.gmra.mxu0 %v1779
    %v1815 = vpop.f32.mrf.mxu0
    %v1816 = vadd.f32 %v1749, %v1815
    %v1817 = vpop.f32.mrf.mxu0
    %v1818 = vpop.f32.mrf.mxu0
    %v1819 = vpop.f32.mrf.mxu0
    %1820 = vdwg.mxu0
    %s1821 = scalar_lea.vmem %s10, 8
    %v1822 = vld [vmem:[%s1821] sm:$0xf]
    %v1824 = vsel %vm1579, %v1822, 0
    %1826 = vmatprep.subr.bf16.mxu0 0
    %1827 = vmatpush1.bf16.msra.mxu0 0
    %1828 = vmatprep.subr.bf16.mxu0 0
    %1829 = vmatpush1.bf16.msra.mxu0 0
    %1830 = vmatprep.subr.bf16.mxu0 0
    %1831 = vmatpush1.bf16.msra.mxu0 0
    %1832 = vmatprep.subr.bf16.mxu0 0
    %1833 = vmatpush1.bf16.msra.mxu0 0
    %1834 = vmatprep.subr.bf16.mxu0 0
    %1835 = vmatpush1.bf16.msra.mxu0 0
    %1836 = vmatprep.subr.bf16.mxu0 0
    %1837 = vmatpush1.bf16.msra.mxu0 0
    %1838 = vmatprep.subr.bf16.mxu0 0
    %1839 = vmatpush1.bf16.msra.mxu0 0
    %1840 = vmatprep.subr.bf16.mxu0 0
    %1841 = vmatpush1.bf16.msra.mxu0 %v1577
    %1842 = vmatprep.subr.bf16.mxu0 0
    %1843 = vmatpush2.bf16.msra.mxu0 0
    %1844 = vmatprep.subr.bf16.mxu0 0
    %1845 = vmatpush2.bf16.msra.mxu0 0
    %1846 = vmatprep.subr.bf16.mxu0 0
    %1847 = vmatpush2.bf16.msra.mxu0 0
    %1848 = vmatprep.subr.bf16.mxu0 0
    %1849 = vmatpush2.bf16.msra.mxu0 0
    %1850 = vmatprep.subr.bf16.mxu0 0
    %1851 = vmatpush2.bf16.msra.mxu0 0
    %1852 = vmatprep.subr.bf16.mxu0 0
    %1853 = vmatpush2.bf16.msra.mxu0 0
    %1854 = vmatprep.subr.bf16.mxu0 0
    %1855 = vmatpush2.bf16.msra.mxu0 0
    %1856 = vmatprep.subr.bf16.mxu0 0
    %1857 = vmatpush2.bf16.msra.mxu0 0
    %1858 = vmatprep.mubr.bf16.mxu0 0
    %1859 = vmatmul.mubr.bf16.gmra.mxu0 %v1824
    %v1860 = vpop.f32.mrf.mxu0
    %v1861 = vadd.f32 0.0, %v1860
    %v1862 = vpop.f32.mrf.mxu0
    %v1863 = vpop.f32.mrf.mxu0
    %v1864 = vpop.f32.mrf.mxu0
    %1865 = vdwg.mxu0
    %v1866 = vpack.c.bf16 %v1861, %v1861
    %s1867 = scalar_lea.vmem %s11, 64
    %v1868 = vld [vmem:[%s1867] sm:$0xf]
    %v1869 = vld [vmem:[%s1867 + $0x4] sm:$0xf]
    %v1870 = vld [vmem:[%s1867 + $0x8] sm:$0xf]
    %v1871 = vld [vmem:[%s1867 + $0xc] sm:$0xf]
    %v1872 = vld [vmem:[%s1867 + $0x10] sm:$0xf]
    %v1873 = vld [vmem:[%s1867 + $0x14] sm:$0xf]
    %v1874 = vld [vmem:[%s1867 + $0x18] sm:$0xf]
    %v1875 = vld [vmem:[%s1867 + $0x1c] sm:$0xf]
    %v1884 = vunpack.c.l.b16 %v1868
    %v1885 = vunpack.c.l.b16 %v1869
    %v1886 = vunpack.c.l.b16 %v1870
    %v1887 = vunpack.c.l.b16 %v1871
    %v1888 = vunpack.c.l.b16 %v1872
    %v1889 = vunpack.c.l.b16 %v1873
    %v1890 = vunpack.c.l.b16 %v1874
    %v1891 = vunpack.c.l.b16 %v1875
    %v1892 = vpack.c.b16 %v1885, %v1884
    %v1893 = vpack.c.b16 %v1887, %v1886
    %v1894 = vpack.c.b16 %v1889, %v1888
    %v1895 = vpack.c.b16 %v1891, %v1890
    %v1901 = vsel %vm234, %v1866, 0
    %1903 = vmatprep.subr.bf16.mxu0 0
    %1904 = vmatpush1.bf16.msra.mxu0 0
    %1905 = vmatprep.subr.bf16.mxu0 0
    %1906 = vmatpush1.bf16.msra.mxu0 0
    %1907 = vmatprep.subr.bf16.mxu0 0
    %1908 = vmatpush1.bf16.msra.mxu0 0
    %1909 = vmatprep.subr.bf16.mxu0 0
    %1910 = vmatpush1.bf16.msra.mxu0 0
    %1911 = vmatprep.subr.bf16.mxu0 0
    %1912 = vmatpush1.bf16.msra.mxu0 %v1895
    %1913 = vmatprep.subr.bf16.mxu0 0
    %1914 = vmatpush1.bf16.msra.mxu0 %v1894
    %1915 = vmatprep.subr.bf16.mxu0 0
    %1916 = vmatpush1.bf16.msra.mxu0 %v1893
    %1917 = vmatprep.subr.bf16.mxu0 0
    %1918 = vmatpush1.bf16.msra.mxu0 %v1892
    %1919 = vmatprep.subr.bf16.mxu0 0
    %1920 = vmatpush2.bf16.msra.mxu0 0
    %1921 = vmatprep.subr.bf16.mxu0 0
    %1922 = vmatpush2.bf16.msra.mxu0 0
    %1923 = vmatprep.subr.bf16.mxu0 0
    %1924 = vmatpush2.bf16.msra.mxu0 0
    %1925 = vmatprep.subr.bf16.mxu0 0
    %1926 = vmatpush2.bf16.msra.mxu0 0
    %1927 = vmatprep.subr.bf16.mxu0 0
    %1928 = vmatpush2.bf16.msra.mxu0 0
    %1929 = vmatprep.subr.bf16.mxu0 0
    %1930 = vmatpush2.bf16.msra.mxu0 0
    %1931 = vmatprep.subr.bf16.mxu0 0
    %1932 = vmatpush2.bf16.msra.mxu0 0
    %1933 = vmatprep.subr.bf16.mxu0 0
    %1934 = vmatpush2.bf16.msra.mxu0 0
    %1935 = vmatprep.mubr.bf16.mxu0 0
    %1936 = vmatmul.mubr.bf16.gmra.mxu0 %v1901
    %v1937 = vpop.f32.mrf.mxu0
    %v1938 = vadd.f32 0.0, %v1937
    %v1939 = vpop.f32.mrf.mxu0
    %v1940 = vpop.f32.mrf.mxu0
    %v1941 = vpop.f32.mrf.mxu0
    %1942 = vdwg.mxu0
    %v1943 = vadd.f32 %v1816, %v1938
    %s1944 = scalar_lea.vmem %s10, 12
    %v1945 = vld [vmem:[%s1944] sm:$0xf]
    %v1947 = vsel %vm1579, %v1945, 0
    %1949 = vmatprep.subr.bf16.mxu0 0
    %1950 = vmatpush1.bf16.msra.mxu0 0
    %1951 = vmatprep.subr.bf16.mxu0 0
    %1952 = vmatpush1.bf16.msra.mxu0 0
    %1953 = vmatprep.subr.bf16.mxu0 0
    %1954 = vmatpush1.bf16.msra.mxu0 0
    %1955 = vmatprep.subr.bf16.mxu0 0
    %1956 = vmatpush1.bf16.msra.mxu0 0
    %1957 = vmatprep.subr.bf16.mxu0 0
    %1958 = vmatpush1.bf16.msra.mxu0 0
    %1959 = vmatprep.subr.bf16.mxu0 0
    %1960 = vmatpush1.bf16.msra.mxu0 0
    %1961 = vmatprep.subr.bf16.mxu0 0
    %1962 = vmatpush1.bf16.msra.mxu0 0
    %1963 = vmatprep.subr.bf16.mxu0 0
    %1964 = vmatpush1.bf16.msra.mxu0 %v1577
    %1965 = vmatprep.subr.bf16.mxu0 0
    %1966 = vmatpush2.bf16.msra.mxu0 0
    %1967 = vmatprep.subr.bf16.mxu0 0
    %1968 = vmatpush2.bf16.msra.mxu0 0
    %1969 = vmatprep.subr.bf16.mxu0 0
    %1970 = vmatpush2.bf16.msra.mxu0 0
    %1971 = vmatprep.subr.bf16.mxu0 0
    %1972 = vmatpush2.bf16.msra.mxu0 0
    %1973 = vmatprep.subr.bf16.mxu0 0
    %1974 = vmatpush2.bf16.msra.mxu0 0
    %1975 = vmatprep.subr.bf16.mxu0 0
    %1976 = vmatpush2.bf16.msra.mxu0 0
    %1977 = vmatprep.subr.bf16.mxu0 0
    %1978 = vmatpush2.bf16.msra.mxu0 0
    %1979 = vmatprep.subr.bf16.mxu0 0
    %1980 = vmatpush2.bf16.msra.mxu0 0
    %1981 = vmatprep.mubr.bf16.mxu0 0
    %1982 = vmatmul.mubr.bf16.gmra.mxu0 %v1947
    %v1983 = vpop.f32.mrf.mxu0
    %v1984 = vadd.f32 0.0, %v1983
    %v1985 = vpop.f32.mrf.mxu0
    %v1986 = vpop.f32.mrf.mxu0
    %v1987 = vpop.f32.mrf.mxu0
    %1988 = vdwg.mxu0
    %v1989 = vpack.c.bf16 %v1984, %v1984
    %s1990 = scalar_lea.vmem %s11, 96
    %v1991 = vld [vmem:[%s1990] sm:$0xf]
    %v1992 = vld [vmem:[%s1990 + $0x4] sm:$0xf]
    %v1993 = vld [vmem:[%s1990 + $0x8] sm:$0xf]
    %v1994 = vld [vmem:[%s1990 + $0xc] sm:$0xf]
    %v1995 = vld [vmem:[%s1990 + $0x10] sm:$0xf]
    %v1996 = vld [vmem:[%s1990 + $0x14] sm:$0xf]
    %v1997 = vld [vmem:[%s1990 + $0x18] sm:$0xf]
    %v1998 = vld [vmem:[%s1990 + $0x1c] sm:$0xf]
    %v2007 = vunpack.c.l.b16 %v1991
    %v2008 = vunpack.c.l.b16 %v1992
    %v2009 = vunpack.c.l.b16 %v1993
    %v2010 = vunpack.c.l.b16 %v1994
    %v2011 = vunpack.c.l.b16 %v1995
    %v2012 = vunpack.c.l.b16 %v1996
    %v2013 = vunpack.c.l.b16 %v1997
    %v2014 = vunpack.c.l.b16 %v1998
    %v2015 = vpack.c.b16 %v2008, %v2007
    %v2016 = vpack.c.b16 %v2010, %v2009
    %v2017 = vpack.c.b16 %v2012, %v2011
    %v2018 = vpack.c.b16 %v2014, %v2013
    %v2024 = vsel %vm234, %v1989, 0
    %2026 = vmatprep.subr.bf16.mxu0 0
    %2027 = vmatpush1.bf16.msra.mxu0 0
    %2028 = vmatprep.subr.bf16.mxu0 0
    %2029 = vmatpush1.bf16.msra.mxu0 0
    %2030 = vmatprep.subr.bf16.mxu0 0
    %2031 = vmatpush1.bf16.msra.mxu0 0
    %2032 = vmatprep.subr.bf16.mxu0 0
    %2033 = vmatpush1.bf16.msra.mxu0 0
    %2034 = vmatprep.subr.bf16.mxu0 0
    %2035 = vmatpush1.bf16.msra.mxu0 %v2018
    %2036 = vmatprep.subr.bf16.mxu0 0
    %2037 = vmatpush1.bf16.msra.mxu0 %v2017
    %2038 = vmatprep.subr.bf16.mxu0 0
    %2039 = vmatpush1.bf16.msra.mxu0 %v2016
    %2040 = vmatprep.subr.bf16.mxu0 0
    %2041 = vmatpush1.bf16.msra.mxu0 %v2015
    %2042 = vmatprep.subr.bf16.mxu0 0
    %2043 = vmatpush2.bf16.msra.mxu0 0
    %2044 = vmatprep.subr.bf16.mxu0 0
    %2045 = vmatpush2.bf16.msra.mxu0 0
    %2046 = vmatprep.subr.bf16.mxu0 0
    %2047 = vmatpush2.bf16.msra.mxu0 0
    %2048 = vmatprep.subr.bf16.mxu0 0
    %2049 = vmatpush2.bf16.msra.mxu0 0
    %2050 = vmatprep.subr.bf16.mxu0 0
    %2051 = vmatpush2.bf16.msra.mxu0 0
    %2052 = vmatprep.subr.bf16.mxu0 0
    %2053 = vmatpush2.bf16.msra.mxu0 0
    %2054 = vmatprep.subr.bf16.mxu0 0
    %2055 = vmatpush2.bf16.msra.mxu0 0
    %2056 = vmatprep.subr.bf16.mxu0 0
    %2057 = vmatpush2.bf16.msra.mxu0 0
    %2058 = vmatprep.mubr.bf16.mxu0 0
    %2059 = vmatmul.mubr.bf16.gmra.mxu0 %v2024
    %v2060 = vpop.f32.mrf.mxu0
    %v2061 = vadd.f32 0.0, %v2060
    %v2062 = vpop.f32.mrf.mxu0
    %v2063 = vpop.f32.mrf.mxu0
    %v2064 = vpop.f32.mrf.mxu0
    %2065 = vdwg.mxu0
    %v2066 = vadd.f32 %v1943, %v2061
    %v2067 = vld [vmem:[#allocation13] sm:$0x1]
    %v2069 = vlaneseq
    %v2070 = vshrl.u32 %v2069, 7
    %v2071 = vsub.s32 0, %v2070
    %v2072 = vrot.slane %v2067, %v2071
    %v2074 = vadd.f32 %v2066, %v2072
    %v2075 = vld [vmem:[#allocation16] sm:$0xff]
    %v2076 = vld [vmem:[#allocation16 + $0x8] sm:$0xff]
    %v2077 = vld [vmem:[#allocation16 + $0x10] sm:$0xff]
    %v2078 = vld [vmem:[#allocation16 + $0x18] sm:$0xff]
    %v2079 = vld [vmem:[#allocation16 + $0x20] sm:$0xff]
    %v2080 = vld [vmem:[#allocation16 + $0x28] sm:$0xff]
    %v2081 = vld [vmem:[#allocation16 + $0x30] sm:$0xff]
    %v2082 = vld [vmem:[#allocation16 + $0x38] sm:$0xff]
    %v2084 = vsel %vm234, %v2074, 0
    %2086 = vmatprep.subr.mxu0 0.0
    %2087 = vmatpush1.msra.mxu0 0.0
    %2088 = vmatprep.subr.mxu0 0.0
    %2089 = vmatpush1.msra.mxu0 0.0
    %2090 = vmatprep.subr.mxu0 0.0
    %2091 = vmatpush1.msra.mxu0 0.0
    %2092 = vmatprep.subr.mxu0 0.0
    %2093 = vmatpush1.msra.mxu0 0.0
    %2094 = vmatprep.subr.mxu0 0.0
    %2095 = vmatpush1.msra.mxu0 0.0
    %2096 = vmatprep.subr.mxu0 0.0
    %2097 = vmatpush1.msra.mxu0 0.0
    %2098 = vmatprep.subr.mxu0 0.0
    %2099 = vmatpush1.msra.mxu0 0.0
    %2100 = vmatprep.subr.mxu0 0.0
    %2101 = vmatpush1.msra.mxu0 0.0
    %2102 = vmatprep.subr.mxu0 0.0
    %2103 = vmatpush1.msra.mxu0 %v2082
    %2104 = vmatprep.subr.mxu0 0.0
    %2105 = vmatpush1.msra.mxu0 %v2081
    %2106 = vmatprep.subr.mxu0 0.0
    %2107 = vmatpush1.msra.mxu0 %v2080
    %2108 = vmatprep.subr.mxu0 0.0
    %2109 = vmatpush1.msra.mxu0 %v2079
    %2110 = vmatprep.subr.mxu0 0.0
    %2111 = vmatpush1.msra.mxu0 %v2078
    %2112 = vmatprep.subr.mxu0 0.0
    %2113 = vmatpush1.msra.mxu0 %v2077
    %2114 = vmatprep.subr.mxu0 0.0
    %2115 = vmatpush1.msra.mxu0 %v2076
    %2116 = vmatprep.subr.mxu0 0.0
    %2117 = vmatpush1.msra.mxu0 %v2075
    %2118 = vmatprep.subr.mxu0 0.0
    %2119 = vmatpush2.msra.mxu0 0.0
    %2120 = vmatprep.subr.mxu0 0.0
    %2121 = vmatpush2.msra.mxu0 0.0
    %2122 = vmatprep.subr.mxu0 0.0
    %2123 = vmatpush2.msra.mxu0 0.0
    %2124 = vmatprep.subr.mxu0 0.0
    %2125 = vmatpush2.msra.mxu0 0.0
    %2126 = vmatprep.subr.mxu0 0.0
    %2127 = vmatpush2.msra.mxu0 0.0
    %2128 = vmatprep.subr.mxu0 0.0
    %2129 = vmatpush2.msra.mxu0 0.0
    %2130 = vmatprep.subr.mxu0 0.0
    %2131 = vmatpush2.msra.mxu0 0.0
    %2132 = vmatprep.subr.mxu0 0.0
    %2133 = vmatpush2.msra.mxu0 0.0
    %2134 = vmatprep.subr.mxu0 0.0
    %2135 = vmatpush2.msra.mxu0 0.0
    %2136 = vmatprep.subr.mxu0 0.0
    %2137 = vmatpush2.msra.mxu0 0.0
    %2138 = vmatprep.subr.mxu0 0.0
    %2139 = vmatpush2.msra.mxu0 0.0
    %2140 = vmatprep.subr.mxu0 0.0
    %2141 = vmatpush2.msra.mxu0 0.0
    %2142 = vmatprep.subr.mxu0 0.0
    %2143 = vmatpush2.msra.mxu0 0.0
    %2144 = vmatprep.subr.mxu0 0.0
    %2145 = vmatpush2.msra.mxu0 0.0
    %2146 = vmatprep.subr.mxu0 0.0
    %2147 = vmatpush2.msra.mxu0 0.0
    %2148 = vmatprep.subr.mxu0 0.0
    %2149 = vmatpush2.msra.mxu0 0.0
    %2150 = vmatprep.mubr.f32.mxu0 0.0
    %2151 = vmatmul.mubr.f32.gmra.mxu0 %v2084
    %v2152 = vpop.f32.mrf.mxu0
    %v2153 = vadd.f32 0.0, %v2152
    %v2154 = vpop.f32.mrf.mxu0
    %2155 = vdwg.mxu0
    %v2156 = vsel %vm234, %v2153, 0.0
    %v2157 = vrot.slane %v2156, 4
    %v2158 = vadd.f32 %v2156, %v2157
    %v2159 = vrot.slane %v2158, 2
    %v2160 = vadd.f32 %v2158, %v2159
    %v2161 = vrot.slane %v2160, 1
    %v2162 = vadd.f32 %v2160, %v2161
    %v2163 = vrcp.pop 8.0
    %v2164 = vmul.f32 %v2162, %v2163
    %v2165 = vsub.f32 %v2074, %v2164
    %v2166 = vmul.f32 %v2165, %v2165
    %v2168 = vsel %vm234, %v2166, 0
    %2170 = vmatprep.subr.mxu0 0.0
    %2171 = vmatpush1.msra.mxu0 0.0
    %2172 = vmatprep.subr.mxu0 0.0
    %2173 = vmatpush1.msra.mxu0 0.0
    %2174 = vmatprep.subr.mxu0 0.0
    %2175 = vmatpush1.msra.mxu0 0.0
    %2176 = vmatprep.subr.mxu0 0.0
    %2177 = vmatpush1.msra.mxu0 0.0
    %2178 = vmatprep.subr.mxu0 0.0
    %2179 = vmatpush1.msra.mxu0 0.0
    %2180 = vmatprep.subr.mxu0 0.0
    %2181 = vmatpush1.msra.mxu0 0.0
    %2182 = vmatprep.subr.mxu0 0.0
    %2183 = vmatpush1.msra.mxu0 0.0
    %2184 = vmatprep.subr.mxu0 0.0
    %2185 = vmatpush1.msra.mxu0 0.0
    %2186 = vmatprep.subr.mxu0 0.0
    %2187 = vmatpush1.msra.mxu0 %v2082
    %2188 = vmatprep.subr.mxu0 0.0
    %2189 = vmatpush1.msra.mxu0 %v2081
    %2190 = vmatprep.subr.mxu0 0.0
    %2191 = vmatpush1.msra.mxu0 %v2080
    %2192 = vmatprep.subr.mxu0 0.0
    %2193 = vmatpush1.msra.mxu0 %v2079
    %2194 = vmatprep.subr.mxu0 0.0
    %2195 = vmatpush1.msra.mxu0 %v2078
    %2196 = vmatprep.subr.mxu0 0.0
    %2197 = vmatpush1.msra.mxu0 %v2077
    %2198 = vmatprep.subr.mxu0 0.0
    %2199 = vmatpush1.msra.mxu0 %v2076
    %2200 = vmatprep.subr.mxu0 0.0
    %2201 = vmatpush1.msra.mxu0 %v2075
    %2202 = vmatprep.subr.mxu0 0.0
    %2203 = vmatpush2.msra.mxu0 0.0
    %2204 = vmatprep.subr.mxu0 0.0
    %2205 = vmatpush2.msra.mxu0 0.0
    %2206 = vmatprep.subr.mxu0 0.0
    %2207 = vmatpush2.msra.mxu0 0.0
    %2208 = vmatprep.subr.mxu0 0.0
    %2209 = vmatpush2.msra.mxu0 0.0
    %2210 = vmatprep.subr.mxu0 0.0
    %2211 = vmatpush2.msra.mxu0 0.0
    %2212 = vmatprep.subr.mxu0 0.0
    %2213 = vmatpush2.msra.mxu0 0.0
    %2214 = vmatprep.subr.mxu0 0.0
    %2215 = vmatpush2.msra.mxu0 0.0
    %2216 = vmatprep.subr.mxu0 0.0
    %2217 = vmatpush2.msra.mxu0 0.0
    %2218 = vmatprep.subr.mxu0 0.0
    %2219 = vmatpush2.msra.mxu0 0.0
    %2220 = vmatprep.subr.mxu0 0.0
    %2221 = vmatpush2.msra.mxu0 0.0
    %2222 = vmatprep.subr.mxu0 0.0
    %2223 = vmatpush2.msra.mxu0 0.0
    %2224 = vmatprep.subr.mxu0 0.0
    %2225 = vmatpush2.msra.mxu0 0.0
    %2226 = vmatprep.subr.mxu0 0.0
    %2227 = vmatpush2.msra.mxu0 0.0
    %2228 = vmatprep.subr.mxu0 0.0
    %2229 = vmatpush2.msra.mxu0 0.0
    %2230 = vmatprep.subr.mxu0 0.0
    %2231 = vmatpush2.msra.mxu0 0.0
    %2232 = vmatprep.subr.mxu0 0.0
    %2233 = vmatpush2.msra.mxu0 0.0
    %2234 = vmatprep.mubr.f32.mxu0 0.0
    %2235 = vmatmul.mubr.f32.gmra.mxu0 %v2168
    %v2236 = vpop.f32.mrf.mxu0
    %v2237 = vadd.f32 0.0, %v2236
    %v2238 = vpop.f32.mrf.mxu0
    %2239 = vdwg.mxu0
    %v2240 = vsel %vm234, %v2237, 0.0
    %v2241 = vrot.slane %v2240, 4
    %v2242 = vadd.f32 %v2240, %v2241
    %v2243 = vrot.slane %v2242, 2
    %v2244 = vadd.f32 %v2242, %v2243
    %v2245 = vrot.slane %v2244, 1
    %v2246 = vadd.f32 %v2244, %v2245
    %v2247 = vmul.f32 %v2246, %v2163
    %v2248 = vld [vmem:[%s13] sm:$0x1]
    %v2249 = vadd.f32 %v2247, 1e-05
    %v2250 = vrsqrt.pop %v2249
    %v2251 = vmul.f32 %v2165, %v2250
    %v2253 = vlaneseq
    %v2254 = vshrl.u32 %v2253, 7
    %v2255 = vsub.s32 0, %v2254
    %v2256 = vrot.slane %v2248, %v2255
    %v2258 = vmul.f32 %v2256, %v2251
    %v2259 = vld [vmem:[#allocation14] sm:$0x1]
    %v2261 = vlaneseq
    %v2262 = vshrl.u32 %v2261, 7
    %v2263 = vsub.s32 0, %v2262
    %v2264 = vrot.slane %v2259, %v2263
    %v2266 = vadd.f32 %v2258, %v2264
    %v2267 = vmul.f32 %v2266, 0.2
    %v2268 = vmax.f32 %v2266, %v2267
    %v2269 = vpack.c.bf16 %v2268, %v2268
    %v2270 = vld [vmem:[%s16] sm:$0x1]
    %vm2271 = vcmask 64512
    %v2273 = vsel %vm2271, %v2270, 0
    %vm2275 = vcmask 1043456
    %v2277 = vsel %vm2275, %v2269, 0
    %2279 = vmatprep.subr.bf16.mxu0 0
    %2280 = vmatpush1.bf16.msra.mxu0 0
    %2281 = vmatprep.subr.bf16.mxu0 0
    %2282 = vmatpush1.bf16.msra.mxu0 0
    %2283 = vmatprep.subr.bf16.mxu0 0
    %2284 = vmatpush1.bf16.msra.mxu0 0
    %2285 = vmatprep.subr.bf16.mxu0 0
    %2286 = vmatpush1.bf16.msra.mxu0 0
    %2287 = vmatprep.subr.bf16.mxu0 0
    %2288 = vmatpush1.bf16.msra.mxu0 0
    %2289 = vmatprep.subr.bf16.mxu0 0
    %2290 = vmatpush1.bf16.msra.mxu0 0
    %2291 = vmatprep.subr.bf16.mxu0 0
    %2292 = vmatpush1.bf16.msra.mxu0 0
    %2293 = vmatprep.subr.bf16.mxu0 0
    %2294 = vmatpush1.bf16.msra.mxu0 %v2277
    %2295 = vmatprep.subr.bf16.mxu0 0
    %2296 = vmatpush2.bf16.msra.mxu0 0
    %2297 = vmatprep.subr.bf16.mxu0 0
    %2298 = vmatpush2.bf16.msra.mxu0 0
    %2299 = vmatprep.subr.bf16.mxu0 0
    %2300 = vmatpush2.bf16.msra.mxu0 0
    %2301 = vmatprep.subr.bf16.mxu0 0
    %2302 = vmatpush2.bf16.msra.mxu0 0
    %2303 = vmatprep.subr.bf16.mxu0 0
    %2304 = vmatpush2.bf16.msra.mxu0 0
    %2305 = vmatprep.subr.bf16.mxu0 0
    %2306 = vmatpush2.bf16.msra.mxu0 0
    %2307 = vmatprep.subr.bf16.mxu0 0
    %2308 = vmatpush2.bf16.msra.mxu0 0
    %2309 = vmatprep.subr.bf16.mxu0 0
    %2310 = vmatpush2.bf16.msra.mxu0 0
    %2311 = vmatprep.mubr.bf16.mxu0 0
    %2312 = vmatmul.mubr.bf16.gmra.mxu0 %v2273
    %v2313 = vpop.f32.mrf.mxu0
    %v2314 = vadd.f32 0.0, %v2313
    %v2315 = vpop.f32.mrf.mxu0
    %v2316 = vpop.f32.mrf.mxu0
    %v2317 = vpop.f32.mrf.mxu0
    %2318 = vdwg.mxu0
    %v2319 = vpack.c.bf16 %v2314, %v2314
    %v2320 = vld [vmem:[%s17] sm:$0xf]
    %v2321 = vld [vmem:[%s17 + $0x4] sm:$0xf]
    %v2322 = vld [vmem:[%s17 + $0x8] sm:$0xf]
    %v2323 = vld [vmem:[%s17 + $0xc] sm:$0xf]
    %v2324 = vld [vmem:[%s17 + $0x10] sm:$0xf]
    %v2325 = vld [vmem:[%s17 + $0x14] sm:$0xf]
    %v2326 = vld [vmem:[%s17 + $0x18] sm:$0xf]
    %v2327 = vld [vmem:[%s17 + $0x1c] sm:$0xf]
    %s2328 = scalar_lea.vmem %s16, 1
    %v2329 = vld [vmem:[%s2328] sm:$0x1]
    %v2331 = vsel %vm2271, %v2329, 0
    %2333 = vmatprep.subr.bf16.mxu0 0
    %2334 = vmatpush1.bf16.msra.mxu0 0
    %2335 = vmatprep.subr.bf16.mxu0 0
    %2336 = vmatpush1.bf16.msra.mxu0 0
    %2337 = vmatprep.subr.bf16.mxu0 0
    %2338 = vmatpush1.bf16.msra.mxu0 0
    %2339 = vmatprep.subr.bf16.mxu0 0
    %2340 = vmatpush1.bf16.msra.mxu0 0
    %2341 = vmatprep.subr.bf16.mxu0 0
    %2342 = vmatpush1.bf16.msra.mxu0 0
    %2343 = vmatprep.subr.bf16.mxu0 0
    %2344 = vmatpush1.bf16.msra.mxu0 0
    %2345 = vmatprep.subr.bf16.mxu0 0
    %2346 = vmatpush1.bf16.msra.mxu0 0
    %2347 = vmatprep.subr.bf16.mxu0 0
    %2348 = vmatpush1.bf16.msra.mxu0 %v2277
    %2349 = vmatprep.subr.bf16.mxu0 0
    %2350 = vmatpush2.bf16.msra.mxu0 0
    %2351 = vmatprep.subr.bf16.mxu0 0
    %2352 = vmatpush2.bf16.msra.mxu0 0
    %2353 = vmatprep.subr.bf16.mxu0 0
    %2354 = vmatpush2.bf16.msra.mxu0 0
    %2355 = vmatprep.subr.bf16.mxu0 0
    %2356 = vmatpush2.bf16.msra.mxu0 0
    %2357 = vmatprep.subr.bf16.mxu0 0
    %2358 = vmatpush2.bf16.msra.mxu0 0
    %2359 = vmatprep.subr.bf16.mxu0 0
    %2360 = vmatpush2.bf16.msra.mxu0 0
    %2361 = vmatprep.subr.bf16.mxu0 0
    %2362 = vmatpush2.bf16.msra.mxu0 0
    %2363 = vmatprep.subr.bf16.mxu0 0
    %2364 = vmatpush2.bf16.msra.mxu0 0
    %2365 = vmatprep.mubr.bf16.mxu0 0
    %2366 = vmatmul.mubr.bf16.gmra.mxu0 %v2331
    %v2367 = vpop.f32.mrf.mxu0
    %v2368 = vadd.f32 0.0, %v2367
    %v2369 = vpop.f32.mrf.mxu0
    %v2370 = vpop.f32.mrf.mxu0
    %v2371 = vpop.f32.mrf.mxu0
    %2372 = vdwg.mxu0
    %v2373 = vpack.c.bf16 %v2368, %v2368
    %s2374 = scalar_lea.vmem %s17, 32
    %v2375 = vld [vmem:[%s2374] sm:$0xf]
    %v2376 = vld [vmem:[%s2374 + $0x4] sm:$0xf]
    %v2377 = vld [vmem:[%s2374 + $0x8] sm:$0xf]
    %v2378 = vld [vmem:[%s2374 + $0xc] sm:$0xf]
    %v2379 = vld [vmem:[%s2374 + $0x10] sm:$0xf]
    %v2380 = vld [vmem:[%s2374 + $0x14] sm:$0xf]
    %v2381 = vld [vmem:[%s2374 + $0x18] sm:$0xf]
    %v2382 = vld [vmem:[%s2374 + $0x1c] sm:$0xf]
    %v2391 = vunpack.c.l.b16 %v2375
    %v2392 = vunpack.c.l.b16 %v2376
    %v2393 = vunpack.c.l.b16 %v2377
    %v2394 = vunpack.c.l.b16 %v2378
    %v2395 = vunpack.c.l.b16 %v2379
    %v2396 = vunpack.c.l.b16 %v2380
    %v2397 = vunpack.c.l.b16 %v2381
    %v2398 = vunpack.c.l.b16 %v2382
    %v2399 = vpack.c.b16 %v2392, %v2391
    %v2400 = vpack.c.b16 %v2394, %v2393
    %v2401 = vpack.c.b16 %v2396, %v2395
    %v2402 = vpack.c.b16 %v2398, %v2397
    %v2408 = vsel %vm234, %v2373, 0
    %2410 = vmatprep.subr.bf16.mxu0 0
    %2411 = vmatpush1.bf16.msra.mxu0 0
    %2412 = vmatprep.subr.bf16.mxu0 0
    %2413 = vmatpush1.bf16.msra.mxu0 0
    %2414 = vmatprep.subr.bf16.mxu0 0
    %2415 = vmatpush1.bf16.msra.mxu0 0
    %2416 = vmatprep.subr.bf16.mxu0 0
    %2417 = vmatpush1.bf16.msra.mxu0 0
    %2418 = vmatprep.subr.bf16.mxu0 0
    %2419 = vmatpush1.bf16.msra.mxu0 %v2402
    %2420 = vmatprep.subr.bf16.mxu0 0
    %2421 = vmatpush1.bf16.msra.mxu0 %v2401
    %2422 = vmatprep.subr.bf16.mxu0 0
    %2423 = vmatpush1.bf16.msra.mxu0 %v2400
    %2424 = vmatprep.subr.bf16.mxu0 0
    %2425 = vmatpush1.bf16.msra.mxu0 %v2399
    %2426 = vmatprep.subr.bf16.mxu0 0
    %2427 = vmatpush2.bf16.msra.mxu0 0
    %2428 = vmatprep.subr.bf16.mxu0 0
    %2429 = vmatpush2.bf16.msra.mxu0 0
    %2430 = vmatprep.subr.bf16.mxu0 0
    %2431 = vmatpush2.bf16.msra.mxu0 0
    %2432 = vmatprep.subr.bf16.mxu0 0
    %2433 = vmatpush2.bf16.msra.mxu0 0
    %2434 = vmatprep.subr.bf16.mxu0 0
    %2435 = vmatpush2.bf16.msra.mxu0 0
    %2436 = vmatprep.subr.bf16.mxu0 0
    %2437 = vmatpush2.bf16.msra.mxu0 0
    %2438 = vmatprep.subr.bf16.mxu0 0
    %2439 = vmatpush2.bf16.msra.mxu0 0
    %2440 = vmatprep.subr.bf16.mxu0 0
    %2441 = vmatpush2.bf16.msra.mxu0 0
    %2442 = vmatprep.mubr.bf16.mxu0 0
    %2443 = vmatmul.mubr.bf16.gmra.mxu0 %v2408
    %v2444 = vpop.f32.mrf.mxu0
    %v2445 = vadd.f32 0.0, %v2444
    %v2446 = vpop.f32.mrf.mxu0
    %v2447 = vpop.f32.mrf.mxu0
    %v2448 = vpop.f32.mrf.mxu0
    %2449 = vdwg.mxu0
    %v2458 = vunpack.c.l.b16 %v2320
    %v2459 = vunpack.c.l.b16 %v2321
    %v2460 = vunpack.c.l.b16 %v2322
    %v2461 = vunpack.c.l.b16 %v2323
    %v2462 = vunpack.c.l.b16 %v2324
    %v2463 = vunpack.c.l.b16 %v2325
    %v2464 = vunpack.c.l.b16 %v2326
    %v2465 = vunpack.c.l.b16 %v2327
    %v2466 = vpack.c.b16 %v2459, %v2458
    %v2467 = vpack.c.b16 %v2461, %v2460
    %v2468 = vpack.c.b16 %v2463, %v2462
    %v2469 = vpack.c.b16 %v2465, %v2464
    %v2475 = vsel %vm234, %v2319, 0
    %2477 = vmatprep.subr.bf16.mxu0 0
    %2478 = vmatpush1.bf16.msra.mxu0 0
    %2479 = vmatprep.subr.bf16.mxu0 0
    %2480 = vmatpush1.bf16.msra.mxu0 0
    %2481 = vmatprep.subr.bf16.mxu0 0
    %2482 = vmatpush1.bf16.msra.mxu0 0
    %2483 = vmatprep.subr.bf16.mxu0 0
    %2484 = vmatpush1.bf16.msra.mxu0 0
    %2485 = vmatprep.subr.bf16.mxu0 0
    %2486 = vmatpush1.bf16.msra.mxu0 %v2469
    %2487 = vmatprep.subr.bf16.mxu0 0
    %2488 = vmatpush1.bf16.msra.mxu0 %v2468
    %2489 = vmatprep.subr.bf16.mxu0 0
    %2490 = vmatpush1.bf16.msra.mxu0 %v2467
    %2491 = vmatprep.subr.bf16.mxu0 0
    %2492 = vmatpush1.bf16.msra.mxu0 %v2466
    %2493 = vmatprep.subr.bf16.mxu0 0
    %2494 = vmatpush2.bf16.msra.mxu0 0
    %2495 = vmatprep.subr.bf16.mxu0 0
    %2496 = vmatpush2.bf16.msra.mxu0 0
    %2497 = vmatprep.subr.bf16.mxu0 0
    %2498 = vmatpush2.bf16.msra.mxu0 0
    %2499 = vmatprep.subr.bf16.mxu0 0
    %2500 = vmatpush2.bf16.msra.mxu0 0
    %2501 = vmatprep.subr.bf16.mxu0 0
    %2502 = vmatpush2.bf16.msra.mxu0 0
    %2503 = vmatprep.subr.bf16.mxu0 0
    %2504 = vmatpush2.bf16.msra.mxu0 0
    %2505 = vmatprep.subr.bf16.mxu0 0
    %2506 = vmatpush2.bf16.msra.mxu0 0
    %2507 = vmatprep.subr.bf16.mxu0 0
    %2508 = vmatpush2.bf16.msra.mxu0 0
    %2509 = vmatprep.mubr.bf16.mxu0 0
    %2510 = vmatmul.mubr.bf16.gmra.mxu0 %v2475
    %v2511 = vpop.f32.mrf.mxu0
    %v2512 = vadd.f32 %v2445, %v2511
    %v2513 = vpop.f32.mrf.mxu0
    %v2514 = vpop.f32.mrf.mxu0
    %v2515 = vpop.f32.mrf.mxu0
    %2516 = vdwg.mxu0
    %s2517 = scalar_lea.vmem %s16, 2
    %v2518 = vld [vmem:[%s2517] sm:$0x1]
    %v2520 = vsel %vm2271, %v2518, 0
    %2522 = vmatprep.subr.bf16.mxu0 0
    %2523 = vmatpush1.bf16.msra.mxu0 0
    %2524 = vmatprep.subr.bf16.mxu0 0
    %2525 = vmatpush1.bf16.msra.mxu0 0
    %2526 = vmatprep.subr.bf16.mxu0 0
    %2527 = vmatpush1.bf16.msra.mxu0 0
    %2528 = vmatprep.subr.bf16.mxu0 0
    %2529 = vmatpush1.bf16.msra.mxu0 0
    %2530 = vmatprep.subr.bf16.mxu0 0
    %2531 = vmatpush1.bf16.msra.mxu0 0
    %2532 = vmatprep.subr.bf16.mxu0 0
    %2533 = vmatpush1.bf16.msra.mxu0 0
    %2534 = vmatprep.subr.bf16.mxu0 0
    %2535 = vmatpush1.bf16.msra.mxu0 0
    %2536 = vmatprep.subr.bf16.mxu0 0
    %2537 = vmatpush1.bf16.msra.mxu0 %v2277
    %2538 = vmatprep.subr.bf16.mxu0 0
    %2539 = vmatpush2.bf16.msra.mxu0 0
    %2540 = vmatprep.subr.bf16.mxu0 0
    %2541 = vmatpush2.bf16.msra.mxu0 0
    %2542 = vmatprep.subr.bf16.mxu0 0
    %2543 = vmatpush2.bf16.msra.mxu0 0
    %2544 = vmatprep.subr.bf16.mxu0 0
    %2545 = vmatpush2.bf16.msra.mxu0 0
    %2546 = vmatprep.subr.bf16.mxu0 0
    %2547 = vmatpush2.bf16.msra.mxu0 0
    %2548 = vmatprep.subr.bf16.mxu0 0
    %2549 = vmatpush2.bf16.msra.mxu0 0
    %2550 = vmatprep.subr.bf16.mxu0 0
    %2551 = vmatpush2.bf16.msra.mxu0 0
    %2552 = vmatprep.subr.bf16.mxu0 0
    %2553 = vmatpush2.bf16.msra.mxu0 0
    %2554 = vmatprep.mubr.bf16.mxu0 0
    %2555 = vmatmul.mubr.bf16.gmra.mxu0 %v2520
    %v2556 = vpop.f32.mrf.mxu0
    %v2557 = vadd.f32 0.0, %v2556
    %v2558 = vpop.f32.mrf.mxu0
    %v2559 = vpop.f32.mrf.mxu0
    %v2560 = vpop.f32.mrf.mxu0
    %2561 = vdwg.mxu0
    %v2562 = vpack.c.bf16 %v2557, %v2557
    %s2563 = scalar_lea.vmem %s17, 64
    %v2564 = vld [vmem:[%s2563] sm:$0xf]
    %v2565 = vld [vmem:[%s2563 + $0x4] sm:$0xf]
    %v2566 = vld [vmem:[%s2563 + $0x8] sm:$0xf]
    %v2567 = vld [vmem:[%s2563 + $0xc] sm:$0xf]
    %v2568 = vld [vmem:[%s2563 + $0x10] sm:$0xf]
    %v2569 = vld [vmem:[%s2563 + $0x14] sm:$0xf]
    %v2570 = vld [vmem:[%s2563 + $0x18] sm:$0xf]
    %v2571 = vld [vmem:[%s2563 + $0x1c] sm:$0xf]
    %v2580 = vunpack.c.l.b16 %v2564
    %v2581 = vunpack.c.l.b16 %v2565
    %v2582 = vunpack.c.l.b16 %v2566
    %v2583 = vunpack.c.l.b16 %v2567
    %v2584 = vunpack.c.l.b16 %v2568
    %v2585 = vunpack.c.l.b16 %v2569
    %v2586 = vunpack.c.l.b16 %v2570
    %v2587 = vunpack.c.l.b16 %v2571
    %v2588 = vpack.c.b16 %v2581, %v2580
    %v2589 = vpack.c.b16 %v2583, %v2582
    %v2590 = vpack.c.b16 %v2585, %v2584
    %v2591 = vpack.c.b16 %v2587, %v2586
    %v2597 = vsel %vm234, %v2562, 0
    %2599 = vmatprep.subr.bf16.mxu0 0
    %2600 = vmatpush1.bf16.msra.mxu0 0
    %2601 = vmatprep.subr.bf16.mxu0 0
    %2602 = vmatpush1.bf16.msra.mxu0 0
    %2603 = vmatprep.subr.bf16.mxu0 0
    %2604 = vmatpush1.bf16.msra.mxu0 0
    %2605 = vmatprep.subr.bf16.mxu0 0
    %2606 = vmatpush1.bf16.msra.mxu0 0
    %2607 = vmatprep.subr.bf16.mxu0 0
    %2608 = vmatpush1.bf16.msra.mxu0 %v2591
    %2609 = vmatprep.subr.bf16.mxu0 0
    %2610 = vmatpush1.bf16.msra.mxu0 %v2590
    %2611 = vmatprep.subr.bf16.mxu0 0
    %2612 = vmatpush1.bf16.msra.mxu0 %v2589
    %2613 = vmatprep.subr.bf16.mxu0 0
    %2614 = vmatpush1.bf16.msra.mxu0 %v2588
    %2615 = vmatprep.subr.bf16.mxu0 0
    %2616 = vmatpush2.bf16.msra.mxu0 0
    %2617 = vmatprep.subr.bf16.mxu0 0
    %2618 = vmatpush2.bf16.msra.mxu0 0
    %2619 = vmatprep.subr.bf16.mxu0 0
    %2620 = vmatpush2.bf16.msra.mxu0 0
    %2621 = vmatprep.subr.bf16.mxu0 0
    %2622 = vmatpush2.bf16.msra.mxu0 0
    %2623 = vmatprep.subr.bf16.mxu0 0
    %2624 = vmatpush2.bf16.msra.mxu0 0
    %2625 = vmatprep.subr.bf16.mxu0 0
    %2626 = vmatpush2.bf16.msra.mxu0 0
    %2627 = vmatprep.subr.bf16.mxu0 0
    %2628 = vmatpush2.bf16.msra.mxu0 0
    %2629 = vmatprep.subr.bf16.mxu0 0
    %2630 = vmatpush2.bf16.msra.mxu0 0
    %2631 = vmatprep.mubr.bf16.mxu0 0
    %2632 = vmatmul.mubr.bf16.gmra.mxu0 %v2597
    %v2633 = vpop.f32.mrf.mxu0
    %v2634 = vadd.f32 0.0, %v2633
    %v2635 = vpop.f32.mrf.mxu0
    %v2636 = vpop.f32.mrf.mxu0
    %v2637 = vpop.f32.mrf.mxu0
    %2638 = vdwg.mxu0
    %v2639 = vadd.f32 %v2512, %v2634
    %s2640 = scalar_lea.vmem %s16, 3
    %v2641 = vld [vmem:[%s2640] sm:$0x1]
    %v2643 = vsel %vm2271, %v2641, 0
    %2645 = vmatprep.subr.bf16.mxu0 0
    %2646 = vmatpush1.bf16.msra.mxu0 0
    %2647 = vmatprep.subr.bf16.mxu0 0
    %2648 = vmatpush1.bf16.msra.mxu0 0
    %2649 = vmatprep.subr.bf16.mxu0 0
    %2650 = vmatpush1.bf16.msra.mxu0 0
    %2651 = vmatprep.subr.bf16.mxu0 0
    %2652 = vmatpush1.bf16.msra.mxu0 0
    %2653 = vmatprep.subr.bf16.mxu0 0
    %2654 = vmatpush1.bf16.msra.mxu0 0
    %2655 = vmatprep.subr.bf16.mxu0 0
    %2656 = vmatpush1.bf16.msra.mxu0 0
    %2657 = vmatprep.subr.bf16.mxu0 0
    %2658 = vmatpush1.bf16.msra.mxu0 0
    %2659 = vmatprep.subr.bf16.mxu0 0
    %2660 = vmatpush1.bf16.msra.mxu0 %v2277
    %2661 = vmatprep.subr.bf16.mxu0 0
    %2662 = vmatpush2.bf16.msra.mxu0 0
    %2663 = vmatprep.subr.bf16.mxu0 0
    %2664 = vmatpush2.bf16.msra.mxu0 0
    %2665 = vmatprep.subr.bf16.mxu0 0
    %2666 = vmatpush2.bf16.msra.mxu0 0
    %2667 = vmatprep.subr.bf16.mxu0 0
    %2668 = vmatpush2.bf16.msra.mxu0 0
    %2669 = vmatprep.subr.bf16.mxu0 0
    %2670 = vmatpush2.bf16.msra.mxu0 0
    %2671 = vmatprep.subr.bf16.mxu0 0
    %2672 = vmatpush2.bf16.msra.mxu0 0
    %2673 = vmatprep.subr.bf16.mxu0 0
    %2674 = vmatpush2.bf16.msra.mxu0 0
    %2675 = vmatprep.subr.bf16.mxu0 0
    %2676 = vmatpush2.bf16.msra.mxu0 0
    %2677 = vmatprep.mubr.bf16.mxu0 0
    %2678 = vmatmul.mubr.bf16.gmra.mxu0 %v2643
    %v2679 = vpop.f32.mrf.mxu0
    %v2680 = vadd.f32 0.0, %v2679
    %v2681 = vpop.f32.mrf.mxu0
    %v2682 = vpop.f32.mrf.mxu0
    %v2683 = vpop.f32.mrf.mxu0
    %2684 = vdwg.mxu0
    %v2685 = vpack.c.bf16 %v2680, %v2680
    %s2686 = scalar_lea.vmem %s17, 96
    %v2687 = vld [vmem:[%s2686] sm:$0xf]
    %v2688 = vld [vmem:[%s2686 + $0x4] sm:$0xf]
    %v2689 = vld [vmem:[%s2686 + $0x8] sm:$0xf]
    %v2690 = vld [vmem:[%s2686 + $0xc] sm:$0xf]
    %v2691 = vld [vmem:[%s2686 + $0x10] sm:$0xf]
    %v2692 = vld [vmem:[%s2686 + $0x14] sm:$0xf]
    %v2693 = vld [vmem:[%s2686 + $0x18] sm:$0xf]
    %v2694 = vld [vmem:[%s2686 + $0x1c] sm:$0xf]
    %v2703 = vunpack.c.l.b16 %v2687
    %v2704 = vunpack.c.l.b16 %v2688
    %v2705 = vunpack.c.l.b16 %v2689
    %v2706 = vunpack.c.l.b16 %v2690
    %v2707 = vunpack.c.l.b16 %v2691
    %v2708 = vunpack.c.l.b16 %v2692
    %v2709 = vunpack.c.l.b16 %v2693
    %v2710 = vunpack.c.l.b16 %v2694
    %v2711 = vpack.c.b16 %v2704, %v2703
    %v2712 = vpack.c.b16 %v2706, %v2705
    %v2713 = vpack.c.b16 %v2708, %v2707
    %v2714 = vpack.c.b16 %v2710, %v2709
    %v2720 = vsel %vm234, %v2685, 0
    %2722 = vmatprep.subr.bf16.mxu0 0
    %2723 = vmatpush1.bf16.msra.mxu0 0
    %2724 = vmatprep.subr.bf16.mxu0 0
    %2725 = vmatpush1.bf16.msra.mxu0 0
    %2726 = vmatprep.subr.bf16.mxu0 0
    %2727 = vmatpush1.bf16.msra.mxu0 0
    %2728 = vmatprep.subr.bf16.mxu0 0
    %2729 = vmatpush1.bf16.msra.mxu0 0
    %2730 = vmatprep.subr.bf16.mxu0 0
    %2731 = vmatpush1.bf16.msra.mxu0 %v2714
    %2732 = vmatprep.subr.bf16.mxu0 0
    %2733 = vmatpush1.bf16.msra.mxu0 %v2713
    %2734 = vmatprep.subr.bf16.mxu0 0
    %2735 = vmatpush1.bf16.msra.mxu0 %v2712
    %2736 = vmatprep.subr.bf16.mxu0 0
    %2737 = vmatpush1.bf16.msra.mxu0 %v2711
    %2738 = vmatprep.subr.bf16.mxu0 0
    %2739 = vmatpush2.bf16.msra.mxu0 0
    %2740 = vmatprep.subr.bf16.mxu0 0
    %2741 = vmatpush2.bf16.msra.mxu0 0
    %2742 = vmatprep.subr.bf16.mxu0 0
    %2743 = vmatpush2.bf16.msra.mxu0 0
    %2744 = vmatprep.subr.bf16.mxu0 0
    %2745 = vmatpush2.bf16.msra.mxu0 0
    %2746 = vmatprep.subr.bf16.mxu0 0
    %2747 = vmatpush2.bf16.msra.mxu0 0
    %2748 = vmatprep.subr.bf16.mxu0 0
    %2749 = vmatpush2.bf16.msra.mxu0 0
    %2750 = vmatprep.subr.bf16.mxu0 0
    %2751 = vmatpush2.bf16.msra.mxu0 0
    %2752 = vmatprep.subr.bf16.mxu0 0
    %2753 = vmatpush2.bf16.msra.mxu0 0
    %2754 = vmatprep.mubr.bf16.mxu0 0
    %2755 = vmatmul.mubr.bf16.gmra.mxu0 %v2720
    %v2756 = vpop.f32.mrf.mxu0
    %v2757 = vadd.f32 0.0, %v2756
    %v2758 = vpop.f32.mrf.mxu0
    %v2759 = vpop.f32.mrf.mxu0
    %v2760 = vpop.f32.mrf.mxu0
    %2761 = vdwg.mxu0
    %v2762 = vadd.f32 %v2639, %v2757
    %v2763 = vld [vmem:[#allocation17] sm:$0x1]
    %v2765 = vlaneseq
    %v2766 = vshrl.u32 %v2765, 7
    %v2767 = vsub.s32 0, %v2766
    %v2768 = vrot.slane %v2763, %v2767
    %v2770 = vadd.f32 %v2762, %v2768
    %vm2771 = vcmask 254976
    %2772 = vst.msk [vmem:[#allocation19] sm:$0x3] %vm2771, %v2770
    // Predicated region
    $region118: #{inverse_generator_forward.1} parent=1 // pred_check
      _
    $region119: #{inverse_generator_forward.1} parent=1 // pred_check_branch
      %2774 = sbr.rel (0) target = $region121
    $region120: #{inverse_generator_forward.1} parent=1 // pred_region
      %s2776 = ssub.s32 32, 32
      %2777 = vsyncadd [#allocation4], %s2776
      %s2779 = sshll.u32 [#allocation19], 4
      %s2780 = int_to_ptr.vmem [resolvable:$true] %s2779
      %2782 = dma.vmem_to_hbm [thread:$0]  %s2780, 32, %s19, [#allocation4]
    $region121: #{inverse_generator_forward.1} parent=1 // pred_fallthru
      _
    // Predicated region
    $region122: #{inverse_generator_forward.1} parent=1 // pred_check
      _
    $region123: #{inverse_generator_forward.1} parent=1 // pred_check_branch
      %2784 = sbr.rel (0) target = $region125
    $region124: #{inverse_generator_forward.1} parent=1 // pred_region
      %2785 = dma.done [#allocation4], 32
    $region125: #{inverse_generator_forward.1} parent=1 // pred_fallthru
      _
    %2786 = vsyncpa [#allocation3], 1
    %2787 = vsyncpa [#allocation6], 1
    %2788 = vsyncpa [#allocation9], 1
    %2789 = vsyncpa [#allocation12], 1
    %2790 = vsyncpa [#allocation15], 1
    %2791 = vsyncpa [#allocation18], 1
    %2792 = vsyncpa [#allocation4], 1

</llo_original>
